<compile_context>
chip_gen: v6e
topology: v6e:2x2x1
jax: 0.10.0
libtpu: 0.0.40
codegen_flags: <defaults>
</compile_context>

<pallas_src>
import math

import jax
import jax.numpy as jnp
from jax.experimental import pallas as pl
from jax.experimental.pallas import tpu as pltpu

B_IMGS = 4        # images per call (grid axis)
N_BOXES = 16      # number of RoIs per image (N in the PyTorch forward)
APP_DIM = 128     # appearance_feature_dim
KEY_DIM = 32      # key_feature_dim
GEO_DIM = 32      # geo_feature_dim
N_REL = 4         # n_relations; N_REL * KEY_DIM == APP_DIM
RK = N_REL * KEY_DIM   # 128


def relation_kernel(f_a_ref, pe_ref, w_all_ref, b_all_ref,
                    wg_w_ref, wg_b_ref, out_ref):
    f_a = f_a_ref[...]                                  # (N, A)  f32
    pe = pe_ref[...]                                    # (N, N, G) f32

    # One fused MXU matmul for WK/WQ/WV of all relation units:
    # bf16 x bf16 -> f32 accumulate; biases (and the 1/sqrt(K) scale on the
    # WQ block) are pre-folded wrapper-side into one f32 bias row.
    proj = (jnp.dot(f_a.astype(jnp.bfloat16), w_all_ref[...],
                    preferred_element_type=jnp.float32)
            + b_all_ref[...])                           # (N, 3*R*K) f32

    outs = []
    for r in range(N_REL):                              # unrolled, single step
        wk = proj[:, r * KEY_DIM:(r + 1) * KEY_DIM]                     # (N, K)
        wq = proj[:, RK + r * KEY_DIM:RK + (r + 1) * KEY_DIM]           # (N, K), pre-scaled
        wv = proj[:, 2 * RK + r * KEY_DIM:2 * RK + (r + 1) * KEY_DIM]   # (N, K)

        # Geometric gate: (G -> 1) linear as broadcast-mul + lane reduce.
        # relu followed by clamp(min=1e-6) == max(x, 1e-6).
        gate = jnp.maximum(
            jnp.sum(pe * wg_w_ref[r], axis=-1) + wg_b_ref[r], 1e-6)     # (N, N)

        # scores[m, n] = wk[m] . wq[n]   (1/sqrt(K) already folded into wq)
        scores = jnp.einsum('mk,nk->mn', wk, wq,
                            preferred_element_type=jnp.float32)         # (N, N)

        # softmax(log(gate) + scores) over dim=1, in log-free form
        # (identical math, exact normalization).
        mx = jnp.max(scores, axis=1, keepdims=True)
        num = gate * jnp.exp(scores - mx)
        p = num / jnp.sum(num, axis=1, keepdims=True)

        outs.append(jnp.dot(p, wv, preferred_element_type=jnp.float32))  # (N, K)

    # Lane-dense (N, 128) output with the residual folded in — one full vst.
    out_ref[...] = (jnp.concatenate(outs, axis=-1) + f_a).astype(out_ref.dtype)


def prepare_params(params):
    """One-time (outside the hot path) stacking of per-unit weights into the
    lane-wide slabs the kernel consumes.  Linear weights are (in, out)."""
    inv_sqrt_k = 1.0 / math.sqrt(KEY_DIM)

    def stack_w(w):   # (R, A, K) -> (A, R*K); unit r occupies contiguous K cols
        return jnp.transpose(w, (1, 0, 2)).reshape(APP_DIM, RK)

    def stack_b(b):   # (R, 1, K) -> (1, R*K)
        return b.reshape(1, RK)

    w_all = jnp.concatenate(
        [stack_w(params['wk_w']),
         stack_w(params['wq_w']) * inv_sqrt_k,          # fold 1/sqrt(K) into WQ
         stack_w(params['wv_w'])],
        axis=1).astype(jnp.bfloat16)                    # (A, 3*R*K) bf16 in HBM
    b_all = jnp.concatenate(
        [stack_b(params['wk_b']),
         stack_b(params['wq_b']) * inv_sqrt_k,
         stack_b(params['wv_b'])],
        axis=1)                                         # (1, 3*R*K) f32
    return {
        'w_all': w_all,
        'b_all': b_all,
        'wg_w': params['wg_w'],                         # (R, 1, G) f32
        'wg_b': params['wg_b'].reshape(N_REL),          # (R,)  f32 -> SMEM
    }


@jax.jit
def relation_module_pallas(f_a, pe, prep):
    """Pallas implementation of RelationModule.forward over a batch of images.

    f_a: (B, N, A) float32, pe: (B, N, N, G) float32."""
    b_imgs = f_a.shape[0]
    smem = pltpu.MemorySpace.SMEM
    grid_spec = pltpu.PrefetchScalarGridSpec(
        num_scalar_prefetch=0,
        grid=(b_imgs,),
        in_specs=[
            # Per-image tiles: pipelined/double-buffered by BlockSpec.
            pl.BlockSpec((None, N_BOXES, APP_DIM), lambda b: (b, 0, 0)),
            pl.BlockSpec((None, N_BOXES, N_BOXES, GEO_DIM), lambda b: (b, 0, 0, 0)),
            # Weight slabs: constant index_map -> stay VMEM-resident across steps.
            pl.BlockSpec((APP_DIM, 3 * RK), lambda b: (0, 0)),
            pl.BlockSpec((1, 3 * RK), lambda b: (0, 0)),
            pl.BlockSpec((N_REL, 1, GEO_DIM), lambda b: (0, 0, 0)),
            pl.BlockSpec(memory_space=smem),            # per-unit WG scalar biases
        ],
        out_specs=pl.BlockSpec((None, N_BOXES, RK), lambda b: (b, 0, 0)),
    )
    return pl.pallas_call(
        relation_kernel,
        out_shape=jax.ShapeDtypeStruct((b_imgs, N_BOXES, RK), jnp.float32),
        grid_spec=grid_spec,
        compiler_params=pltpu.CompilerParams(
            dimension_semantics=("parallel",)),          # 2 TCs on v7x
    )(f_a, pe, prep['w_all'], prep['b_all'], prep['wg_w'], prep['wg_b'])


def relation_module_reference(f_a, pe, params):
    """Pure-JAX f32 reference mirroring the PyTorch forward (per image)."""
    def one_image(fa_i, pe_i):
        pe_flat = pe_i.reshape(-1, GEO_DIM)
        outs = []
        for r in range(N_REL):
            wg = jax.nn.relu(pe_flat @ params['wg_w'][r].reshape(GEO_DIM, 1)
                             + params['wg_b'][r, 0])                   # (N*N, 1)
            wk = fa_i @ params['wk_w'][r] + params['wk_b'][r, 0]       # (N, K)
            wq = fa_i @ params['wq_w'][r] + params['wq_b'][r, 0]       # (N, K)
            wv = fa_i @ params['wv_w'][r] + params['wv_b'][r, 0]       # (N, K)
            scaled_dot = (wk @ wq.T) / math.sqrt(KEY_DIM)              # (N, N)
            w_g = wg.reshape(N_BOXES, N_BOXES)
            w_mn = jnp.log(jnp.maximum(w_g, 1e-6)) + scaled_dot
            w_mn = jax.nn.softmax(w_mn, axis=1)
            outs.append(w_mn @ wv)
        return jnp.concatenate(outs, axis=-1) + fa_i
    return jnp.stack([one_image(f_a[b], pe[b]) for b in range(f_a.shape[0])])


def init_params(key):
    """Deterministic synthetic parameters (stacked over the Nr relation units).
    Linear weights are stored transposed, i.e. shape (in, out)."""
    ks = jax.random.split(key, 8)
    scale = 0.05
    return {
        'wg_w': scale * jax.random.normal(ks[0], (N_REL, 1, GEO_DIM), jnp.float32),
        'wg_b': scale * jax.random.normal(ks[1], (N_REL, 1, 1), jnp.float32),
        'wk_w': scale * jax.random.normal(ks[2], (N_REL, APP_DIM, KEY_DIM), jnp.float32),
        'wk_b': scale * jax.random.normal(ks[3], (N_REL, 1, KEY_DIM), jnp.float32),
        'wq_w': scale * jax.random.normal(ks[4], (N_REL, APP_DIM, KEY_DIM), jnp.float32),
        'wq_b': scale * jax.random.normal(ks[5], (N_REL, 1, KEY_DIM), jnp.float32),
        'wv_w': scale * jax.random.normal(ks[6], (N_REL, APP_DIM, KEY_DIM), jnp.float32),
        'wv_b': scale * jax.random.normal(ks[7], (N_REL, 1, KEY_DIM), jnp.float32),
    }


if __name__ == "__main__":
    key = jax.random.PRNGKey(0)
    k_fa, k_pe, k_params = jax.random.split(key, 3)

    f_a = jax.random.normal(k_fa, (B_IMGS, N_BOXES, APP_DIM), jnp.float32)
    # position_embedding: (B, N, N, G) pairwise geometric embedding per image
    pe = jax.random.uniform(k_pe, (B_IMGS, N_BOXES, N_BOXES, GEO_DIM), jnp.float32)
    params = init_params(k_params)

    # One-time weight stacking (hoisted out of the per-call path).
    prep = prepare_params(params)

    out = relation_module_pallas(f_a, pe, prep)
    out = jax.block_until_ready(out)

    ref = relation_module_reference(f_a, pe, params)
    assert out.shape == (B_IMGS, N_BOXES, APP_DIM)
    # Tolerance covers the bf16 MXU operands of the fused projection matmul
    # vs. the all-f32 reference; everything downstream of the matmul is f32
    # with exact softmax normalization.
    assert jnp.allclose(out, ref, atol=2e-2, rtol=2e-2), (
        float(jnp.max(jnp.abs(out - ref))))

    print("KERNEL_OK")
</pallas_src>

<mosaic_0001>
module attributes {stable_mosaic.version = 11 : i64} {
  func.func @relation_kernel(%arg0: i32, %arg1: memref<1x16x128xf32, #tpu.memory_space<vmem>>, %arg2: memref<1x16x16x32xf32, #tpu.memory_space<vmem>>, %arg3: memref<128x384xbf16, #tpu.memory_space<vmem>>, %arg4: memref<1x384xf32, #tpu.memory_space<vmem>>, %arg5: memref<4x1x32xf32, #tpu.memory_space<vmem>>, %arg6: memref<4xf32, #tpu.memory_space<smem>>, %arg7: memref<1x16x128xf32, #tpu.memory_space<vmem>>) attributes {dimension_semantics = [#tpu.dimension_semantics<parallel>], iteration_bounds = array<i64: 4>, scalar_prefetch = 0 : i64, scratch_operands = 0 : i64, tpu.core_type = #tpu.core_type<tc>, window_params = [{transform_indices = @transform_0, window_bounds = array<i64: 1, 16, 128>}, {transform_indices = @transform_1, window_bounds = array<i64: 1, 16, 16, 32>}, {pipeline_mode = #tpu.pipeline_mode<synchronous>, transform_indices = @transform_2, window_bounds = array<i64: 128, 384>}, {pipeline_mode = #tpu.pipeline_mode<synchronous>, transform_indices = @transform_3, window_bounds = array<i64: 1, 384>}, {pipeline_mode = #tpu.pipeline_mode<synchronous>, transform_indices = @transform_4, window_bounds = array<i64: 4, 1, 32>}, {transform_indices = @transform_5, window_bounds = array<i64: 4>}, {transform_indices = @transform_6, window_bounds = array<i64: 1, 16, 128>}]} {
    %c0 = arith.constant 0 : index
    %c0_0 = arith.constant 0 : index
    %c0_1 = arith.constant 0 : index
    %0 = vector.load %arg1[%c0, %c0_0, %c0_1] : memref<1x16x128xf32, #tpu.memory_space<vmem>>, vector<1x16x128xf32>
    %1 = vector.shape_cast %0 : vector<1x16x128xf32> to vector<16x128xf32>
    %c0_2 = arith.constant 0 : index
    %c0_3 = arith.constant 0 : index
    %c0_4 = arith.constant 0 : index
    %c0_5 = arith.constant 0 : index
    %2 = vector.load %arg2[%c0_2, %c0_3, %c0_4, %c0_5] : memref<1x16x16x32xf32, #tpu.memory_space<vmem>>, vector<1x16x16x32xf32>
    %3 = vector.shape_cast %2 : vector<1x16x16x32xf32> to vector<16x16x32xf32>
    %4 = arith.truncf %1 : vector<16x128xf32> to vector<16x128xbf16>
    %c0_6 = arith.constant 0 : index
    %c0_7 = arith.constant 0 : index
    %5 = vector.load %arg3[%c0_6, %c0_7] : memref<128x384xbf16, #tpu.memory_space<vmem>>, vector<128x384xbf16>
    %cst = arith.constant dense<0.000000e+00> : vector<16x384xf32>
    %6 = tpu.matmul %4, %5, %cst {dimension_numbers = #tpu.dot_dimension_numbers<[1], [0], [0], [1], [0, 0, 1, 1], [], []>} : vector<16x128xbf16>, vector<128x384xbf16>, vector<16x384xf32> -> vector<16x384xf32>
    %c0_8 = arith.constant 0 : index
    %c0_9 = arith.constant 0 : index
    %7 = vector.load %arg4[%c0_8, %c0_9] : memref<1x384xf32, #tpu.memory_space<vmem>>, vector<1x384xf32>
    %8 = vector.broadcast %7 : vector<1x384xf32> to vector<16x384xf32>
    %9 = arith.addf %6, %8 : vector<16x384xf32>
    %10 = vector.extract_strided_slice %9 {offsets = [0, 0], sizes = [16, 32], strides = [1, 1]} : vector<16x384xf32> to vector<16x32xf32>
    %11 = vector.extract_strided_slice %9 {offsets = [0, 128], sizes = [16, 32], strides = [1, 1]} : vector<16x384xf32> to vector<16x32xf32>
    %12 = vector.extract_strided_slice %9 {offsets = [0, 256], sizes = [16, 32], strides = [1, 1]} : vector<16x384xf32> to vector<16x32xf32>
    %c0_10 = arith.constant 0 : index
    %c0_11 = arith.constant 0 : index
    %c0_12 = arith.constant 0 : index
    %13 = vector.load %arg5[%c0_10, %c0_11, %c0_12] : memref<4x1x32xf32, #tpu.memory_space<vmem>>, vector<1x1x32xf32>
    %14 = vector.shape_cast %13 : vector<1x1x32xf32> to vector<1x32xf32>
    %15 = vector.shape_cast %14 : vector<1x32xf32> to vector<1x1x32xf32>
    %16 = vector.broadcast %15 : vector<1x1x32xf32> to vector<16x16x32xf32>
    %17 = arith.mulf %3, %16 : vector<16x16x32xf32>
    %cst_13 = arith.constant dense<0.000000e+00> : vector<16x16xf32>
    %18 = vector.multi_reduction <add>, %17, %cst_13 [2] : vector<16x16x32xf32> to vector<16x16xf32>
    %c0_14 = arith.constant 0 : index
    %19 = memref.load %arg6[%c0_14] : memref<4xf32, #tpu.memory_space<smem>>
    %20 = vector.broadcast %19 : f32 to vector<16x16xf32>
    %21 = arith.addf %18, %20 : vector<16x16xf32>
    %cst_15 = arith.constant 9.99999997E-7 : f32
    %22 = vector.broadcast %cst_15 : f32 to vector<16x16xf32>
    %23 = arith.maximumf %21, %22 : vector<16x16xf32>
    "tpu.trace_start"() <{level = 10 : i32, message = "mk,nk->mn"}> : () -> ()
    %cst_16 = arith.constant dense<0.000000e+00> : vector<16x16xf32>
    %24 = tpu.matmul %10, %11, %cst_16 {dimension_numbers = #tpu.dot_dimension_numbers<[1], [1], [0], [0], [0, 0, 1, 0], [], []>} : vector<16x32xf32>, vector<16x32xf32>, vector<16x16xf32> -> vector<16x16xf32>
    "tpu.trace_stop"() : () -> ()
    %cst_17 = arith.constant dense<0xFF800000> : vector<16xf32>
    %25 = vector.multi_reduction <maximumf>, %24, %cst_17 [1] : vector<16x16xf32> to vector<16xf32>
    %26 = vector.shape_cast %25 : vector<16xf32> to vector<16x1xf32>
    %27 = vector.broadcast %26 : vector<16x1xf32> to vector<16x16xf32>
    %28 = arith.subf %24, %27 : vector<16x16xf32>
    %29 = math.exp %28 : vector<16x16xf32>
    %30 = arith.mulf %23, %29 : vector<16x16xf32>
    %cst_18 = arith.constant dense<0.000000e+00> : vector<16xf32>
    %31 = vector.multi_reduction <add>, %30, %cst_18 [1] : vector<16x16xf32> to vector<16xf32>
    %32 = vector.shape_cast %31 : vector<16xf32> to vector<16x1xf32>
    %33 = vector.broadcast %32 : vector<16x1xf32> to vector<16x16xf32>
    %34 = arith.divf %30, %33 : vector<16x16xf32>
    %cst_19 = arith.constant dense<0.000000e+00> : vector<16x32xf32>
    %35 = tpu.matmul %34, %12, %cst_19 {dimension_numbers = #tpu.dot_dimension_numbers<[1], [0], [0], [1], [0, 0, 1, 1], [], []>} : vector<16x16xf32>, vector<16x32xf32>, vector<16x32xf32> -> vector<16x32xf32>
    %36 = vector.extract_strided_slice %9 {offsets = [0, 32], sizes = [16, 32], strides = [1, 1]} : vector<16x384xf32> to vector<16x32xf32>
    %37 = vector.extract_strided_slice %9 {offsets = [0, 160], sizes = [16, 32], strides = [1, 1]} : vector<16x384xf32> to vector<16x32xf32>
    %38 = vector.extract_strided_slice %9 {offsets = [0, 288], sizes = [16, 32], strides = [1, 1]} : vector<16x384xf32> to vector<16x32xf32>
    %c1 = arith.constant 1 : index
    %c0_20 = arith.constant 0 : index
    %c0_21 = arith.constant 0 : index
    %39 = vector.load %arg5[%c1, %c0_20, %c0_21] : memref<4x1x32xf32, #tpu.memory_space<vmem>>, vector<1x1x32xf32>
    %40 = vector.shape_cast %39 : vector<1x1x32xf32> to vector<1x32xf32>
    %41 = vector.shape_cast %40 : vector<1x32xf32> to vector<1x1x32xf32>
    %42 = vector.broadcast %41 : vector<1x1x32xf32> to vector<16x16x32xf32>
    %43 = arith.mulf %3, %42 : vector<16x16x32xf32>
    %cst_22 = arith.constant dense<0.000000e+00> : vector<16x16xf32>
    %44 = vector.multi_reduction <add>, %43, %cst_22 [2] : vector<16x16x32xf32> to vector<16x16xf32>
    %c1_23 = arith.constant 1 : index
    %45 = memref.load %arg6[%c1_23] : memref<4xf32, #tpu.memory_space<smem>>
    %46 = vector.broadcast %45 : f32 to vector<16x16xf32>
    %47 = arith.addf %44, %46 : vector<16x16xf32>
    %cst_24 = arith.constant 9.99999997E-7 : f32
    %48 = vector.broadcast %cst_24 : f32 to vector<16x16xf32>
    %49 = arith.maximumf %47, %48 : vector<16x16xf32>
    "tpu.trace_start"() <{level = 10 : i32, message = "mk,nk->mn"}> : () -> ()
    %cst_25 = arith.constant dense<0.000000e+00> : vector<16x16xf32>
    %50 = tpu.matmul %36, %37, %cst_25 {dimension_numbers = #tpu.dot_dimension_numbers<[1], [1], [0], [0], [0, 0, 1, 0], [], []>} : vector<16x32xf32>, vector<16x32xf32>, vector<16x16xf32> -> vector<16x16xf32>
    "tpu.trace_stop"() : () -> ()
    %cst_26 = arith.constant dense<0xFF800000> : vector<16xf32>
    %51 = vector.multi_reduction <maximumf>, %50, %cst_26 [1] : vector<16x16xf32> to vector<16xf32>
    %52 = vector.shape_cast %51 : vector<16xf32> to vector<16x1xf32>
    %53 = vector.broadcast %52 : vector<16x1xf32> to vector<16x16xf32>
    %54 = arith.subf %50, %53 : vector<16x16xf32>
    %55 = math.exp %54 : vector<16x16xf32>
    %56 = arith.mulf %49, %55 : vector<16x16xf32>
    %cst_27 = arith.constant dense<0.000000e+00> : vector<16xf32>
    %57 = vector.multi_reduction <add>, %56, %cst_27 [1] : vector<16x16xf32> to vector<16xf32>
    %58 = vector.shape_cast %57 : vector<16xf32> to vector<16x1xf32>
    %59 = vector.broadcast %58 : vector<16x1xf32> to vector<16x16xf32>
    %60 = arith.divf %56, %59 : vector<16x16xf32>
    %cst_28 = arith.constant dense<0.000000e+00> : vector<16x32xf32>
    %61 = tpu.matmul %60, %38, %cst_28 {dimension_numbers = #tpu.dot_dimension_numbers<[1], [0], [0], [1], [0, 0, 1, 1], [], []>} : vector<16x16xf32>, vector<16x32xf32>, vector<16x32xf32> -> vector<16x32xf32>
    %62 = vector.extract_strided_slice %9 {offsets = [0, 64], sizes = [16, 32], strides = [1, 1]} : vector<16x384xf32> to vector<16x32xf32>
    %63 = vector.extract_strided_slice %9 {offsets = [0, 192], sizes = [16, 32], strides = [1, 1]} : vector<16x384xf32> to vector<16x32xf32>
    %64 = vector.extract_strided_slice %9 {offsets = [0, 320], sizes = [16, 32], strides = [1, 1]} : vector<16x384xf32> to vector<16x32xf32>
    %c2 = arith.constant 2 : index
    %c0_29 = arith.constant 0 : index
    %c0_30 = arith.constant 0 : index
    %65 = vector.load %arg5[%c2, %c0_29, %c0_30] : memref<4x1x32xf32, #tpu.memory_space<vmem>>, vector<1x1x32xf32>
    %66 = vector.shape_cast %65 : vector<1x1x32xf32> to vector<1x32xf32>
    %67 = vector.shape_cast %66 : vector<1x32xf32> to vector<1x1x32xf32>
    %68 = vector.broadcast %67 : vector<1x1x32xf32> to vector<16x16x32xf32>
    %69 = arith.mulf %3, %68 : vector<16x16x32xf32>
    %cst_31 = arith.constant dense<0.000000e+00> : vector<16x16xf32>
    %70 = vector.multi_reduction <add>, %69, %cst_31 [2] : vector<16x16x32xf32> to vector<16x16xf32>
    %c2_32 = arith.constant 2 : index
    %71 = memref.load %arg6[%c2_32] : memref<4xf32, #tpu.memory_space<smem>>
    %72 = vector.broadcast %71 : f32 to vector<16x16xf32>
    %73 = arith.addf %70, %72 : vector<16x16xf32>
    %cst_33 = arith.constant 9.99999997E-7 : f32
    %74 = vector.broadcast %cst_33 : f32 to vector<16x16xf32>
    %75 = arith.maximumf %73, %74 : vector<16x16xf32>
    "tpu.trace_start"() <{level = 10 : i32, message = "mk,nk->mn"}> : () -> ()
    %cst_34 = arith.constant dense<0.000000e+00> : vector<16x16xf32>
    %76 = tpu.matmul %62, %63, %cst_34 {dimension_numbers = #tpu.dot_dimension_numbers<[1], [1], [0], [0], [0, 0, 1, 0], [], []>} : vector<16x32xf32>, vector<16x32xf32>, vector<16x16xf32> -> vector<16x16xf32>
    "tpu.trace_stop"() : () -> ()
    %cst_35 = arith.constant dense<0xFF800000> : vector<16xf32>
    %77 = vector.multi_reduction <maximumf>, %76, %cst_35 [1] : vector<16x16xf32> to vector<16xf32>
    %78 = vector.shape_cast %77 : vector<16xf32> to vector<16x1xf32>
    %79 = vector.broadcast %78 : vector<16x1xf32> to vector<16x16xf32>
    %80 = arith.subf %76, %79 : vector<16x16xf32>
    %81 = math.exp %80 : vector<16x16xf32>
    %82 = arith.mulf %75, %81 : vector<16x16xf32>
    %cst_36 = arith.constant dense<0.000000e+00> : vector<16xf32>
    %83 = vector.multi_reduction <add>, %82, %cst_36 [1] : vector<16x16xf32> to vector<16xf32>
    %84 = vector.shape_cast %83 : vector<16xf32> to vector<16x1xf32>
    %85 = vector.broadcast %84 : vector<16x1xf32> to vector<16x16xf32>
    %86 = arith.divf %82, %85 : vector<16x16xf32>
    %cst_37 = arith.constant dense<0.000000e+00> : vector<16x32xf32>
    %87 = tpu.matmul %86, %64, %cst_37 {dimension_numbers = #tpu.dot_dimension_numbers<[1], [0], [0], [1], [0, 0, 1, 1], [], []>} : vector<16x16xf32>, vector<16x32xf32>, vector<16x32xf32> -> vector<16x32xf32>
    %88 = vector.extract_strided_slice %9 {offsets = [0, 96], sizes = [16, 32], strides = [1, 1]} : vector<16x384xf32> to vector<16x32xf32>
    %89 = vector.extract_strided_slice %9 {offsets = [0, 224], sizes = [16, 32], strides = [1, 1]} : vector<16x384xf32> to vector<16x32xf32>
    %90 = vector.extract_strided_slice %9 {offsets = [0, 352], sizes = [16, 32], strides = [1, 1]} : vector<16x384xf32> to vector<16x32xf32>
    %c3 = arith.constant 3 : index
    %c0_38 = arith.constant 0 : index
    %c0_39 = arith.constant 0 : index
    %91 = vector.load %arg5[%c3, %c0_38, %c0_39] : memref<4x1x32xf32, #tpu.memory_space<vmem>>, vector<1x1x32xf32>
    %92 = vector.shape_cast %91 : vector<1x1x32xf32> to vector<1x32xf32>
    %93 = vector.shape_cast %92 : vector<1x32xf32> to vector<1x1x32xf32>
    %94 = vector.broadcast %93 : vector<1x1x32xf32> to vector<16x16x32xf32>
    %95 = arith.mulf %3, %94 : vector<16x16x32xf32>
    %cst_40 = arith.constant dense<0.000000e+00> : vector<16x16xf32>
    %96 = vector.multi_reduction <add>, %95, %cst_40 [2] : vector<16x16x32xf32> to vector<16x16xf32>
    %c3_41 = arith.constant 3 : index
    %97 = memref.load %arg6[%c3_41] : memref<4xf32, #tpu.memory_space<smem>>
    %98 = vector.broadcast %97 : f32 to vector<16x16xf32>
    %99 = arith.addf %96, %98 : vector<16x16xf32>
    %cst_42 = arith.constant 9.99999997E-7 : f32
    %100 = vector.broadcast %cst_42 : f32 to vector<16x16xf32>
    %101 = arith.maximumf %99, %100 : vector<16x16xf32>
    "tpu.trace_start"() <{level = 10 : i32, message = "mk,nk->mn"}> : () -> ()
    %cst_43 = arith.constant dense<0.000000e+00> : vector<16x16xf32>
    %102 = tpu.matmul %88, %89, %cst_43 {dimension_numbers = #tpu.dot_dimension_numbers<[1], [1], [0], [0], [0, 0, 1, 0], [], []>} : vector<16x32xf32>, vector<16x32xf32>, vector<16x16xf32> -> vector<16x16xf32>
    "tpu.trace_stop"() : () -> ()
    %cst_44 = arith.constant dense<0xFF800000> : vector<16xf32>
    %103 = vector.multi_reduction <maximumf>, %102, %cst_44 [1] : vector<16x16xf32> to vector<16xf32>
    %104 = vector.shape_cast %103 : vector<16xf32> to vector<16x1xf32>
    %105 = vector.broadcast %104 : vector<16x1xf32> to vector<16x16xf32>
    %106 = arith.subf %102, %105 : vector<16x16xf32>
    %107 = math.exp %106 : vector<16x16xf32>
    %108 = arith.mulf %101, %107 : vector<16x16xf32>
    %cst_45 = arith.constant dense<0.000000e+00> : vector<16xf32>
    %109 = vector.multi_reduction <add>, %108, %cst_45 [1] : vector<16x16xf32> to vector<16xf32>
    %110 = vector.shape_cast %109 : vector<16xf32> to vector<16x1xf32>
    %111 = vector.broadcast %110 : vector<16x1xf32> to vector<16x16xf32>
    %112 = arith.divf %108, %111 : vector<16x16xf32>
    %cst_46 = arith.constant dense<0.000000e+00> : vector<16x32xf32>
    %113 = tpu.matmul %112, %90, %cst_46 {dimension_numbers = #tpu.dot_dimension_numbers<[1], [0], [0], [1], [0, 0, 1, 1], [], []>} : vector<16x16xf32>, vector<16x32xf32>, vector<16x32xf32> -> vector<16x32xf32>
    %114 = tpu.concatenate %35, %61, %87, %113 in 1 : vector<16x32xf32>, vector<16x32xf32>, vector<16x32xf32>, vector<16x32xf32> -> vector<16x128xf32>
    %115 = arith.addf %114, %1 : vector<16x128xf32>
    %c0_47 = arith.constant 0 : index
    %c0_48 = arith.constant 0 : index
    %c0_49 = arith.constant 0 : index
    %116 = vector.load %arg7[%c0_47, %c0_48, %c0_49] : memref<1x16x128xf32, #tpu.memory_space<vmem>>, vector<1x16x128xf32>
    %117 = vector.shape_cast %116 : vector<1x16x128xf32> to vector<16x128xf32>
    %118 = vector.shape_cast %115 : vector<16x128xf32> to vector<1x16x128xf32>
    tpu.vector_store %arg7[%c0_47, %c0_48, %c0_49], %118 {strides = array<i32>} : memref<1x16x128xf32, #tpu.memory_space<vmem>>, vector<1x16x128xf32>,
    return
  }
  func.func @transform_0(%arg0: i32) -> (i32, i32, i32) {
    %c0_i32 = arith.constant 0 : i32
    %c0_i32_0 = arith.constant 0 : i32
    %c0_i32_1 = arith.constant 0 : i32
    return %arg0, %c0_i32, %c0_i32_0 : i32, i32, i32
  }
  func.func @transform_1(%arg0: i32) -> (i32, i32, i32, i32) {
    %c0_i32 = arith.constant 0 : i32
    %c0_i32_0 = arith.constant 0 : i32
    %c0_i32_1 = arith.constant 0 : i32
    %c0_i32_2 = arith.constant 0 : i32
    return %arg0, %c0_i32, %c0_i32_0, %c0_i32_1 : i32, i32, i32, i32
  }
  func.func @transform_2(%arg0: i32) -> (i32, i32) {
    %c0_i32 = arith.constant 0 : i32
    %c0_i32_0 = arith.constant 0 : i32
    %c0_i32_1 = arith.constant 0 : i32
    return %c0_i32, %c0_i32_0 : i32, i32
  }
  func.func @transform_3(%arg0: i32) -> (i32, i32) {
    %c0_i32 = arith.constant 0 : i32
    %c0_i32_0 = arith.constant 0 : i32
    %c0_i32_1 = arith.constant 0 : i32
    return %c0_i32, %c0_i32_0 : i32, i32
  }
  func.func @transform_4(%arg0: i32) -> (i32, i32, i32) {
    %c0_i32 = arith.constant 0 : i32
    %c0_i32_0 = arith.constant 0 : i32
    %c0_i32_1 = arith.constant 0 : i32
    %c0_i32_2 = arith.constant 0 : i32
    return %c0_i32, %c0_i32_0, %c0_i32_1 : i32, i32, i32
  }
  func.func @transform_5(%arg0: i32) -> i32 {
    %c0_i32 = arith.constant 0 : i32
    %c0_i32_0 = arith.constant 0 : i32
    return %c0_i32 : i32
  }
  func.func @transform_6(%arg0: i32) -> (i32, i32, i32) {
    %c0_i32 = arith.constant 0 : i32
    %c0_i32_0 = arith.constant 0 : i32
    %c0_i32_1 = arith.constant 0 : i32
    return %arg0, %c0_i32, %c0_i32_0 : i32, i32, i32
  }
}

</mosaic_0001>

<llo_original>
// kernel: relation_module_pallas.1
$region0: #{relation_module_pallas.1}
  #allocation0 [shape = 'u32[]', space=smem, size = 0x4, offset = 0x4, fixed_abs, tag = 'smem constant byte address 0x4 - core index']
  #allocation1 [shape = 'u32[144,128]{1,0:T(1,128)}', space=vmem, size = 0x12000, scoped, tag = 'internal scratch']
  %s0 = inlined_call_operand.hbm [shape: f32[4,16,128], index: 0, kind: input, shape index: {}]
  %s1 = inlined_call_operand.hbm [shape: f32[4,16,16,32], index: 1, kind: input, shape index: {}]
  %s2 = inlined_call_operand.hbm [shape: bf16[128,384], index: 2, kind: input, shape index: {}]
  %s3 = inlined_call_operand.vmem [shape: f32[1,384], index: 3, kind: input, shape index: {}]
  %s4 = inlined_call_operand.vmem [shape: f32[4,1,32], index: 4, kind: input, shape index: {}]
  %s5 = inlined_call_operand.hbm [shape: f32[4], index: 5, kind: input, shape index: {}]
  %s6 = inlined_call_operand.hbm [shape: f32[4,16,128], index: 6, kind: output, shape index: {}]
  %s7 = sld [smem:[#allocation0]]
  $region73: #{relation_module_pallas.1} parent=0
    _
  %s9 = ssub.s32 1, %s7
  %s10 = scalar_select 0, %s9, %s7
  $region1: #{relation_module_pallas.1} parent=0
    #allocation2 [shape = 'u8[16384]{0}', space=vmem, size = 0x4000, scoped, tag = 'input window, operand 0']
    #allocation3 [shape = 's32[2]{0}', space=sflag, size = 0x8, scoped, tag = 'scoped memory for relation_module_pallas.1']
    #allocation4 [shape = 's32[2]{0}', space=sflag, size = 0x8, scoped, tag = 'scoped memory for relation_module_pallas.1']
    #allocation5 [shape = 's32[2]{0}', space=sflag, size = 0x8, scoped, tag = 'scoped memory for relation_module_pallas.1']
    #allocation6 [shape = 'u8[262144]{0}', space=vmem, size = 0x40000, scoped, tag = 'input window, operand 1']
    #allocation7 [shape = 's32[2]{0}', space=sflag, size = 0x8, scoped, tag = 'scoped memory for relation_module_pallas.1']
    #allocation8 [shape = 'u8[98304]{0}', space=vmem, size = 0x18000, scoped, tag = 'input window, operand 2, single buffered']
    #allocation9 [shape = 'u8[512]{0}', space=smem, size = 0x200, scoped, tag = 'input window, operand 5, single buffered']
    #allocation10 [shape = 'u8[16384]{0}', space=vmem, size = 0x4000, scoped, tag = 'output window, operand 0']
    %11 = vsyncpa [#allocation3], 0
    %s12 = scalar_lea.sflag [#allocation3], 1
    %13 = vsyncpa %s12, 0
    %14 = vsyncpa [#allocation7], 0
    %s15 = scalar_lea.sflag [#allocation7], 1
    %16 = vsyncpa %s15, 0
    %17 = vsyncpa [#allocation5], 0
    %18 = vsyncpa [#allocation4], 0
    %s19 = scalar_lea.sflag [#allocation4], 1
    %20 = vsyncpa %s19, 0
    loop: start=0, step=1, limit=6
    $region2: #{relation_module_pallas.1} parent=1 // loop_pre_header
      _
    $region3: #{relation_module_pallas.1} parent=1 // loop_header
      %s22 = sphi 0, %s26
      %p23 = scmp.ge.s32.totalorder %s22, 6
      %s32 = sphi 0, %s34
      %s35 = sphi 0, %s32
      %s36 = sphi 0, %s35
      %s52 = sphi 0, %s36
      %s58 = sphi 0, %s60
      %s61 = sphi 0, %s58
      %s62 = sphi 0, %s61
      %s78 = sphi 0, %s62
      %s82 = sphi 0, %s82
      %s84 = sphi 0, %s82
      %s85 = sphi 0, %s84
      %s99 = sphi 0, %s85
      %s103 = sphi 0, %s103
      %s105 = sphi 0, %s103
      %s106 = sphi 0, %s105
      %s120 = sphi 0, %s106
      %s124 = sphi 0, %s124
      %s126 = sphi 0, %s124
      %s127 = sphi 0, %s126
      %s141 = sphi 0, %s127
      %s145 = sphi 0, %s145
      %s147 = sphi 0, %s145
      %s148 = sphi 0, %s147
      %s162 = sphi 0, %s148
      %s168 = sphi 0, %s170
      %s171 = sphi 0, %s168
      %s172 = sphi 0, %s171
      %s188 = sphi 0, %s172
    $region4: #{relation_module_pallas.1} parent=1 // loop_header_branch
      %25 = sbr.rel (%p23) target = $region8
    $region5: #{relation_module_pallas.1} parent=1 // loop_body
      %s27 = ssub.s32 %s22, 1
      %s28 = ssub.s32 %s22, 2
      %s29 = sadd.s32 %s22, 1
      %s30 = ssub.s32 %s22, %s29
      %p31 = scmp.eq.s32.totalorder %s30, 0
      %s33 = sadd.s32 %s32, 1
      %s34 = scalar_select %p31, %s32, %s33
      %p37 = pneg %p31
      %p38 = scmp.eq.s32.totalorder %s22, 3
      %p39 = por %p37, %p38
      %p40 = scmp.ne.s32.totalorder %s32, %s35
      %p41 = scmp.eq.s32.totalorder %s22, 0
      %p42 = por %p40, %p41
      %p43 = scmp.ne.s32.totalorder %s32, %s35
      %p44 = scmp.eq.s32.totalorder %s27, 3
      %p45 = por %p43, %p44
      %p46 = scmp.ne.s32.totalorder %s35, %s36
      %p47 = scmp.eq.s32.totalorder %s27, 0
      %p48 = por %p46, %p47
      %p49 = scmp.ne.s32.totalorder %s35, %s36
      %p50 = scmp.eq.s32.totalorder %s28, 3
      %p51 = por %p49, %p50
      %p53 = scmp.ne.s32.totalorder %s36, %s52
      %p54 = scmp.eq.s32.totalorder %s28, 0
      %p55 = por %p53, %p54
      %s56 = ssub.s32 %s22, %s29
      %p57 = scmp.eq.s32.totalorder %s56, 0
      %s59 = sadd.s32 %s58, 1
      %s60 = scalar_select %p57, %s58, %s59
      %p63 = pneg %p57
      %p64 = scmp.eq.s32.totalorder %s22, 3
      %p65 = por %p63, %p64
      %p66 = scmp.ne.s32.totalorder %s58, %s61
      %p67 = scmp.eq.s32.totalorder %s22, 0
      %p68 = por %p66, %p67
      %p69 = scmp.ne.s32.totalorder %s58, %s61
      %p70 = scmp.eq.s32.totalorder %s27, 3
      %p71 = por %p69, %p70
      %p72 = scmp.ne.s32.totalorder %s61, %s62
      %p73 = scmp.eq.s32.totalorder %s27, 0
      %p74 = por %p72, %p73
      %p75 = scmp.ne.s32.totalorder %s61, %s62
      %p76 = scmp.eq.s32.totalorder %s28, 3
      %p77 = por %p75, %p76
      %p79 = scmp.ne.s32.totalorder %s62, %s78
      %p80 = scmp.eq.s32.totalorder %s28, 0
      %p81 = por %p79, %p80
      %s83 = sadd.s32 %s82, 1
      %p86 = scmp.eq.s32.totalorder %s22, 3
      %p87 = scmp.ne.s32.totalorder %s82, %s84
      %p88 = scmp.eq.s32.totalorder %s22, 0
      %p89 = por %p87, %p88
      %p90 = scmp.ne.s32.totalorder %s82, %s84
      %p91 = scmp.eq.s32.totalorder %s27, 3
      %p92 = por %p90, %p91
      %p93 = scmp.ne.s32.totalorder %s84, %s85
      %p94 = scmp.eq.s32.totalorder %s27, 0
      %p95 = por %p93, %p94
      %p96 = scmp.ne.s32.totalorder %s84, %s85
      %p97 = scmp.eq.s32.totalorder %s28, 3
      %p98 = por %p96, %p97
      %p100 = scmp.ne.s32.totalorder %s85, %s99
      %p101 = scmp.eq.s32.totalorder %s28, 0
      %p102 = por %p100, %p101
      %s104 = sadd.s32 %s103, 1
      %p107 = scmp.eq.s32.totalorder %s22, 3
      %p108 = scmp.ne.s32.totalorder %s103, %s105
      %p109 = scmp.eq.s32.totalorder %s22, 0
      %p110 = por %p108, %p109
      %p111 = scmp.ne.s32.totalorder %s103, %s105
      %p112 = scmp.eq.s32.totalorder %s27, 3
      %p113 = por %p111, %p112
      %p114 = scmp.ne.s32.totalorder %s105, %s106
      %p115 = scmp.eq.s32.totalorder %s27, 0
      %p116 = por %p114, %p115
      %p117 = scmp.ne.s32.totalorder %s105, %s106
      %p118 = scmp.eq.s32.totalorder %s28, 3
      %p119 = por %p117, %p118
      %p121 = scmp.ne.s32.totalorder %s106, %s120
      %p122 = scmp.eq.s32.totalorder %s28, 0
      %p123 = por %p121, %p122
      %s125 = sadd.s32 %s124, 1
      %p128 = scmp.eq.s32.totalorder %s22, 3
      %p129 = scmp.ne.s32.totalorder %s124, %s126
      %p130 = scmp.eq.s32.totalorder %s22, 0
      %p131 = por %p129, %p130
      %p132 = scmp.ne.s32.totalorder %s124, %s126
      %p133 = scmp.eq.s32.totalorder %s27, 3
      %p134 = por %p132, %p133
      %p135 = scmp.ne.s32.totalorder %s126, %s127
      %p136 = scmp.eq.s32.totalorder %s27, 0
      %p137 = por %p135, %p136
      %p138 = scmp.ne.s32.totalorder %s126, %s127
      %p139 = scmp.eq.s32.totalorder %s28, 3
      %p140 = por %p138, %p139
      %p142 = scmp.ne.s32.totalorder %s127, %s141
      %p143 = scmp.eq.s32.totalorder %s28, 0
      %p144 = por %p142, %p143
      %s146 = sadd.s32 %s145, 1
      %p149 = scmp.eq.s32.totalorder %s22, 3
      %p150 = scmp.ne.s32.totalorder %s145, %s147
      %p151 = scmp.eq.s32.totalorder %s22, 0
      %p152 = por %p150, %p151
      %p153 = scmp.ne.s32.totalorder %s145, %s147
      %p154 = scmp.eq.s32.totalorder %s27, 3
      %p155 = por %p153, %p154
      %p156 = scmp.ne.s32.totalorder %s147, %s148
      %p157 = scmp.eq.s32.totalorder %s27, 0
      %p158 = por %p156, %p157
      %p159 = scmp.ne.s32.totalorder %s147, %s148
      %p160 = scmp.eq.s32.totalorder %s28, 3
      %p161 = por %p159, %p160
      %p163 = scmp.ne.s32.totalorder %s148, %s162
      %p164 = scmp.eq.s32.totalorder %s28, 0
      %p165 = por %p163, %p164
      %s166 = ssub.s32 %s22, %s29
      %p167 = scmp.eq.s32.totalorder %s166, 0
      %s169 = sadd.s32 %s168, 1
      %s170 = scalar_select %p167, %s168, %s169
      %p173 = pneg %p167
      %p174 = scmp.eq.s32.totalorder %s22, 3
      %p175 = por %p173, %p174
      %p176 = scmp.ne.s32.totalorder %s168, %s171
      %p177 = scmp.eq.s32.totalorder %s22, 0
      %p178 = por %p176, %p177
      %p179 = scmp.ne.s32.totalorder %s168, %s171
      %p180 = scmp.eq.s32.totalorder %s27, 3
      %p181 = por %p179, %p180
      %p182 = scmp.ne.s32.totalorder %s171, %s172
      %p183 = scmp.eq.s32.totalorder %s27, 0
      %p184 = por %p182, %p183
      %p185 = scmp.ne.s32.totalorder %s171, %s172
      %p186 = scmp.eq.s32.totalorder %s28, 3
      %p187 = por %p185, %p186
      %p189 = scmp.ne.s32.totalorder %s172, %s188
      %p190 = scmp.eq.s32.totalorder %s28, 0
      %p191 = por %p189, %p190
      %p192 = scmp.le.s32.totalorder 1, %s22
      %p193 = scmp.lt.s32.totalorder %s22, 5
      %p194 = pnand %p192, %p193
      %p195 = pneg %p194
      // Predicated region
      $region9: #{relation_module_pallas.1} parent=5 // pred_check
        _
      $region10: #{relation_module_pallas.1} parent=5 // pred_check_branch
        %197 = sbr.rel (%p194) target = $region12
      $region11: #{relation_module_pallas.1} parent=5 // pred_region
        %s198 = ssub.s32 %s22, 1
        // Predicated region
        $region13: #{relation_module_pallas.1} parent=11 // pred_check
          %p199 = pneg %p95
        $region14: #{relation_module_pallas.1} parent=11 // pred_check_branch
          %201 = sbr.rel (%p199) target = $region16
        $region15: #{relation_module_pallas.1} parent=11 // pred_region
          %s203 = ssub.s32 3072, 3072
          %204 = vsyncadd [#allocation7], %s203
          %s205 = sshll.u32 [#allocation8], 4
          %s206 = int_to_ptr.vmem [resolvable:$true] %s205
          %211 = dma.hbm_to_vmem [thread:$0]  %s2, 3072, %s206, [#allocation7], 192, 192, 12
        $region16: #{relation_module_pallas.1} parent=11 // pred_fallthru
          _
        // Predicated region
        $region17: #{relation_module_pallas.1} parent=11 // pred_check
          %p212 = pneg %p116
        $region18: #{relation_module_pallas.1} parent=11 // pred_check_branch
          %214 = sbr.rel (%p212) target = $region20
        $region19: #{relation_module_pallas.1} parent=11 // pred_region
          _
        $region20: #{relation_module_pallas.1} parent=11 // pred_fallthru
          _
        // Predicated region
        $region21: #{relation_module_pallas.1} parent=11 // pred_check
          %p215 = pneg %p137
        $region22: #{relation_module_pallas.1} parent=11 // pred_check_branch
          %217 = sbr.rel (%p215) target = $region24
        $region23: #{relation_module_pallas.1} parent=11 // pred_region
          _
        $region24: #{relation_module_pallas.1} parent=11 // pred_fallthru
          _
        // Predicated region
        $region25: #{relation_module_pallas.1} parent=11 // pred_check
          %p218 = pneg %p158
        $region26: #{relation_module_pallas.1} parent=11 // pred_check_branch
          %220 = sbr.rel (%p218) target = $region28
        $region27: #{relation_module_pallas.1} parent=11 // pred_region
          %s222 = ssub.s32 16, 16
          %223 = vsyncadd [#allocation5], %s222
          %226 = dma.hbm_to_smem %s5, 16, [#allocation9], [#allocation5]
        $region28: #{relation_module_pallas.1} parent=11 // pred_fallthru
          _
      $region12: #{relation_module_pallas.1} parent=5 // pred_fallthru
        _
      %p227 = scmp.lt.s32.totalorder %s22, 4
      // Predicated region
      $region29: #{relation_module_pallas.1} parent=5 // pred_check
        %p228 = pneg %p227
      $region30: #{relation_module_pallas.1} parent=5 // pred_check_branch
        %230 = sbr.rel (%p228) target = $region32
      $region31: #{relation_module_pallas.1} parent=5 // pred_region
        // Predicated region
        $region33: #{relation_module_pallas.1} parent=31 // pred_check
          %p231 = pneg %p42
        $region34: #{relation_module_pallas.1} parent=31 // pred_check_branch
          %233 = sbr.rel (%p231) target = $region36
        $region35: #{relation_module_pallas.1} parent=31 // pred_region
          %s234 = sand.u32 %s32, 1
          %s235 = scalar_lea.sflag [#allocation3], %s234
          %s236 = sand.u32 %s32, 1
          %s237 = smul.addr %s236, 16
          %s238 = scalar_lea.vmem [#allocation2], %s237
          %s240 = ssub.s32 256, 256
          %241 = vsyncadd %s235, %s240
          %s242 = smul.addr %s22, 2
          %s243 = smul.addr %s242, 128
          %s244 = scalar_lea.hbm %s0, %s243
          %s245 = sshll.u32 %s238, 4
          %s246 = int_to_ptr.vmem [resolvable:$true] %s245
          %251 = dma.hbm_to_vmem [thread:$0]  %s244, 256, %s246, %s235, 128, 128, 8
        $region36: #{relation_module_pallas.1} parent=31 // pred_fallthru
          _
        // Predicated region
        $region37: #{relation_module_pallas.1} parent=31 // pred_check
          %p252 = pneg %p68
        $region38: #{relation_module_pallas.1} parent=31 // pred_check_branch
          %254 = sbr.rel (%p252) target = $region40
        $region39: #{relation_module_pallas.1} parent=31 // pred_region
          %s255 = sand.u32 %s22, 1
          %s256 = scalar_lea.sflag [#allocation7], %s255
          %s257 = sand.u32 %s58, 1
          %s258 = smul.addr %s257, 256
          %s259 = scalar_lea.vmem [#allocation6], %s258
          %s261 = ssub.s32 4096, 4096
          %262 = vsyncadd %s256, %s261
          %s263 = smul.addr %s22, 32
          %s264 = smul.addr %s263, 128
          %s265 = scalar_lea.hbm %s1, %s264
          %s266 = sshll.u32 %s259, 4
          %s267 = int_to_ptr.vmem [resolvable:$true] %s266
          %272 = dma.hbm_to_vmem [thread:$0]  %s265, 4096, %s267, %s256, 128, 128, 8
        $region40: #{relation_module_pallas.1} parent=31 // pred_fallthru
          _
      $region32: #{relation_module_pallas.1} parent=5 // pred_fallthru
        _
      %p273 = scmp.le.s32.totalorder 1, %s22
      %p274 = scmp.lt.s32.totalorder %s22, 5
      %p275 = pnand %p273, %p274
      %p276 = pneg %p275
      // Predicated region
      $region41: #{relation_module_pallas.1} parent=5 // pred_check
        _
      $region42: #{relation_module_pallas.1} parent=5 // pred_check_branch
        %278 = sbr.rel (%p275) target = $region44
      $region43: #{relation_module_pallas.1} parent=5 // pred_region
        %s279 = ssub.s32 %s22, 1
        %s280 = sand.u32 %s35, 1
        %s281 = scalar_lea.sflag [#allocation3], %s280
        %s282 = sand.u32 %s35, 1
        %s283 = smul.addr %s282, 16
        %s284 = scalar_lea.vmem [#allocation2], %s283
        // Predicated region
        $region45: #{relation_module_pallas.1} parent=43 // pred_check
          %p285 = pneg %p48
        $region46: #{relation_module_pallas.1} parent=43 // pred_check_branch
          %287 = sbr.rel (%p285) target = $region48
        $region47: #{relation_module_pallas.1} parent=43 // pred_region
          %288 = dma.done %s281, 256
        $region48: #{relation_module_pallas.1} parent=43 // pred_fallthru
          _
        %s289 = sand.u32 %s27, 1
        %s290 = scalar_lea.sflag [#allocation7], %s289
        %s291 = sand.u32 %s61, 1
        %s292 = smul.addr %s291, 256
        %s293 = scalar_lea.vmem [#allocation6], %s292
        // Predicated region
        $region49: #{relation_module_pallas.1} parent=43 // pred_check
          %p294 = pneg %p74
        $region50: #{relation_module_pallas.1} parent=43 // pred_check_branch
          %296 = sbr.rel (%p294) target = $region52
        $region51: #{relation_module_pallas.1} parent=43 // pred_region
          %297 = dma.done %s290, 4096
        $region52: #{relation_module_pallas.1} parent=43 // pred_fallthru
          _
        // Predicated region
        $region53: #{relation_module_pallas.1} parent=43 // pred_check
          %p298 = pneg %p95
        $region54: #{relation_module_pallas.1} parent=43 // pred_check_branch
          %300 = sbr.rel (%p298) target = $region56
        $region55: #{relation_module_pallas.1} parent=43 // pred_region
          %301 = dma.done [#allocation7], 3072
        $region56: #{relation_module_pallas.1} parent=43 // pred_fallthru
          _
        // Predicated region
        $region57: #{relation_module_pallas.1} parent=43 // pred_check
          %p302 = pneg %p158
        $region58: #{relation_module_pallas.1} parent=43 // pred_check_branch
          %304 = sbr.rel (%p302) target = $region60
        $region59: #{relation_module_pallas.1} parent=43 // pred_region
          %305 = dma.done [#allocation5], 16
        $region60: #{relation_module_pallas.1} parent=43 // pred_fallthru
          _
        %306 = sfence
        %s307 = sand.u32 %s35, 1
        %s308 = scalar_lea.sflag [#allocation3], %s307
        %s309 = sand.u32 %s35, 1
        %s310 = smul.addr %s309, 16
        %s311 = scalar_lea.vmem [#allocation2], %s310
        %p312 = pneg %p48
        %p313 = pneg %p45
        %s314 = sand.u32 %s27, 1
        %s315 = scalar_lea.sflag [#allocation7], %s314
        %s316 = sand.u32 %s61, 1
        %s317 = smul.addr %s316, 256
        %s318 = scalar_lea.vmem [#allocation6], %s317
        %p319 = pneg %p74
        %p320 = pneg %p71
        %p321 = pneg %p95
        %p322 = pneg %p92
        %p323 = pneg %p116
        %p324 = pneg %p113
        %p325 = pneg %p137
        %p326 = pneg %p134
        %p327 = pneg %p158
        %p328 = pneg %p155
        %p329 = pneg %p184
        %p330 = pneg %p181
        %s331 = sand.u32 %s171, 1
        %s332 = scalar_lea.sflag [#allocation4], %s331
        %s333 = sand.u32 %s171, 1
        %s334 = smul.addr %s333, 16
        %s335 = scalar_lea.vmem [#allocation10], %s334
        %v337 = vld [vmem:[%s284] sm:$0xff]
        %v338 = vld [vmem:[%s284 + $0x8] sm:$0xff]
        %v339 = vld [vmem:[%s293] sm:$0xff]
        %v340 = vld [vmem:[%s293 + $0x8] sm:$0xff]
        %v341 = vld [vmem:[%s293 + $0x10] sm:$0xff]
        %v342 = vld [vmem:[%s293 + $0x18] sm:$0xff]
        %v343 = vld [vmem:[%s293 + $0x20] sm:$0xff]
        %v344 = vld [vmem:[%s293 + $0x28] sm:$0xff]
        %v345 = vld [vmem:[%s293 + $0x30] sm:$0xff]
        %v346 = vld [vmem:[%s293 + $0x38] sm:$0xff]
        %v347 = vld [vmem:[%s293 + $0x40] sm:$0xff]
        %v348 = vld [vmem:[%s293 + $0x48] sm:$0xff]
        %v349 = vld [vmem:[%s293 + $0x50] sm:$0xff]
        %v350 = vld [vmem:[%s293 + $0x58] sm:$0xff]
        %v351 = vld [vmem:[%s293 + $0x60] sm:$0xff]
        %v352 = vld [vmem:[%s293 + $0x68] sm:$0xff]
        %v353 = vld [vmem:[%s293 + $0x70] sm:$0xff]
        %v354 = vld [vmem:[%s293 + $0x78] sm:$0xff]
        %v355 = vld [vmem:[%s293 + $0x80] sm:$0xff]
        %v356 = vld [vmem:[%s293 + $0x88] sm:$0xff]
        %v357 = vld [vmem:[%s293 + $0x90] sm:$0xff]
        %v358 = vld [vmem:[%s293 + $0x98] sm:$0xff]
        %v359 = vld [vmem:[%s293 + $0xa0] sm:$0xff]
        %v360 = vld [vmem:[%s293 + $0xa8] sm:$0xff]
        %v361 = vld [vmem:[%s293 + $0xb0] sm:$0xff]
        %v362 = vld [vmem:[%s293 + $0xb8] sm:$0xff]
        %v363 = vld [vmem:[%s293 + $0xc0] sm:$0xff]
        %v364 = vld [vmem:[%s293 + $0xc8] sm:$0xff]
        %v365 = vld [vmem:[%s293 + $0xd0] sm:$0xff]
        %v366 = vld [vmem:[%s293 + $0xd8] sm:$0xff]
        %v367 = vld [vmem:[%s293 + $0xe0] sm:$0xff]
        %v368 = vld [vmem:[%s293 + $0xe8] sm:$0xff]
        %v369 = vld [vmem:[%s293 + $0xf0] sm:$0xff]
        %v370 = vld [vmem:[%s293 + $0xf8] sm:$0xff]
        %v371 = vpack.c.bf16 %v338, %v337
        %v372 = vld [vmem:[#allocation8] sm:$0xff]
        %v373 = vld [vmem:[#allocation8 + $0x8] sm:$0xf]
        %v374 = vld [vmem:[#allocation8 + $0xc] sm:$0xff]
        %v375 = vld [vmem:[#allocation8 + $0x14] sm:$0xf]
        %v376 = vld [vmem:[#allocation8 + $0x18] sm:$0xff]
        %v377 = vld [vmem:[#allocation8 + $0x20] sm:$0xf]
        %v378 = vld [vmem:[#allocation8 + $0x24] sm:$0xff]
        %v379 = vld [vmem:[#allocation8 + $0x2c] sm:$0xf]
        %v380 = vld [vmem:[#allocation8 + $0x30] sm:$0xff]
        %v381 = vld [vmem:[#allocation8 + $0x38] sm:$0xf]
        %v382 = vld [vmem:[#allocation8 + $0x3c] sm:$0xff]
        %v383 = vld [vmem:[#allocation8 + $0x44] sm:$0xf]
        %v384 = vld [vmem:[#allocation8 + $0x48] sm:$0xff]
        %v385 = vld [vmem:[#allocation8 + $0x50] sm:$0xf]
        %v386 = vld [vmem:[#allocation8 + $0x54] sm:$0xff]
        %v387 = vld [vmem:[#allocation8 + $0x5c] sm:$0xf]
        %v388 = vld [vmem:[#allocation8 + $0x60] sm:$0xff]
        %v389 = vld [vmem:[#allocation8 + $0x68] sm:$0xf]
        %v390 = vld [vmem:[#allocation8 + $0x6c] sm:$0xff]
        %v391 = vld [vmem:[#allocation8 + $0x74] sm:$0xf]
        %v392 = vld [vmem:[#allocation8 + $0x78] sm:$0xff]
        %v393 = vld [vmem:[#allocation8 + $0x80] sm:$0xf]
        %v394 = vld [vmem:[#allocation8 + $0x84] sm:$0xff]
        %v395 = vld [vmem:[#allocation8 + $0x8c] sm:$0xf]
        %v396 = vld [vmem:[#allocation8 + $0x90] sm:$0xff]
        %v397 = vld [vmem:[#allocation8 + $0x98] sm:$0xf]
        %v398 = vld [vmem:[#allocation8 + $0x9c] sm:$0xff]
        %v399 = vld [vmem:[#allocation8 + $0xa4] sm:$0xf]
        %v400 = vld [vmem:[#allocation8 + $0xa8] sm:$0xff]
        %v401 = vld [vmem:[#allocation8 + $0xb0] sm:$0xf]
        %v402 = vld [vmem:[#allocation8 + $0xb4] sm:$0xff]
        %v403 = vld [vmem:[#allocation8 + $0xbc] sm:$0xf]
        %v404 = vld [vmem:[%s3] sm:$0x7]
        %v406 = vlaneseq
        %v407 = vshrl.u32 %v406, 7
        %v408 = vsub.s32 0, %v407
        %v409 = vrot.slane %v404, %v408
        %v410 = vlaneseq
        %v411 = vshrl.u32 %v410, 7
        %v412 = vsub.s32 1, %v411
        %v413 = vrot.slane %v404, %v412
        %v414 = vlaneseq
        %v415 = vshrl.u32 %v414, 7
        %v416 = vsub.s32 2, %v415
        %v417 = vrot.slane %v404, %v416
        %v453 = vunpack.c.l.b16 %v372
        %v454 = vunpack.c.h.b16 %v372
        %v455 = vunpack.c.l.b16 %v373
        %v456 = vunpack.c.l.b16 %v374
        %v457 = vunpack.c.h.b16 %v374
        %v458 = vunpack.c.l.b16 %v375
        %v459 = vunpack.c.l.b16 %v376
        %v460 = vunpack.c.h.b16 %v376
        %v461 = vunpack.c.l.b16 %v377
        %v462 = vunpack.c.l.b16 %v378
        %v463 = vunpack.c.h.b16 %v378
        %v464 = vunpack.c.l.b16 %v379
        %v465 = vunpack.c.l.b16 %v380
        %v466 = vunpack.c.h.b16 %v380
        %v467 = vunpack.c.l.b16 %v381
        %v468 = vunpack.c.l.b16 %v382
        %v469 = vunpack.c.h.b16 %v382
        %v470 = vunpack.c.l.b16 %v383
        %v471 = vunpack.c.l.b16 %v384
        %v472 = vunpack.c.h.b16 %v384
        %v473 = vunpack.c.l.b16 %v385
        %v474 = vunpack.c.l.b16 %v386
        %v475 = vunpack.c.h.b16 %v386
        %v476 = vunpack.c.l.b16 %v387
        %v477 = vunpack.c.l.b16 %v388
        %v478 = vunpack.c.h.b16 %v388
        %v479 = vunpack.c.l.b16 %v389
        %v480 = vunpack.c.l.b16 %v390
        %v481 = vunpack.c.h.b16 %v390
        %v482 = vunpack.c.l.b16 %v391
        %v483 = vunpack.c.l.b16 %v392
        %v484 = vunpack.c.h.b16 %v392
        %v485 = vunpack.c.l.b16 %v393
        %v486 = vunpack.c.l.b16 %v394
        %v487 = vunpack.c.h.b16 %v394
        %v488 = vunpack.c.l.b16 %v395
        %v489 = vunpack.c.l.b16 %v396
        %v490 = vunpack.c.h.b16 %v396
        %v491 = vunpack.c.l.b16 %v397
        %v492 = vunpack.c.l.b16 %v398
        %v493 = vunpack.c.h.b16 %v398
        %v494 = vunpack.c.l.b16 %v399
        %v495 = vunpack.c.l.b16 %v400
        %v496 = vunpack.c.h.b16 %v400
        %v497 = vunpack.c.l.b16 %v401
        %v498 = vunpack.c.l.b16 %v402
        %v499 = vunpack.c.h.b16 %v402
        %v500 = vunpack.c.l.b16 %v403
        %v501 = vpack.c.b16 %v456, %v453
        %v502 = vpack.c.b16 %v457, %v454
        %v503 = vpack.c.b16 %v458, %v455
        %v504 = vpack.c.b16 %v462, %v459
        %v505 = vpack.c.b16 %v463, %v460
        %v506 = vpack.c.b16 %v464, %v461
        %v507 = vpack.c.b16 %v468, %v465
        %v508 = vpack.c.b16 %v469, %v466
        %v509 = vpack.c.b16 %v470, %v467
        %v510 = vpack.c.b16 %v474, %v471
        %v511 = vpack.c.b16 %v475, %v472
        %v512 = vpack.c.b16 %v476, %v473
        %v513 = vpack.c.b16 %v480, %v477
        %v514 = vpack.c.b16 %v481, %v478
        %v515 = vpack.c.b16 %v482, %v479
        %v516 = vpack.c.b16 %v486, %v483
        %v517 = vpack.c.b16 %v487, %v484
        %v518 = vpack.c.b16 %v488, %v485
        %v519 = vpack.c.b16 %v492, %v489
        %v520 = vpack.c.b16 %v493, %v490
        %v521 = vpack.c.b16 %v494, %v491
        %v522 = vpack.c.b16 %v498, %v495
        %v523 = vpack.c.b16 %v499, %v496
        %v524 = vpack.c.b16 %v500, %v497
        %549 = vmatprep.subr.bf16.mxu0 %v523
        %550 = vmatpush1.bf16.msra.mxu0 %v522
        %551 = vmatprep.subr.bf16.mxu0 %v520
        %552 = vmatpush1.bf16.msra.mxu0 %v519
        %553 = vmatprep.subr.bf16.mxu0 %v517
        %554 = vmatpush1.bf16.msra.mxu0 %v516
        %555 = vmatprep.subr.bf16.mxu0 %v514
        %556 = vmatpush1.bf16.msra.mxu0 %v513
        %557 = vmatprep.subr.bf16.mxu0 %v511
        %558 = vmatpush1.bf16.msra.mxu0 %v510
        %559 = vmatprep.subr.bf16.mxu0 %v508
        %560 = vmatpush1.bf16.msra.mxu0 %v507
        %561 = vmatprep.subr.bf16.mxu0 %v505
        %562 = vmatpush1.bf16.msra.mxu0 %v504
        %563 = vmatprep.subr.bf16.mxu0 %v502
        %564 = vmatpush1.bf16.msra.mxu0 %v501
        %565 = vmatprep.subr.bf16.mxu0 0
        %566 = vmatpush2.bf16.msra.mxu0 0
        %567 = vmatprep.subr.bf16.mxu0 0
        %568 = vmatpush2.bf16.msra.mxu0 0
        %569 = vmatprep.subr.bf16.mxu0 0
        %570 = vmatpush2.bf16.msra.mxu0 0
        %571 = vmatprep.subr.bf16.mxu0 0
        %572 = vmatpush2.bf16.msra.mxu0 0
        %573 = vmatprep.subr.bf16.mxu0 0
        %574 = vmatpush2.bf16.msra.mxu0 0
        %575 = vmatprep.subr.bf16.mxu0 0
        %576 = vmatpush2.bf16.msra.mxu0 0
        %577 = vmatprep.subr.bf16.mxu0 0
        %578 = vmatpush2.bf16.msra.mxu0 0
        %579 = vmatprep.subr.bf16.mxu0 0
        %580 = vmatpush2.bf16.msra.mxu0 0
        %581 = vmatprep.mubr.bf16.mxu0 0
        %582 = vmatmul.mubr.bf16.gmra.mxu0 %v371
        %v583 = vpop.f32.mrf.mxu0
        %v584 = vadd.f32 %v409, %v583
        %v585 = vpop.f32.mrf.mxu0
        %v586 = vadd.f32 %v413, %v585
        %v587 = vpop.f32.mrf.mxu0
        %v588 = vadd.f32 %v409, %v587
        %v589 = vpop.f32.mrf.mxu0
        %v590 = vadd.f32 %v413, %v589
        %591 = vdwg.mxu0
        %592 = vmatprep.subr.bf16.mxu0 0
        %593 = vmatpush1.bf16.msra.mxu0 %v524
        %594 = vmatprep.subr.bf16.mxu0 0
        %595 = vmatpush1.bf16.msra.mxu0 %v521
        %596 = vmatprep.subr.bf16.mxu0 0
        %597 = vmatpush1.bf16.msra.mxu0 %v518
        %598 = vmatprep.subr.bf16.mxu0 0
        %599 = vmatpush1.bf16.msra.mxu0 %v515
        %600 = vmatprep.subr.bf16.mxu0 0
        %601 = vmatpush1.bf16.msra.mxu0 %v512
        %602 = vmatprep.subr.bf16.mxu0 0
        %603 = vmatpush1.bf16.msra.mxu0 %v509
        %604 = vmatprep.subr.bf16.mxu0 0
        %605 = vmatpush1.bf16.msra.mxu0 %v506
        %606 = vmatprep.subr.bf16.mxu0 0
        %607 = vmatpush1.bf16.msra.mxu0 %v503
        %608 = vmatprep.subr.bf16.mxu0 0
        %609 = vmatpush2.bf16.msra.mxu0 0
        %610 = vmatprep.subr.bf16.mxu0 0
        %611 = vmatpush2.bf16.msra.mxu0 0
        %612 = vmatprep.subr.bf16.mxu0 0
        %613 = vmatpush2.bf16.msra.mxu0 0
        %614 = vmatprep.subr.bf16.mxu0 0
        %615 = vmatpush2.bf16.msra.mxu0 0
        %616 = vmatprep.subr.bf16.mxu0 0
        %617 = vmatpush2.bf16.msra.mxu0 0
        %618 = vmatprep.subr.bf16.mxu0 0
        %619 = vmatpush2.bf16.msra.mxu0 0
        %620 = vmatprep.subr.bf16.mxu0 0
        %621 = vmatpush2.bf16.msra.mxu0 0
        %622 = vmatprep.subr.bf16.mxu0 0
        %623 = vmatpush2.bf16.msra.mxu0 0
        %624 = vmatprep.mubr.bf16.mxu0 0
        %625 = vmatmul.mubr.bf16.gmra.mxu0 %v371
        %v626 = vpop.f32.mrf.mxu0
        %v627 = vadd.f32 %v417, %v626
        %v628 = vpop.f32.mrf.mxu0
        %v629 = vpop.f32.mrf.mxu0
        %v630 = vadd.f32 %v417, %v629
        %v631 = vpop.f32.mrf.mxu0
        %632 = vdwg.mxu0
        %v633 = vld [vmem:[%s4] sm:$0x1]
        %v635 = vlaneseq
        %v636 = vshrl.u32 %v635, 7
        %v637 = vsub.s32 0, %v636
        %v638 = vrot.slane %v633, %v637
        %v640 = vmul.f32 %v339, %v638
        %v641 = vmul.f32 %v340, %v638
        %v642 = vmul.f32 %v341, %v638
        %v643 = vmul.f32 %v342, %v638
        %v644 = vmul.f32 %v343, %v638
        %v645 = vmul.f32 %v344, %v638
        %v646 = vmul.f32 %v345, %v638
        %v647 = vmul.f32 %v346, %v638
        %v648 = vmul.f32 %v347, %v638
        %v649 = vmul.f32 %v348, %v638
        %v650 = vmul.f32 %v349, %v638
        %v651 = vmul.f32 %v350, %v638
        %v652 = vmul.f32 %v351, %v638
        %v653 = vmul.f32 %v352, %v638
        %v654 = vmul.f32 %v353, %v638
        %v655 = vmul.f32 %v354, %v638
        %v656 = vmul.f32 %v355, %v638
        %v657 = vmul.f32 %v356, %v638
        %v658 = vmul.f32 %v357, %v638
        %v659 = vmul.f32 %v358, %v638
        %v660 = vmul.f32 %v359, %v638
        %v661 = vmul.f32 %v360, %v638
        %v662 = vmul.f32 %v361, %v638
        %v663 = vmul.f32 %v362, %v638
        %v664 = vmul.f32 %v363, %v638
        %v665 = vmul.f32 %v364, %v638
        %v666 = vmul.f32 %v365, %v638
        %v667 = vmul.f32 %v366, %v638
        %v668 = vmul.f32 %v367, %v638
        %v669 = vmul.f32 %v368, %v638
        %v670 = vmul.f32 %v369, %v638
        %v671 = vmul.f32 %v370, %v638
        %vm672 = vcmask 261120
        %v673 = vsel %vm672, %v640, 0.0
        %674 = vadd.xlane.f32.xlu0 %v673
        %v675 = vpop.xlane.xlu0 %674
        %v676 = vsel %vm672, %v641, 0.0
        %677 = vadd.xlane.f32.xlu0 %v676
        %v678 = vpop.xlane.xlu0 %677
        %v679 = vsel %vm672, %v642, 0.0
        %680 = vadd.xlane.f32.xlu0 %v679
        %v681 = vpop.xlane.xlu0 %680
        %v682 = vsel %vm672, %v643, 0.0
        %683 = vadd.xlane.f32.xlu0 %v682
        %v684 = vpop.xlane.xlu0 %683
        %v685 = vsel %vm672, %v644, 0.0
        %686 = vadd.xlane.f32.xlu0 %v685
        %v687 = vpop.xlane.xlu0 %686
        %v688 = vsel %vm672, %v645, 0.0
        %689 = vadd.xlane.f32.xlu0 %v688
        %v690 = vpop.xlane.xlu0 %689
        %v691 = vsel %vm672, %v646, 0.0
        %692 = vadd.xlane.f32.xlu0 %v691
        %v693 = vpop.xlane.xlu0 %692
        %v694 = vsel %vm672, %v647, 0.0
        %695 = vadd.xlane.f32.xlu0 %v694
        %v696 = vpop.xlane.xlu0 %695
        %v697 = vsel %vm672, %v648, 0.0
        %698 = vadd.xlane.f32.xlu0 %v697
        %v699 = vpop.xlane.xlu0 %698
        %v700 = vsel %vm672, %v649, 0.0
        %701 = vadd.xlane.f32.xlu0 %v700
        %v702 = vpop.xlane.xlu0 %701
        %v703 = vsel %vm672, %v650, 0.0
        %704 = vadd.xlane.f32.xlu0 %v703
        %v705 = vpop.xlane.xlu0 %704
        %v706 = vsel %vm672, %v651, 0.0
        %707 = vadd.xlane.f32.xlu0 %v706
        %v708 = vpop.xlane.xlu0 %707
        %v709 = vsel %vm672, %v652, 0.0
        %710 = vadd.xlane.f32.xlu0 %v709
        %v711 = vpop.xlane.xlu0 %710
        %v712 = vsel %vm672, %v653, 0.0
        %713 = vadd.xlane.f32.xlu0 %v712
        %v714 = vpop.xlane.xlu0 %713
        %v715 = vsel %vm672, %v654, 0.0
        %716 = vadd.xlane.f32.xlu0 %v715
        %v717 = vpop.xlane.xlu0 %716
        %v718 = vsel %vm672, %v655, 0.0
        %719 = vadd.xlane.f32.xlu0 %v718
        %v720 = vpop.xlane.xlu0 %719
        %v721 = vsel %vm672, %v656, 0.0
        %722 = vadd.xlane.f32.xlu0 %v721
        %v723 = vpop.xlane.xlu0 %722
        %v724 = vsel %vm672, %v657, 0.0
        %725 = vadd.xlane.f32.xlu0 %v724
        %v726 = vpop.xlane.xlu0 %725
        %v727 = vsel %vm672, %v658, 0.0
        %728 = vadd.xlane.f32.xlu0 %v727
        %v729 = vpop.xlane.xlu0 %728
        %v730 = vsel %vm672, %v659, 0.0
        %731 = vadd.xlane.f32.xlu0 %v730
        %v732 = vpop.xlane.xlu0 %731
        %v733 = vsel %vm672, %v660, 0.0
        %734 = vadd.xlane.f32.xlu0 %v733
        %v735 = vpop.xlane.xlu0 %734
        %v736 = vsel %vm672, %v661, 0.0
        %737 = vadd.xlane.f32.xlu0 %v736
        %v738 = vpop.xlane.xlu0 %737
        %v739 = vsel %vm672, %v662, 0.0
        %740 = vadd.xlane.f32.xlu0 %v739
        %v741 = vpop.xlane.xlu0 %740
        %v742 = vsel %vm672, %v663, 0.0
        %743 = vadd.xlane.f32.xlu0 %v742
        %v744 = vpop.xlane.xlu0 %743
        %v745 = vsel %vm672, %v664, 0.0
        %746 = vadd.xlane.f32.xlu0 %v745
        %v747 = vpop.xlane.xlu0 %746
        %v748 = vsel %vm672, %v665, 0.0
        %749 = vadd.xlane.f32.xlu0 %v748
        %v750 = vpop.xlane.xlu0 %749
        %v751 = vsel %vm672, %v666, 0.0
        %752 = vadd.xlane.f32.xlu0 %v751
        %v753 = vpop.xlane.xlu0 %752
        %v754 = vsel %vm672, %v667, 0.0
        %755 = vadd.xlane.f32.xlu0 %v754
        %v756 = vpop.xlane.xlu0 %755
        %v757 = vsel %vm672, %v668, 0.0
        %758 = vadd.xlane.f32.xlu0 %v757
        %v759 = vpop.xlane.xlu0 %758
        %v760 = vsel %vm672, %v669, 0.0
        %761 = vadd.xlane.f32.xlu0 %v760
        %v762 = vpop.xlane.xlu0 %761
        %v763 = vsel %vm672, %v670, 0.0
        %764 = vadd.xlane.f32.xlu0 %v763
        %v765 = vpop.xlane.xlu0 %764
        %v766 = vsel %vm672, %v671, 0.0
        %767 = vadd.xlane.f32.xlu0 %v766
        %v768 = vpop.xlane.xlu0 %767
        %s769 = sld [smem:[#allocation9]]
        %v770 = vstv %s769
        %v771 = vadd.f32 %v675, %v770
        %v772 = vadd.f32 %v678, %v770
        %v773 = vadd.f32 %v681, %v770
        %v774 = vadd.f32 %v684, %v770
        %v775 = vadd.f32 %v687, %v770
        %v776 = vadd.f32 %v690, %v770
        %v777 = vadd.f32 %v693, %v770
        %v778 = vadd.f32 %v696, %v770
        %v779 = vadd.f32 %v699, %v770
        %v780 = vadd.f32 %v702, %v770
        %v781 = vadd.f32 %v705, %v770
        %v782 = vadd.f32 %v708, %v770
        %v783 = vadd.f32 %v711, %v770
        %v784 = vadd.f32 %v714, %v770
        %v785 = vadd.f32 %v717, %v770
        %v786 = vadd.f32 %v720, %v770
        %v787 = vadd.f32 %v723, %v770
        %v788 = vadd.f32 %v726, %v770
        %v789 = vadd.f32 %v729, %v770
        %v790 = vadd.f32 %v732, %v770
        %v791 = vadd.f32 %v735, %v770
        %v792 = vadd.f32 %v738, %v770
        %v793 = vadd.f32 %v741, %v770
        %v794 = vadd.f32 %v744, %v770
        %v795 = vadd.f32 %v747, %v770
        %v796 = vadd.f32 %v750, %v770
        %v797 = vadd.f32 %v753, %v770
        %v798 = vadd.f32 %v756, %v770
        %v799 = vadd.f32 %v759, %v770
        %v800 = vadd.f32 %v762, %v770
        %v801 = vadd.f32 %v765, %v770
        %v802 = vadd.f32 %v768, %v770
        %v803 = vmax.f32 %v771, 1e-06
        %v804 = vmax.f32 %v772, 1e-06
        %v805 = vmax.f32 %v773, 1e-06
        %v806 = vmax.f32 %v774, 1e-06
        %v807 = vmax.f32 %v775, 1e-06
        %v808 = vmax.f32 %v776, 1e-06
        %v809 = vmax.f32 %v777, 1e-06
        %v810 = vmax.f32 %v778, 1e-06
        %v811 = vmax.f32 %v779, 1e-06
        %v812 = vmax.f32 %v780, 1e-06
        %v813 = vmax.f32 %v781, 1e-06
        %v814 = vmax.f32 %v782, 1e-06
        %v815 = vmax.f32 %v783, 1e-06
        %v816 = vmax.f32 %v784, 1e-06
        %v817 = vmax.f32 %v785, 1e-06
        %v818 = vmax.f32 %v786, 1e-06
        %v819 = vmax.f32 %v787, 1e-06
        %v820 = vmax.f32 %v788, 1e-06
        %v821 = vmax.f32 %v789, 1e-06
        %v822 = vmax.f32 %v790, 1e-06
        %v823 = vmax.f32 %v791, 1e-06
        %v824 = vmax.f32 %v792, 1e-06
        %v825 = vmax.f32 %v793, 1e-06
        %v826 = vmax.f32 %v794, 1e-06
        %v827 = vmax.f32 %v795, 1e-06
        %v828 = vmax.f32 %v796, 1e-06
        %v829 = vmax.f32 %v797, 1e-06
        %v830 = vmax.f32 %v798, 1e-06
        %v831 = vmax.f32 %v799, 1e-06
        %v832 = vmax.f32 %v800, 1e-06
        %v833 = vmax.f32 %v801, 1e-06
        %v834 = vmax.f32 %v802, 1e-06
        %v836 = vsel %vm672, %v584, 0
        %v839 = vsel %vm672, %v588, 0
        %v842 = vsel %vm672, %v586, 0
        %v845 = vsel %vm672, %v590, 0
        %847 = vmatprep.subr.mxu0 0.0
        %848 = vmatpush1.xpose.msra.mxu0 0.0
        %849 = vmatprep.subr.mxu0 0.0
        %850 = vmatpush1.xpose.msra.mxu0 0.0
        %851 = vmatprep.subr.mxu0 0.0
        %852 = vmatpush1.xpose.msra.mxu0 0.0
        %853 = vmatprep.subr.mxu0 0.0
        %854 = vmatpush1.xpose.msra.mxu0 0.0
        %855 = vmatprep.subr.mxu0 0.0
        %856 = vmatpush1.xpose.msra.mxu0 0.0
        %857 = vmatprep.subr.mxu0 0.0
        %858 = vmatpush1.xpose.msra.mxu0 0.0
        %859 = vmatprep.subr.mxu0 0.0
        %860 = vmatpush1.xpose.msra.mxu0 0.0
        %861 = vmatprep.subr.mxu0 0.0
        %862 = vmatpush1.xpose.msra.mxu0 0.0
        %863 = vmatprep.subr.mxu0 0.0
        %864 = vmatpush1.xpose.msra.mxu0 0.0
        %865 = vmatprep.subr.mxu0 0.0
        %866 = vmatpush1.xpose.msra.mxu0 0.0
        %867 = vmatprep.subr.mxu0 0.0
        %868 = vmatpush1.xpose.msra.mxu0 0.0
        %869 = vmatprep.subr.mxu0 0.0
        %870 = vmatpush1.xpose.msra.mxu0 0.0
        %871 = vmatprep.subr.mxu0 0.0
        %872 = vmatpush1.xpose.msra.mxu0 0.0
        %873 = vmatprep.subr.mxu0 0.0
        %874 = vmatpush1.xpose.msra.mxu0 0.0
        %875 = vmatprep.subr.mxu0 0.0
        %876 = vmatpush1.xpose.msra.mxu0 %v845
        %877 = vmatprep.subr.mxu0 0.0
        %878 = vmatpush1.xpose.msra.mxu0 %v842
        %879 = vmatprep.subr.mxu0 0.0
        %880 = vmatpush2.xpose.msra.mxu0 0.0
        %881 = vmatprep.subr.mxu0 0.0
        %882 = vmatpush2.xpose.msra.mxu0 0.0
        %883 = vmatprep.subr.mxu0 0.0
        %884 = vmatpush2.xpose.msra.mxu0 0.0
        %885 = vmatprep.subr.mxu0 0.0
        %886 = vmatpush2.xpose.msra.mxu0 0.0
        %887 = vmatprep.subr.mxu0 0.0
        %888 = vmatpush2.xpose.msra.mxu0 0.0
        %889 = vmatprep.subr.mxu0 0.0
        %890 = vmatpush2.xpose.msra.mxu0 0.0
        %891 = vmatprep.subr.mxu0 0.0
        %892 = vmatpush2.xpose.msra.mxu0 0.0
        %893 = vmatprep.subr.mxu0 0.0
        %894 = vmatpush2.xpose.msra.mxu0 0.0
        %895 = vmatprep.subr.mxu0 0.0
        %896 = vmatpush2.xpose.msra.mxu0 0.0
        %897 = vmatprep.subr.mxu0 0.0
        %898 = vmatpush2.xpose.msra.mxu0 0.0
        %899 = vmatprep.subr.mxu0 0.0
        %900 = vmatpush2.xpose.msra.mxu0 0.0
        %901 = vmatprep.subr.mxu0 0.0
        %902 = vmatpush2.xpose.msra.mxu0 0.0
        %903 = vmatprep.subr.mxu0 0.0
        %904 = vmatpush2.xpose.msra.mxu0 0.0
        %905 = vmatprep.subr.mxu0 0.0
        %906 = vmatpush2.xpose.msra.mxu0 0.0
        %907 = vmatprep.subr.mxu0 0.0
        %908 = vmatpush2.xpose.msra.mxu0 0.0
        %909 = vmatprep.subr.mxu0 0.0
        %910 = vmatpush2.xpose.msra.mxu0 0.0
        %911 = vmatprep.mubr.f32.mxu0 0.0
        %912 = vmatmul.mubr.f32.gmra.mxu0 %v836
        %v913 = vpop.f32.mrf.mxu0
        %v914 = vadd.f32 0.0, %v913
        %v915 = vpop.f32.mrf.mxu0
        %916 = vmatprep.mubr.f32.mxu0 0.0
        %917 = vmatmul.mubr.f32.gmra.mxu0 %v839
        %v918 = vpop.f32.mrf.mxu0
        %v919 = vadd.f32 0.0, %v918
        %v920 = vpop.f32.mrf.mxu0
        %921 = vdwg.mxu0
        %vm922 = vcmask 130048
        %v923 = vsel %vm922, %v914, -inf
        %924 = vmax.xlane.f32.xlu0 %v923
        %v925 = vpop.xlane.xlu0 %924
        %v926 = vsel %vm922, %v919, -inf
        %927 = vmax.xlane.f32.xlu0 %v926
        %v928 = vpop.xlane.xlu0 %927
        %v929 = vsub.f32 %v914, %v925
        %v930 = vsub.f32 %v919, %v928
        %v931 = vmul.f32 %v929, 1.442695
        %v932 = vpow.pop %v931
        %v933 = vmul.f32 %v930, 1.442695
        %v934 = vpow.pop %v933
        %v937 = vlaneseq
        %v938 = vshrl.u32 %v937, 7
        %v939 = vsub.s32 0, %v938
        %v940 = vrot.slane %v932, %v939
        %942 = vbcast.lane.b32.xlu0 %v940, 256
        %v943 = vpop.permute.xlu0 %942
        %s945 = sor.u32 256, 8
        %946 = vbcast.lane.b32.xlu0 %v940, %s945
        %v947 = vpop.permute.xlu0 %946
        %v948 = vlaneseq
        %v949 = vshrl.u32 %v948, 7
        %v950 = vsub.s32 1, %v949
        %v951 = vrot.slane %v932, %v950
        %953 = vbcast.lane.b32.xlu0 %v951, 256
        %v954 = vpop.permute.xlu0 %953
        %s956 = sor.u32 256, 8
        %957 = vbcast.lane.b32.xlu0 %v951, %s956
        %v958 = vpop.permute.xlu0 %957
        %v959 = vlaneseq
        %v960 = vshrl.u32 %v959, 7
        %v961 = vsub.s32 2, %v960
        %v962 = vrot.slane %v932, %v961
        %964 = vbcast.lane.b32.xlu0 %v962, 256
        %v965 = vpop.permute.xlu0 %964
        %s967 = sor.u32 256, 8
        %968 = vbcast.lane.b32.xlu0 %v962, %s967
        %v969 = vpop.permute.xlu0 %968
        %v970 = vlaneseq
        %v971 = vshrl.u32 %v970, 7
        %v972 = vsub.s32 3, %v971
        %v973 = vrot.slane %v932, %v972
        %975 = vbcast.lane.b32.xlu0 %v973, 256
        %v976 = vpop.permute.xlu0 %975
        %s978 = sor.u32 256, 8
        %979 = vbcast.lane.b32.xlu0 %v973, %s978
        %v980 = vpop.permute.xlu0 %979
        %v981 = vlaneseq
        %v982 = vshrl.u32 %v981, 7
        %v983 = vsub.s32 4, %v982
        %v984 = vrot.slane %v932, %v983
        %986 = vbcast.lane.b32.xlu0 %v984, 256
        %v987 = vpop.permute.xlu0 %986
        %s989 = sor.u32 256, 8
        %990 = vbcast.lane.b32.xlu0 %v984, %s989
        %v991 = vpop.permute.xlu0 %990
        %v992 = vlaneseq
        %v993 = vshrl.u32 %v992, 7
        %v994 = vsub.s32 5, %v993
        %v995 = vrot.slane %v932, %v994
        %997 = vbcast.lane.b32.xlu0 %v995, 256
        %v998 = vpop.permute.xlu0 %997
        %s1000 = sor.u32 256, 8
        %1001 = vbcast.lane.b32.xlu0 %v995, %s1000
        %v1002 = vpop.permute.xlu0 %1001
        %v1003 = vlaneseq
        %v1004 = vshrl.u32 %v1003, 7
        %v1005 = vsub.s32 6, %v1004
        %v1006 = vrot.slane %v932, %v1005
        %1008 = vbcast.lane.b32.xlu0 %v1006, 256
        %v1009 = vpop.permute.xlu0 %1008
        %s1011 = sor.u32 256, 8
        %1012 = vbcast.lane.b32.xlu0 %v1006, %s1011
        %v1013 = vpop.permute.xlu0 %1012
        %v1014 = vlaneseq
        %v1015 = vshrl.u32 %v1014, 7
        %v1016 = vsub.s32 7, %v1015
        %v1017 = vrot.slane %v932, %v1016
        %1019 = vbcast.lane.b32.xlu0 %v1017, 256
        %v1020 = vpop.permute.xlu0 %1019
        %s1022 = sor.u32 256, 8
        %1023 = vbcast.lane.b32.xlu0 %v1017, %s1022
        %v1024 = vpop.permute.xlu0 %1023
        %v1025 = vlaneseq
        %v1026 = vshrl.u32 %v1025, 7
        %v1027 = vsub.s32 0, %v1026
        %v1028 = vrot.slane %v934, %v1027
        %1030 = vbcast.lane.b32.xlu0 %v1028, 256
        %v1031 = vpop.permute.xlu0 %1030
        %s1033 = sor.u32 256, 8
        %1034 = vbcast.lane.b32.xlu0 %v1028, %s1033
        %v1035 = vpop.permute.xlu0 %1034
        %v1036 = vlaneseq
        %v1037 = vshrl.u32 %v1036, 7
        %v1038 = vsub.s32 1, %v1037
        %v1039 = vrot.slane %v934, %v1038
        %1041 = vbcast.lane.b32.xlu0 %v1039, 256
        %v1042 = vpop.permute.xlu0 %1041
        %s1044 = sor.u32 256, 8
        %1045 = vbcast.lane.b32.xlu0 %v1039, %s1044
        %v1046 = vpop.permute.xlu0 %1045
        %v1047 = vlaneseq
        %v1048 = vshrl.u32 %v1047, 7
        %v1049 = vsub.s32 2, %v1048
        %v1050 = vrot.slane %v934, %v1049
        %1052 = vbcast.lane.b32.xlu0 %v1050, 256
        %v1053 = vpop.permute.xlu0 %1052
        %s1055 = sor.u32 256, 8
        %1056 = vbcast.lane.b32.xlu0 %v1050, %s1055
        %v1057 = vpop.permute.xlu0 %1056
        %v1058 = vlaneseq
        %v1059 = vshrl.u32 %v1058, 7
        %v1060 = vsub.s32 3, %v1059
        %v1061 = vrot.slane %v934, %v1060
        %1063 = vbcast.lane.b32.xlu0 %v1061, 256
        %v1064 = vpop.permute.xlu0 %1063
        %s1066 = sor.u32 256, 8
        %1067 = vbcast.lane.b32.xlu0 %v1061, %s1066
        %v1068 = vpop.permute.xlu0 %1067
        %v1069 = vlaneseq
        %v1070 = vshrl.u32 %v1069, 7
        %v1071 = vsub.s32 4, %v1070
        %v1072 = vrot.slane %v934, %v1071
        %1074 = vbcast.lane.b32.xlu0 %v1072, 256
        %v1075 = vpop.permute.xlu0 %1074
        %s1077 = sor.u32 256, 8
        %1078 = vbcast.lane.b32.xlu0 %v1072, %s1077
        %v1079 = vpop.permute.xlu0 %1078
        %v1080 = vlaneseq
        %v1081 = vshrl.u32 %v1080, 7
        %v1082 = vsub.s32 5, %v1081
        %v1083 = vrot.slane %v934, %v1082
        %1085 = vbcast.lane.b32.xlu0 %v1083, 256
        %v1086 = vpop.permute.xlu0 %1085
        %s1088 = sor.u32 256, 8
        %1089 = vbcast.lane.b32.xlu0 %v1083, %s1088
        %v1090 = vpop.permute.xlu0 %1089
        %v1091 = vlaneseq
        %v1092 = vshrl.u32 %v1091, 7
        %v1093 = vsub.s32 6, %v1092
        %v1094 = vrot.slane %v934, %v1093
        %1096 = vbcast.lane.b32.xlu0 %v1094, 256
        %v1097 = vpop.permute.xlu0 %1096
        %s1099 = sor.u32 256, 8
        %1100 = vbcast.lane.b32.xlu0 %v1094, %s1099
        %v1101 = vpop.permute.xlu0 %1100
        %v1102 = vlaneseq
        %v1103 = vshrl.u32 %v1102, 7
        %v1104 = vsub.s32 7, %v1103
        %v1105 = vrot.slane %v934, %v1104
        %1107 = vbcast.lane.b32.xlu0 %v1105, 256
        %v1108 = vpop.permute.xlu0 %1107
        %s1110 = sor.u32 256, 8
        %1111 = vbcast.lane.b32.xlu0 %v1105, %s1110
        %v1112 = vpop.permute.xlu0 %1111
        %v1145 = vmul.f32 %v803, %v943
        %v1146 = vmul.f32 %v804, %v947
        %v1147 = vmul.f32 %v805, %v954
        %v1148 = vmul.f32 %v806, %v958
        %v1149 = vmul.f32 %v807, %v965
        %v1150 = vmul.f32 %v808, %v969
        %v1151 = vmul.f32 %v809, %v976
        %v1152 = vmul.f32 %v810, %v980
        %v1153 = vmul.f32 %v811, %v987
        %v1154 = vmul.f32 %v812, %v991
        %v1155 = vmul.f32 %v813, %v998
        %v1156 = vmul.f32 %v814, %v1002
        %v1157 = vmul.f32 %v815, %v1009
        %v1158 = vmul.f32 %v816, %v1013
        %v1159 = vmul.f32 %v817, %v1020
        %v1160 = vmul.f32 %v818, %v1024
        %v1161 = vmul.f32 %v819, %v1031
        %v1162 = vmul.f32 %v820, %v1035
        %v1163 = vmul.f32 %v821, %v1042
        %v1164 = vmul.f32 %v822, %v1046
        %v1165 = vmul.f32 %v823, %v1053
        %v1166 = vmul.f32 %v824, %v1057
        %v1167 = vmul.f32 %v825, %v1064
        %v1168 = vmul.f32 %v826, %v1068
        %v1169 = vmul.f32 %v827, %v1075
        %v1170 = vmul.f32 %v828, %v1079
        %v1171 = vmul.f32 %v829, %v1086
        %v1172 = vmul.f32 %v830, %v1090
        %v1173 = vmul.f32 %v831, %v1097
        %v1174 = vmul.f32 %v832, %v1101
        %v1175 = vmul.f32 %v833, %v1108
        %v1176 = vmul.f32 %v834, %v1112
        %1209 = vset.pattern.permute.xlu0 0
        %1210 = vperm.xlu0 %1209, %v1145
        %v1211 = vpop.permute.xlu0 %1210
        %1212 = vset.pattern.permute.xlu0 0
        %1213 = vperm.xlu0 %1212, %v1146
        %v1214 = vpop.permute.xlu0 %1213
        %1215 = vset.pattern.permute.xlu0 0
        %1216 = vperm.xlu0 %1215, %v1147
        %v1217 = vpop.permute.xlu0 %1216
        %1218 = vset.pattern.permute.xlu0 0
        %1219 = vperm.xlu0 %1218, %v1148
        %v1220 = vpop.permute.xlu0 %1219
        %1221 = vset.pattern.permute.xlu0 0
        %1222 = vperm.xlu0 %1221, %v1149
        %v1223 = vpop.permute.xlu0 %1222
        %1224 = vset.pattern.permute.xlu0 0
        %1225 = vperm.xlu0 %1224, %v1150
        %v1226 = vpop.permute.xlu0 %1225
        %1227 = vset.pattern.permute.xlu0 0
        %1228 = vperm.xlu0 %1227, %v1151
        %v1229 = vpop.permute.xlu0 %1228
        %1230 = vset.pattern.permute.xlu0 0
        %1231 = vperm.xlu0 %1230, %v1152
        %v1232 = vpop.permute.xlu0 %1231
        %1233 = vset.pattern.permute.xlu0 0
        %1234 = vperm.xlu0 %1233, %v1153
        %v1235 = vpop.permute.xlu0 %1234
        %1236 = vset.pattern.permute.xlu0 0
        %1237 = vperm.xlu0 %1236, %v1154
        %v1238 = vpop.permute.xlu0 %1237
        %1239 = vset.pattern.permute.xlu0 0
        %1240 = vperm.xlu0 %1239, %v1155
        %v1241 = vpop.permute.xlu0 %1240
        %1242 = vset.pattern.permute.xlu0 0
        %1243 = vperm.xlu0 %1242, %v1156
        %v1244 = vpop.permute.xlu0 %1243
        %1245 = vset.pattern.permute.xlu0 0
        %1246 = vperm.xlu0 %1245, %v1157
        %v1247 = vpop.permute.xlu0 %1246
        %1248 = vset.pattern.permute.xlu0 0
        %1249 = vperm.xlu0 %1248, %v1158
        %v1250 = vpop.permute.xlu0 %1249
        %1251 = vset.pattern.permute.xlu0 0
        %1252 = vperm.xlu0 %1251, %v1159
        %v1253 = vpop.permute.xlu0 %1252
        %1254 = vset.pattern.permute.xlu0 0
        %1255 = vperm.xlu0 %1254, %v1160
        %v1256 = vpop.permute.xlu0 %1255
        %1257 = vset.pattern.permute.xlu0 0
        %1258 = vperm.xlu0 %1257, %v1161
        %v1259 = vpop.permute.xlu0 %1258
        %1260 = vset.pattern.permute.xlu0 0
        %1261 = vperm.xlu0 %1260, %v1162
        %v1262 = vpop.permute.xlu0 %1261
        %1263 = vset.pattern.permute.xlu0 0
        %1264 = vperm.xlu0 %1263, %v1163
        %v1265 = vpop.permute.xlu0 %1264
        %1266 = vset.pattern.permute.xlu0 0
        %1267 = vperm.xlu0 %1266, %v1164
        %v1268 = vpop.permute.xlu0 %1267
        %1269 = vset.pattern.permute.xlu0 0
        %1270 = vperm.xlu0 %1269, %v1165
        %v1271 = vpop.permute.xlu0 %1270
        %1272 = vset.pattern.permute.xlu0 0
        %1273 = vperm.xlu0 %1272, %v1166
        %v1274 = vpop.permute.xlu0 %1273
        %1275 = vset.pattern.permute.xlu0 0
        %1276 = vperm.xlu0 %1275, %v1167
        %v1277 = vpop.permute.xlu0 %1276
        %1278 = vset.pattern.permute.xlu0 0
        %1279 = vperm.xlu0 %1278, %v1168
        %v1280 = vpop.permute.xlu0 %1279
        %1281 = vset.pattern.permute.xlu0 0
        %1282 = vperm.xlu0 %1281, %v1169
        %v1283 = vpop.permute.xlu0 %1282
        %1284 = vset.pattern.permute.xlu0 0
        %1285 = vperm.xlu0 %1284, %v1170
        %v1286 = vpop.permute.xlu0 %1285
        %1287 = vset.pattern.permute.xlu0 0
        %1288 = vperm.xlu0 %1287, %v1171
        %v1289 = vpop.permute.xlu0 %1288
        %1290 = vset.pattern.permute.xlu0 0
        %1291 = vperm.xlu0 %1290, %v1172
        %v1292 = vpop.permute.xlu0 %1291
        %1293 = vset.pattern.permute.xlu0 0
        %1294 = vperm.xlu0 %1293, %v1173
        %v1295 = vpop.permute.xlu0 %1294
        %1296 = vset.pattern.permute.xlu0 0
        %1297 = vperm.xlu0 %1296, %v1174
        %v1298 = vpop.permute.xlu0 %1297
        %1299 = vset.pattern.permute.xlu0 0
        %1300 = vperm.xlu0 %1299, %v1175
        %v1301 = vpop.permute.xlu0 %1300
        %1302 = vset.pattern.permute.xlu0 0
        %1303 = vperm.xlu0 %1302, %v1176
        %v1304 = vpop.permute.xlu0 %1303
        %v1305 = vlaneseq
        %v1306 = vand.u32 %v1305, 127
        %v1307 = vlaneseq
        %v1308 = vshrl.u32 %v1307, 7
        %v1309 = vsub.s32 %v1306, %v1308
        %v1310 = vrot.slane %v1211, %v1309
        %v1311 = vadd.s32 %v1306, 4294967288
        %v1312 = vlaneseq
        %v1313 = vshrl.u32 %v1312, 7
        %v1314 = vsub.s32 %v1311, %v1313
        %v1315 = vrot.slane %v1214, %v1314
        %vm1316 = vcmask 130112
        %v1317 = vsel %vm1316, %v1315, %v1310
        %v1318 = vlaneseq
        %v1319 = vshrl.u32 %v1318, 7
        %v1320 = vsub.s32 %v1306, %v1319
        %v1321 = vrot.slane %v1217, %v1320
        %v1322 = vlaneseq
        %v1323 = vshrl.u32 %v1322, 7
        %v1324 = vsub.s32 %v1311, %v1323
        %v1325 = vrot.slane %v1220, %v1324
        %v1326 = vsel %vm1316, %v1325, %v1321
        %v1327 = vlaneseq
        %v1328 = vshrl.u32 %v1327, 7
        %v1329 = vsub.s32 %v1306, %v1328
        %v1330 = vrot.slane %v1223, %v1329
        %v1331 = vlaneseq
        %v1332 = vshrl.u32 %v1331, 7
        %v1333 = vsub.s32 %v1311, %v1332
        %v1334 = vrot.slane %v1226, %v1333
        %v1335 = vsel %vm1316, %v1334, %v1330
        %v1336 = vlaneseq
        %v1337 = vshrl.u32 %v1336, 7
        %v1338 = vsub.s32 %v1306, %v1337
        %v1339 = vrot.slane %v1229, %v1338
        %v1340 = vlaneseq
        %v1341 = vshrl.u32 %v1340, 7
        %v1342 = vsub.s32 %v1311, %v1341
        %v1343 = vrot.slane %v1232, %v1342
        %v1344 = vsel %vm1316, %v1343, %v1339
        %v1345 = vlaneseq
        %v1346 = vshrl.u32 %v1345, 7
        %v1347 = vsub.s32 %v1306, %v1346
        %v1348 = vrot.slane %v1235, %v1347
        %v1349 = vlaneseq
        %v1350 = vshrl.u32 %v1349, 7
        %v1351 = vsub.s32 %v1311, %v1350
        %v1352 = vrot.slane %v1238, %v1351
        %v1353 = vsel %vm1316, %v1352, %v1348
        %v1354 = vlaneseq
        %v1355 = vshrl.u32 %v1354, 7
        %v1356 = vsub.s32 %v1306, %v1355
        %v1357 = vrot.slane %v1241, %v1356
        %v1358 = vlaneseq
        %v1359 = vshrl.u32 %v1358, 7
        %v1360 = vsub.s32 %v1311, %v1359
        %v1361 = vrot.slane %v1244, %v1360
        %v1362 = vsel %vm1316, %v1361, %v1357
        %v1363 = vlaneseq
        %v1364 = vshrl.u32 %v1363, 7
        %v1365 = vsub.s32 %v1306, %v1364
        %v1366 = vrot.slane %v1247, %v1365
        %v1367 = vlaneseq
        %v1368 = vshrl.u32 %v1367, 7
        %v1369 = vsub.s32 %v1311, %v1368
        %v1370 = vrot.slane %v1250, %v1369
        %v1371 = vsel %vm1316, %v1370, %v1366
        %v1372 = vlaneseq
        %v1373 = vshrl.u32 %v1372, 7
        %v1374 = vsub.s32 %v1306, %v1373
        %v1375 = vrot.slane %v1253, %v1374
        %v1376 = vlaneseq
        %v1377 = vshrl.u32 %v1376, 7
        %v1378 = vsub.s32 %v1311, %v1377
        %v1379 = vrot.slane %v1256, %v1378
        %v1380 = vsel %vm1316, %v1379, %v1375
        %v1381 = vlaneseq
        %v1382 = vshrl.u32 %v1381, 7
        %v1383 = vsub.s32 %v1306, %v1382
        %v1384 = vrot.slane %v1259, %v1383
        %v1385 = vlaneseq
        %v1386 = vshrl.u32 %v1385, 7
        %v1387 = vsub.s32 %v1311, %v1386
        %v1388 = vrot.slane %v1262, %v1387
        %v1389 = vsel %vm1316, %v1388, %v1384
        %v1390 = vlaneseq
        %v1391 = vshrl.u32 %v1390, 7
        %v1392 = vsub.s32 %v1306, %v1391
        %v1393 = vrot.slane %v1265, %v1392
        %v1394 = vlaneseq
        %v1395 = vshrl.u32 %v1394, 7
        %v1396 = vsub.s32 %v1311, %v1395
        %v1397 = vrot.slane %v1268, %v1396
        %v1398 = vsel %vm1316, %v1397, %v1393
        %v1399 = vlaneseq
        %v1400 = vshrl.u32 %v1399, 7
        %v1401 = vsub.s32 %v1306, %v1400
        %v1402 = vrot.slane %v1271, %v1401
        %v1403 = vlaneseq
        %v1404 = vshrl.u32 %v1403, 7
        %v1405 = vsub.s32 %v1311, %v1404
        %v1406 = vrot.slane %v1274, %v1405
        %v1407 = vsel %vm1316, %v1406, %v1402
        %v1408 = vlaneseq
        %v1409 = vshrl.u32 %v1408, 7
        %v1410 = vsub.s32 %v1306, %v1409
        %v1411 = vrot.slane %v1277, %v1410
        %v1412 = vlaneseq
        %v1413 = vshrl.u32 %v1412, 7
        %v1414 = vsub.s32 %v1311, %v1413
        %v1415 = vrot.slane %v1280, %v1414
        %v1416 = vsel %vm1316, %v1415, %v1411
        %v1417 = vlaneseq
        %v1418 = vshrl.u32 %v1417, 7
        %v1419 = vsub.s32 %v1306, %v1418
        %v1420 = vrot.slane %v1283, %v1419
        %v1421 = vlaneseq
        %v1422 = vshrl.u32 %v1421, 7
        %v1423 = vsub.s32 %v1311, %v1422
        %v1424 = vrot.slane %v1286, %v1423
        %v1425 = vsel %vm1316, %v1424, %v1420
        %v1426 = vlaneseq
        %v1427 = vshrl.u32 %v1426, 7
        %v1428 = vsub.s32 %v1306, %v1427
        %v1429 = vrot.slane %v1289, %v1428
        %v1430 = vlaneseq
        %v1431 = vshrl.u32 %v1430, 7
        %v1432 = vsub.s32 %v1311, %v1431
        %v1433 = vrot.slane %v1292, %v1432
        %v1434 = vsel %vm1316, %v1433, %v1429
        %v1435 = vlaneseq
        %v1436 = vshrl.u32 %v1435, 7
        %v1437 = vsub.s32 %v1306, %v1436
        %v1438 = vrot.slane %v1295, %v1437
        %v1439 = vlaneseq
        %v1440 = vshrl.u32 %v1439, 7
        %v1441 = vsub.s32 %v1311, %v1440
        %v1442 = vrot.slane %v1298, %v1441
        %v1443 = vsel %vm1316, %v1442, %v1438
        %v1444 = vlaneseq
        %v1445 = vshrl.u32 %v1444, 7
        %v1446 = vsub.s32 %v1306, %v1445
        %v1447 = vrot.slane %v1301, %v1446
        %v1448 = vlaneseq
        %v1449 = vshrl.u32 %v1448, 7
        %v1450 = vsub.s32 %v1311, %v1449
        %v1451 = vrot.slane %v1304, %v1450
        %v1452 = vsel %vm1316, %v1451, %v1447
        %vm1453 = vcmask 1041409
        %v1454 = vsel %vm1453, %v1326, %v1317
        %vm1455 = vcmask 1042434
        %v1456 = vsel %vm1455, %v1335, %v1454
        %vm1457 = vcmask 1043459
        %v1458 = vsel %vm1457, %v1344, %v1456
        %vm1459 = vcmask 1044484
        %v1460 = vsel %vm1459, %v1353, %v1458
        %vm1461 = vcmask 1045509
        %v1462 = vsel %vm1461, %v1362, %v1460
        %vm1463 = vcmask 1046534
        %v1464 = vsel %vm1463, %v1371, %v1462
        %vm1465 = vcmask 1047559
        %v1466 = vsel %vm1465, %v1380, %v1464
        %v1467 = vsel %vm1453, %v1398, %v1389
        %v1468 = vsel %vm1455, %v1407, %v1467
        %v1469 = vsel %vm1457, %v1416, %v1468
        %v1470 = vsel %vm1459, %v1425, %v1469
        %v1471 = vsel %vm1461, %v1434, %v1470
        %v1472 = vsel %vm1463, %v1443, %v1471
        %v1473 = vsel %vm1465, %v1452, %v1472
        %v1476 = vsel %vm922, %v1466, 0.0
        %1477 = vadd.xlane.f32.xlu0 %v1476
        %v1478 = vpop.xlane.xlu0 %1477
        %v1479 = vsel %vm922, %v1473, 0.0
        %1480 = vadd.xlane.f32.xlu0 %v1479
        %v1481 = vpop.xlane.xlu0 %1480
        %v1484 = vlaneseq
        %v1485 = vshrl.u32 %v1484, 7
        %v1486 = vsub.s32 0, %v1485
        %v1487 = vrot.slane %v1478, %v1486
        %v1488 = vlaneseq
        %v1489 = vshrl.u32 %v1488, 7
        %v1490 = vsub.s32 1, %v1489
        %v1491 = vrot.slane %v1478, %v1490
        %v1492 = vlaneseq
        %v1493 = vshrl.u32 %v1492, 7
        %v1494 = vsub.s32 2, %v1493
        %v1495 = vrot.slane %v1478, %v1494
        %v1496 = vlaneseq
        %v1497 = vshrl.u32 %v1496, 7
        %v1498 = vsub.s32 3, %v1497
        %v1499 = vrot.slane %v1478, %v1498
        %v1500 = vlaneseq
        %v1501 = vshrl.u32 %v1500, 7
        %v1502 = vsub.s32 4, %v1501
        %v1503 = vrot.slane %v1478, %v1502
        %v1504 = vlaneseq
        %v1505 = vshrl.u32 %v1504, 7
        %v1506 = vsub.s32 5, %v1505
        %v1507 = vrot.slane %v1478, %v1506
        %v1508 = vlaneseq
        %v1509 = vshrl.u32 %v1508, 7
        %v1510 = vsub.s32 6, %v1509
        %v1511 = vrot.slane %v1478, %v1510
        %v1512 = vlaneseq
        %v1513 = vshrl.u32 %v1512, 7
        %v1514 = vsub.s32 7, %v1513
        %v1515 = vrot.slane %v1478, %v1514
        %v1516 = vlaneseq
        %v1517 = vshrl.u32 %v1516, 7
        %v1518 = vsub.s32 0, %v1517
        %v1519 = vrot.slane %v1481, %v1518
        %v1520 = vlaneseq
        %v1521 = vshrl.u32 %v1520, 7
        %v1522 = vsub.s32 1, %v1521
        %v1523 = vrot.slane %v1481, %v1522
        %v1524 = vlaneseq
        %v1525 = vshrl.u32 %v1524, 7
        %v1526 = vsub.s32 2, %v1525
        %v1527 = vrot.slane %v1481, %v1526
        %v1528 = vlaneseq
        %v1529 = vshrl.u32 %v1528, 7
        %v1530 = vsub.s32 3, %v1529
        %v1531 = vrot.slane %v1481, %v1530
        %v1532 = vlaneseq
        %v1533 = vshrl.u32 %v1532, 7
        %v1534 = vsub.s32 4, %v1533
        %v1535 = vrot.slane %v1481, %v1534
        %v1536 = vlaneseq
        %v1537 = vshrl.u32 %v1536, 7
        %v1538 = vsub.s32 5, %v1537
        %v1539 = vrot.slane %v1481, %v1538
        %v1540 = vlaneseq
        %v1541 = vshrl.u32 %v1540, 7
        %v1542 = vsub.s32 6, %v1541
        %v1543 = vrot.slane %v1481, %v1542
        %v1544 = vlaneseq
        %v1545 = vshrl.u32 %v1544, 7
        %v1546 = vsub.s32 7, %v1545
        %v1547 = vrot.slane %v1481, %v1546
        %v1564 = vrcp.pop %v1487
        %v1565 = vmul.f32 %v1145, %v1564
        %v1566 = vmul.f32 %v1146, %v1564
        %v1567 = vrcp.pop %v1491
        %v1568 = vmul.f32 %v1147, %v1567
        %v1569 = vmul.f32 %v1148, %v1567
        %v1570 = vrcp.pop %v1495
        %v1571 = vmul.f32 %v1149, %v1570
        %v1572 = vmul.f32 %v1150, %v1570
        %v1573 = vrcp.pop %v1499
        %v1574 = vmul.f32 %v1151, %v1573
        %v1575 = vmul.f32 %v1152, %v1573
        %v1576 = vrcp.pop %v1503
        %v1577 = vmul.f32 %v1153, %v1576
        %v1578 = vmul.f32 %v1154, %v1576
        %v1579 = vrcp.pop %v1507
        %v1580 = vmul.f32 %v1155, %v1579
        %v1581 = vmul.f32 %v1156, %v1579
        %v1582 = vrcp.pop %v1511
        %v1583 = vmul.f32 %v1157, %v1582
        %v1584 = vmul.f32 %v1158, %v1582
        %v1585 = vrcp.pop %v1515
        %v1586 = vmul.f32 %v1159, %v1585
        %v1587 = vmul.f32 %v1160, %v1585
        %v1588 = vrcp.pop %v1519
        %v1589 = vmul.f32 %v1161, %v1588
        %v1590 = vmul.f32 %v1162, %v1588
        %v1591 = vrcp.pop %v1523
        %v1592 = vmul.f32 %v1163, %v1591
        %v1593 = vmul.f32 %v1164, %v1591
        %v1594 = vrcp.pop %v1527
        %v1595 = vmul.f32 %v1165, %v1594
        %v1596 = vmul.f32 %v1166, %v1594
        %v1597 = vrcp.pop %v1531
        %v1598 = vmul.f32 %v1167, %v1597
        %v1599 = vmul.f32 %v1168, %v1597
        %v1600 = vrcp.pop %v1535
        %v1601 = vmul.f32 %v1169, %v1600
        %v1602 = vmul.f32 %v1170, %v1600
        %v1603 = vrcp.pop %v1539
        %v1604 = vmul.f32 %v1171, %v1603
        %v1605 = vmul.f32 %v1172, %v1603
        %v1606 = vrcp.pop %v1543
        %v1607 = vmul.f32 %v1173, %v1606
        %v1608 = vmul.f32 %v1174, %v1606
        %v1609 = vrcp.pop %v1547
        %v1610 = vmul.f32 %v1175, %v1609
        %v1611 = vmul.f32 %v1176, %v1609
        %1644 = vset.pattern.permute.xlu0 0
        %1645 = vperm.xlu0 %1644, %v1565
        %v1646 = vpop.permute.xlu0 %1645
        %1647 = vset.pattern.permute.xlu0 0
        %1648 = vperm.xlu0 %1647, %v1566
        %v1649 = vpop.permute.xlu0 %1648
        %1650 = vset.pattern.permute.xlu0 0
        %1651 = vperm.xlu0 %1650, %v1568
        %v1652 = vpop.permute.xlu0 %1651
        %1653 = vset.pattern.permute.xlu0 0
        %1654 = vperm.xlu0 %1653, %v1569
        %v1655 = vpop.permute.xlu0 %1654
        %1656 = vset.pattern.permute.xlu0 0
        %1657 = vperm.xlu0 %1656, %v1571
        %v1658 = vpop.permute.xlu0 %1657
        %1659 = vset.pattern.permute.xlu0 0
        %1660 = vperm.xlu0 %1659, %v1572
        %v1661 = vpop.permute.xlu0 %1660
        %1662 = vset.pattern.permute.xlu0 0
        %1663 = vperm.xlu0 %1662, %v1574
        %v1664 = vpop.permute.xlu0 %1663
        %1665 = vset.pattern.permute.xlu0 0
        %1666 = vperm.xlu0 %1665, %v1575
        %v1667 = vpop.permute.xlu0 %1666
        %1668 = vset.pattern.permute.xlu0 0
        %1669 = vperm.xlu0 %1668, %v1577
        %v1670 = vpop.permute.xlu0 %1669
        %1671 = vset.pattern.permute.xlu0 0
        %1672 = vperm.xlu0 %1671, %v1578
        %v1673 = vpop.permute.xlu0 %1672
        %1674 = vset.pattern.permute.xlu0 0
        %1675 = vperm.xlu0 %1674, %v1580
        %v1676 = vpop.permute.xlu0 %1675
        %1677 = vset.pattern.permute.xlu0 0
        %1678 = vperm.xlu0 %1677, %v1581
        %v1679 = vpop.permute.xlu0 %1678
        %1680 = vset.pattern.permute.xlu0 0
        %1681 = vperm.xlu0 %1680, %v1583
        %v1682 = vpop.permute.xlu0 %1681
        %1683 = vset.pattern.permute.xlu0 0
        %1684 = vperm.xlu0 %1683, %v1584
        %v1685 = vpop.permute.xlu0 %1684
        %1686 = vset.pattern.permute.xlu0 0
        %1687 = vperm.xlu0 %1686, %v1586
        %v1688 = vpop.permute.xlu0 %1687
        %1689 = vset.pattern.permute.xlu0 0
        %1690 = vperm.xlu0 %1689, %v1587
        %v1691 = vpop.permute.xlu0 %1690
        %1692 = vset.pattern.permute.xlu0 0
        %1693 = vperm.xlu0 %1692, %v1589
        %v1694 = vpop.permute.xlu0 %1693
        %1695 = vset.pattern.permute.xlu0 0
        %1696 = vperm.xlu0 %1695, %v1590
        %v1697 = vpop.permute.xlu0 %1696
        %1698 = vset.pattern.permute.xlu0 0
        %1699 = vperm.xlu0 %1698, %v1592
        %v1700 = vpop.permute.xlu0 %1699
        %1701 = vset.pattern.permute.xlu0 0
        %1702 = vperm.xlu0 %1701, %v1593
        %v1703 = vpop.permute.xlu0 %1702
        %1704 = vset.pattern.permute.xlu0 0
        %1705 = vperm.xlu0 %1704, %v1595
        %v1706 = vpop.permute.xlu0 %1705
        %1707 = vset.pattern.permute.xlu0 0
        %1708 = vperm.xlu0 %1707, %v1596
        %v1709 = vpop.permute.xlu0 %1708
        %1710 = vset.pattern.permute.xlu0 0
        %1711 = vperm.xlu0 %1710, %v1598
        %v1712 = vpop.permute.xlu0 %1711
        %1713 = vset.pattern.permute.xlu0 0
        %1714 = vperm.xlu0 %1713, %v1599
        %v1715 = vpop.permute.xlu0 %1714
        %1716 = vset.pattern.permute.xlu0 0
        %1717 = vperm.xlu0 %1716, %v1601
        %v1718 = vpop.permute.xlu0 %1717
        %1719 = vset.pattern.permute.xlu0 0
        %1720 = vperm.xlu0 %1719, %v1602
        %v1721 = vpop.permute.xlu0 %1720
        %1722 = vset.pattern.permute.xlu0 0
        %1723 = vperm.xlu0 %1722, %v1604
        %v1724 = vpop.permute.xlu0 %1723
        %1725 = vset.pattern.permute.xlu0 0
        %1726 = vperm.xlu0 %1725, %v1605
        %v1727 = vpop.permute.xlu0 %1726
        %1728 = vset.pattern.permute.xlu0 0
        %1729 = vperm.xlu0 %1728, %v1607
        %v1730 = vpop.permute.xlu0 %1729
        %1731 = vset.pattern.permute.xlu0 0
        %1732 = vperm.xlu0 %1731, %v1608
        %v1733 = vpop.permute.xlu0 %1732
        %1734 = vset.pattern.permute.xlu0 0
        %1735 = vperm.xlu0 %1734, %v1610
        %v1736 = vpop.permute.xlu0 %1735
        %1737 = vset.pattern.permute.xlu0 0
        %1738 = vperm.xlu0 %1737, %v1611
        %v1739 = vpop.permute.xlu0 %1738
        %v1740 = vlaneseq
        %v1741 = vshrl.u32 %v1740, 7
        %v1742 = vsub.s32 %v1306, %v1741
        %v1743 = vrot.slane %v1646, %v1742
        %v1744 = vlaneseq
        %v1745 = vshrl.u32 %v1744, 7
        %v1746 = vsub.s32 %v1311, %v1745
        %v1747 = vrot.slane %v1649, %v1746
        %v1748 = vsel %vm1316, %v1747, %v1743
        %v1749 = vlaneseq
        %v1750 = vshrl.u32 %v1749, 7
        %v1751 = vsub.s32 %v1306, %v1750
        %v1752 = vrot.slane %v1652, %v1751
        %v1753 = vlaneseq
        %v1754 = vshrl.u32 %v1753, 7
        %v1755 = vsub.s32 %v1311, %v1754
        %v1756 = vrot.slane %v1655, %v1755
        %v1757 = vsel %vm1316, %v1756, %v1752
        %v1758 = vlaneseq
        %v1759 = vshrl.u32 %v1758, 7
        %v1760 = vsub.s32 %v1306, %v1759
        %v1761 = vrot.slane %v1658, %v1760
        %v1762 = vlaneseq
        %v1763 = vshrl.u32 %v1762, 7
        %v1764 = vsub.s32 %v1311, %v1763
        %v1765 = vrot.slane %v1661, %v1764
        %v1766 = vsel %vm1316, %v1765, %v1761
        %v1767 = vlaneseq
        %v1768 = vshrl.u32 %v1767, 7
        %v1769 = vsub.s32 %v1306, %v1768
        %v1770 = vrot.slane %v1664, %v1769
        %v1771 = vlaneseq
        %v1772 = vshrl.u32 %v1771, 7
        %v1773 = vsub.s32 %v1311, %v1772
        %v1774 = vrot.slane %v1667, %v1773
        %v1775 = vsel %vm1316, %v1774, %v1770
        %v1776 = vlaneseq
        %v1777 = vshrl.u32 %v1776, 7
        %v1778 = vsub.s32 %v1306, %v1777
        %v1779 = vrot.slane %v1670, %v1778
        %v1780 = vlaneseq
        %v1781 = vshrl.u32 %v1780, 7
        %v1782 = vsub.s32 %v1311, %v1781
        %v1783 = vrot.slane %v1673, %v1782
        %v1784 = vsel %vm1316, %v1783, %v1779
        %v1785 = vlaneseq
        %v1786 = vshrl.u32 %v1785, 7
        %v1787 = vsub.s32 %v1306, %v1786
        %v1788 = vrot.slane %v1676, %v1787
        %v1789 = vlaneseq
        %v1790 = vshrl.u32 %v1789, 7
        %v1791 = vsub.s32 %v1311, %v1790
        %v1792 = vrot.slane %v1679, %v1791
        %v1793 = vsel %vm1316, %v1792, %v1788
        %v1794 = vlaneseq
        %v1795 = vshrl.u32 %v1794, 7
        %v1796 = vsub.s32 %v1306, %v1795
        %v1797 = vrot.slane %v1682, %v1796
        %v1798 = vlaneseq
        %v1799 = vshrl.u32 %v1798, 7
        %v1800 = vsub.s32 %v1311, %v1799
        %v1801 = vrot.slane %v1685, %v1800
        %v1802 = vsel %vm1316, %v1801, %v1797
        %v1803 = vlaneseq
        %v1804 = vshrl.u32 %v1803, 7
        %v1805 = vsub.s32 %v1306, %v1804
        %v1806 = vrot.slane %v1688, %v1805
        %v1807 = vlaneseq
        %v1808 = vshrl.u32 %v1807, 7
        %v1809 = vsub.s32 %v1311, %v1808
        %v1810 = vrot.slane %v1691, %v1809
        %v1811 = vsel %vm1316, %v1810, %v1806
        %v1812 = vlaneseq
        %v1813 = vshrl.u32 %v1812, 7
        %v1814 = vsub.s32 %v1306, %v1813
        %v1815 = vrot.slane %v1694, %v1814
        %v1816 = vlaneseq
        %v1817 = vshrl.u32 %v1816, 7
        %v1818 = vsub.s32 %v1311, %v1817
        %v1819 = vrot.slane %v1697, %v1818
        %v1820 = vsel %vm1316, %v1819, %v1815
        %v1821 = vlaneseq
        %v1822 = vshrl.u32 %v1821, 7
        %v1823 = vsub.s32 %v1306, %v1822
        %v1824 = vrot.slane %v1700, %v1823
        %v1825 = vlaneseq
        %v1826 = vshrl.u32 %v1825, 7
        %v1827 = vsub.s32 %v1311, %v1826
        %v1828 = vrot.slane %v1703, %v1827
        %v1829 = vsel %vm1316, %v1828, %v1824
        %v1830 = vlaneseq
        %v1831 = vshrl.u32 %v1830, 7
        %v1832 = vsub.s32 %v1306, %v1831
        %v1833 = vrot.slane %v1706, %v1832
        %v1834 = vlaneseq
        %v1835 = vshrl.u32 %v1834, 7
        %v1836 = vsub.s32 %v1311, %v1835
        %v1837 = vrot.slane %v1709, %v1836
        %v1838 = vsel %vm1316, %v1837, %v1833
        %v1839 = vlaneseq
        %v1840 = vshrl.u32 %v1839, 7
        %v1841 = vsub.s32 %v1306, %v1840
        %v1842 = vrot.slane %v1712, %v1841
        %v1843 = vlaneseq
        %v1844 = vshrl.u32 %v1843, 7
        %v1845 = vsub.s32 %v1311, %v1844
        %v1846 = vrot.slane %v1715, %v1845
        %v1847 = vsel %vm1316, %v1846, %v1842
        %v1848 = vlaneseq
        %v1849 = vshrl.u32 %v1848, 7
        %v1850 = vsub.s32 %v1306, %v1849
        %v1851 = vrot.slane %v1718, %v1850
        %v1852 = vlaneseq
        %v1853 = vshrl.u32 %v1852, 7
        %v1854 = vsub.s32 %v1311, %v1853
        %v1855 = vrot.slane %v1721, %v1854
        %v1856 = vsel %vm1316, %v1855, %v1851
        %v1857 = vlaneseq
        %v1858 = vshrl.u32 %v1857, 7
        %v1859 = vsub.s32 %v1306, %v1858
        %v1860 = vrot.slane %v1724, %v1859
        %v1861 = vlaneseq
        %v1862 = vshrl.u32 %v1861, 7
        %v1863 = vsub.s32 %v1311, %v1862
        %v1864 = vrot.slane %v1727, %v1863
        %v1865 = vsel %vm1316, %v1864, %v1860
        %v1866 = vlaneseq
        %v1867 = vshrl.u32 %v1866, 7
        %v1868 = vsub.s32 %v1306, %v1867
        %v1869 = vrot.slane %v1730, %v1868
        %v1870 = vlaneseq
        %v1871 = vshrl.u32 %v1870, 7
        %v1872 = vsub.s32 %v1311, %v1871
        %v1873 = vrot.slane %v1733, %v1872
        %v1874 = vsel %vm1316, %v1873, %v1869
        %v1875 = vlaneseq
        %v1876 = vshrl.u32 %v1875, 7
        %v1877 = vsub.s32 %v1306, %v1876
        %v1878 = vrot.slane %v1736, %v1877
        %v1879 = vlaneseq
        %v1880 = vshrl.u32 %v1879, 7
        %v1881 = vsub.s32 %v1311, %v1880
        %v1882 = vrot.slane %v1739, %v1881
        %v1883 = vsel %vm1316, %v1882, %v1878
        %v1884 = vsel %vm1453, %v1757, %v1748
        %v1885 = vsel %vm1455, %v1766, %v1884
        %v1886 = vsel %vm1457, %v1775, %v1885
        %v1887 = vsel %vm1459, %v1784, %v1886
        %v1888 = vsel %vm1461, %v1793, %v1887
        %v1889 = vsel %vm1463, %v1802, %v1888
        %v1890 = vsel %vm1465, %v1811, %v1889
        %v1891 = vsel %vm1453, %v1829, %v1820
        %v1892 = vsel %vm1455, %v1838, %v1891
        %v1893 = vsel %vm1457, %v1847, %v1892
        %v1894 = vsel %vm1459, %v1856, %v1893
        %v1895 = vsel %vm1461, %v1865, %v1894
        %v1896 = vsel %vm1463, %v1874, %v1895
        %v1897 = vsel %vm1465, %v1883, %v1896
        %v1898 = vsel %vm922, %v1890, 0
        %v1900 = vsel %vm922, %v1897, 0
        %1902 = vmatprep.subr.mxu0 0.0
        %1903 = vmatpush1.msra.mxu0 0.0
        %1904 = vmatprep.subr.mxu0 0.0
        %1905 = vmatpush1.msra.mxu0 0.0
        %1906 = vmatprep.subr.mxu0 0.0
        %1907 = vmatpush1.msra.mxu0 0.0
        %1908 = vmatprep.subr.mxu0 0.0
        %1909 = vmatpush1.msra.mxu0 0.0
        %1910 = vmatprep.subr.mxu0 0.0
        %1911 = vmatpush1.msra.mxu0 0.0
        %1912 = vmatprep.subr.mxu0 0.0
        %1913 = vmatpush1.msra.mxu0 0.0
        %1914 = vmatprep.subr.mxu0 0.0
        %1915 = vmatpush1.msra.mxu0 0.0
        %1916 = vmatprep.subr.mxu0 0.0
        %1917 = vmatpush1.msra.mxu0 0.0
        %1918 = vmatprep.subr.mxu0 0.0
        %1919 = vmatpush1.msra.mxu0 0.0
        %1920 = vmatprep.subr.mxu0 0.0
        %1921 = vmatpush1.msra.mxu0 0.0
        %1922 = vmatprep.subr.mxu0 0.0
        %1923 = vmatpush1.msra.mxu0 0.0
        %1924 = vmatprep.subr.mxu0 0.0
        %1925 = vmatpush1.msra.mxu0 0.0
        %1926 = vmatprep.subr.mxu0 0.0
        %1927 = vmatpush1.msra.mxu0 0.0
        %1928 = vmatprep.subr.mxu0 0.0
        %1929 = vmatpush1.msra.mxu0 0.0
        %1930 = vmatprep.subr.mxu0 0.0
        %1931 = vmatpush1.msra.mxu0 %v630
        %1932 = vmatprep.subr.mxu0 0.0
        %1933 = vmatpush1.msra.mxu0 %v627
        %1934 = vmatprep.subr.mxu0 0.0
        %1935 = vmatpush2.msra.mxu0 0.0
        %1936 = vmatprep.subr.mxu0 0.0
        %1937 = vmatpush2.msra.mxu0 0.0
        %1938 = vmatprep.subr.mxu0 0.0
        %1939 = vmatpush2.msra.mxu0 0.0
        %1940 = vmatprep.subr.mxu0 0.0
        %1941 = vmatpush2.msra.mxu0 0.0
        %1942 = vmatprep.subr.mxu0 0.0
        %1943 = vmatpush2.msra.mxu0 0.0
        %1944 = vmatprep.subr.mxu0 0.0
        %1945 = vmatpush2.msra.mxu0 0.0
        %1946 = vmatprep.subr.mxu0 0.0
        %1947 = vmatpush2.msra.mxu0 0.0
        %1948 = vmatprep.subr.mxu0 0.0
        %1949 = vmatpush2.msra.mxu0 0.0
        %1950 = vmatprep.subr.mxu0 0.0
        %1951 = vmatpush2.msra.mxu0 0.0
        %1952 = vmatprep.subr.mxu0 0.0
        %1953 = vmatpush2.msra.mxu0 0.0
        %1954 = vmatprep.subr.mxu0 0.0
        %1955 = vmatpush2.msra.mxu0 0.0
        %1956 = vmatprep.subr.mxu0 0.0
        %1957 = vmatpush2.msra.mxu0 0.0
        %1958 = vmatprep.subr.mxu0 0.0
        %1959 = vmatpush2.msra.mxu0 0.0
        %1960 = vmatprep.subr.mxu0 0.0
        %1961 = vmatpush2.msra.mxu0 0.0
        %1962 = vmatprep.subr.mxu0 0.0
        %1963 = vmatpush2.msra.mxu0 0.0
        %1964 = vmatprep.subr.mxu0 0.0
        %1965 = vmatpush2.msra.mxu0 0.0
        %1966 = vmatprep.mubr.f32.mxu0 0.0
        %1967 = vmatmul.mubr.f32.gmra.mxu0 %v1898
        %v1968 = vpop.f32.mrf.mxu0
        %v1969 = vadd.f32 0.0, %v1968
        %v1970 = vpop.f32.mrf.mxu0
        %1971 = vmatprep.mubr.f32.mxu0 0.0
        %1972 = vmatmul.mubr.f32.gmra.mxu0 %v1900
        %v1973 = vpop.f32.mrf.mxu0
        %v1974 = vadd.f32 0.0, %v1973
        %v1975 = vpop.f32.mrf.mxu0
        %1976 = vdwg.mxu0
        %s1977 = scalar_lea.vmem %s4, 1
        %v1978 = vld [vmem:[%s1977] sm:$0x1]
        %v1980 = vlaneseq
        %v1981 = vshrl.u32 %v1980, 7
        %v1982 = vsub.s32 0, %v1981
        %v1983 = vrot.slane %v1978, %v1982
        %v1985 = vmul.f32 %v339, %v1983
        %v1986 = vmul.f32 %v340, %v1983
        %v1987 = vmul.f32 %v341, %v1983
        %v1988 = vmul.f32 %v342, %v1983
        %v1989 = vmul.f32 %v343, %v1983
        %v1990 = vmul.f32 %v344, %v1983
        %v1991 = vmul.f32 %v345, %v1983
        %v1992 = vmul.f32 %v346, %v1983
        %v1993 = vmul.f32 %v347, %v1983
        %v1994 = vmul.f32 %v348, %v1983
        %v1995 = vmul.f32 %v349, %v1983
        %v1996 = vmul.f32 %v350, %v1983
        %v1997 = vmul.f32 %v351, %v1983
        %v1998 = vmul.f32 %v352, %v1983
        %v1999 = vmul.f32 %v353, %v1983
        %v2000 = vmul.f32 %v354, %v1983
        %v2001 = vmul.f32 %v355, %v1983
        %v2002 = vmul.f32 %v356, %v1983
        %v2003 = vmul.f32 %v357, %v1983
        %v2004 = vmul.f32 %v358, %v1983
        %v2005 = vmul.f32 %v359, %v1983
        %v2006 = vmul.f32 %v360, %v1983
        %v2007 = vmul.f32 %v361, %v1983
        %v2008 = vmul.f32 %v362, %v1983
        %v2009 = vmul.f32 %v363, %v1983
        %v2010 = vmul.f32 %v364, %v1983
        %v2011 = vmul.f32 %v365, %v1983
        %v2012 = vmul.f32 %v366, %v1983
        %v2013 = vmul.f32 %v367, %v1983
        %v2014 = vmul.f32 %v368, %v1983
        %v2015 = vmul.f32 %v369, %v1983
        %v2016 = vmul.f32 %v370, %v1983
        %v2017 = vsel %vm672, %v1985, 0.0
        %2018 = vadd.xlane.f32.xlu0 %v2017
        %v2019 = vpop.xlane.xlu0 %2018
        %v2020 = vsel %vm672, %v1986, 0.0
        %2021 = vadd.xlane.f32.xlu0 %v2020
        %v2022 = vpop.xlane.xlu0 %2021
        %v2023 = vsel %vm672, %v1987, 0.0
        %2024 = vadd.xlane.f32.xlu0 %v2023
        %v2025 = vpop.xlane.xlu0 %2024
        %v2026 = vsel %vm672, %v1988, 0.0
        %2027 = vadd.xlane.f32.xlu0 %v2026
        %v2028 = vpop.xlane.xlu0 %2027
        %v2029 = vsel %vm672, %v1989, 0.0
        %2030 = vadd.xlane.f32.xlu0 %v2029
        %v2031 = vpop.xlane.xlu0 %2030
        %v2032 = vsel %vm672, %v1990, 0.0
        %2033 = vadd.xlane.f32.xlu0 %v2032
        %v2034 = vpop.xlane.xlu0 %2033
        %v2035 = vsel %vm672, %v1991, 0.0
        %2036 = vadd.xlane.f32.xlu0 %v2035
        %v2037 = vpop.xlane.xlu0 %2036
        %v2038 = vsel %vm672, %v1992, 0.0
        %2039 = vadd.xlane.f32.xlu0 %v2038
        %v2040 = vpop.xlane.xlu0 %2039
        %v2041 = vsel %vm672, %v1993, 0.0
        %2042 = vadd.xlane.f32.xlu0 %v2041
        %v2043 = vpop.xlane.xlu0 %2042
        %v2044 = vsel %vm672, %v1994, 0.0
        %2045 = vadd.xlane.f32.xlu0 %v2044
        %v2046 = vpop.xlane.xlu0 %2045
        %v2047 = vsel %vm672, %v1995, 0.0
        %2048 = vadd.xlane.f32.xlu0 %v2047
        %v2049 = vpop.xlane.xlu0 %2048
        %v2050 = vsel %vm672, %v1996, 0.0
        %2051 = vadd.xlane.f32.xlu0 %v2050
        %v2052 = vpop.xlane.xlu0 %2051
        %v2053 = vsel %vm672, %v1997, 0.0
        %2054 = vadd.xlane.f32.xlu0 %v2053
        %v2055 = vpop.xlane.xlu0 %2054
        %v2056 = vsel %vm672, %v1998, 0.0
        %2057 = vadd.xlane.f32.xlu0 %v2056
        %v2058 = vpop.xlane.xlu0 %2057
        %v2059 = vsel %vm672, %v1999, 0.0
        %2060 = vadd.xlane.f32.xlu0 %v2059
        %v2061 = vpop.xlane.xlu0 %2060
        %v2062 = vsel %vm672, %v2000, 0.0
        %2063 = vadd.xlane.f32.xlu0 %v2062
        %v2064 = vpop.xlane.xlu0 %2063
        %v2065 = vsel %vm672, %v2001, 0.0
        %2066 = vadd.xlane.f32.xlu0 %v2065
        %v2067 = vpop.xlane.xlu0 %2066
        %v2068 = vsel %vm672, %v2002, 0.0
        %2069 = vadd.xlane.f32.xlu0 %v2068
        %v2070 = vpop.xlane.xlu0 %2069
        %v2071 = vsel %vm672, %v2003, 0.0
        %2072 = vadd.xlane.f32.xlu0 %v2071
        %v2073 = vpop.xlane.xlu0 %2072
        %v2074 = vsel %vm672, %v2004, 0.0
        %2075 = vadd.xlane.f32.xlu0 %v2074
        %v2076 = vpop.xlane.xlu0 %2075
        %v2077 = vsel %vm672, %v2005, 0.0
        %2078 = vadd.xlane.f32.xlu0 %v2077
        %v2079 = vpop.xlane.xlu0 %2078
        %v2080 = vsel %vm672, %v2006, 0.0
        %2081 = vadd.xlane.f32.xlu0 %v2080
        %v2082 = vpop.xlane.xlu0 %2081
        %v2083 = vsel %vm672, %v2007, 0.0
        %2084 = vadd.xlane.f32.xlu0 %v2083
        %v2085 = vpop.xlane.xlu0 %2084
        %v2086 = vsel %vm672, %v2008, 0.0
        %2087 = vadd.xlane.f32.xlu0 %v2086
        %v2088 = vpop.xlane.xlu0 %2087
        %v2089 = vsel %vm672, %v2009, 0.0
        %2090 = vadd.xlane.f32.xlu0 %v2089
        %v2091 = vpop.xlane.xlu0 %2090
        %v2092 = vsel %vm672, %v2010, 0.0
        %2093 = vadd.xlane.f32.xlu0 %v2092
        %v2094 = vpop.xlane.xlu0 %2093
        %v2095 = vsel %vm672, %v2011, 0.0
        %2096 = vadd.xlane.f32.xlu0 %v2095
        %v2097 = vpop.xlane.xlu0 %2096
        %v2098 = vsel %vm672, %v2012, 0.0
        %2099 = vadd.xlane.f32.xlu0 %v2098
        %v2100 = vpop.xlane.xlu0 %2099
        %v2101 = vsel %vm672, %v2013, 0.0
        %2102 = vadd.xlane.f32.xlu0 %v2101
        %v2103 = vpop.xlane.xlu0 %2102
        %v2104 = vsel %vm672, %v2014, 0.0
        %2105 = vadd.xlane.f32.xlu0 %v2104
        %v2106 = vpop.xlane.xlu0 %2105
        %v2107 = vsel %vm672, %v2015, 0.0
        %2108 = vadd.xlane.f32.xlu0 %v2107
        %v2109 = vpop.xlane.xlu0 %2108
        %v2110 = vsel %vm672, %v2016, 0.0
        %2111 = vadd.xlane.f32.xlu0 %v2110
        %v2112 = vpop.xlane.xlu0 %2111
        %s2113 = sld [smem:[#allocation9 + $0x1]]
        %v2114 = vstv %s2113
        %v2115 = vadd.f32 %v2019, %v2114
        %v2116 = vadd.f32 %v2022, %v2114
        %v2117 = vadd.f32 %v2025, %v2114
        %v2118 = vadd.f32 %v2028, %v2114
        %v2119 = vadd.f32 %v2031, %v2114
        %v2120 = vadd.f32 %v2034, %v2114
        %v2121 = vadd.f32 %v2037, %v2114
        %v2122 = vadd.f32 %v2040, %v2114
        %v2123 = vadd.f32 %v2043, %v2114
        %v2124 = vadd.f32 %v2046, %v2114
        %v2125 = vadd.f32 %v2049, %v2114
        %v2126 = vadd.f32 %v2052, %v2114
        %v2127 = vadd.f32 %v2055, %v2114
        %v2128 = vadd.f32 %v2058, %v2114
        %v2129 = vadd.f32 %v2061, %v2114
        %v2130 = vadd.f32 %v2064, %v2114
        %v2131 = vadd.f32 %v2067, %v2114
        %v2132 = vadd.f32 %v2070, %v2114
        %v2133 = vadd.f32 %v2073, %v2114
        %v2134 = vadd.f32 %v2076, %v2114
        %v2135 = vadd.f32 %v2079, %v2114
        %v2136 = vadd.f32 %v2082, %v2114
        %v2137 = vadd.f32 %v2085, %v2114
        %v2138 = vadd.f32 %v2088, %v2114
        %v2139 = vadd.f32 %v2091, %v2114
        %v2140 = vadd.f32 %v2094, %v2114
        %v2141 = vadd.f32 %v2097, %v2114
        %v2142 = vadd.f32 %v2100, %v2114
        %v2143 = vadd.f32 %v2103, %v2114
        %v2144 = vadd.f32 %v2106, %v2114
        %v2145 = vadd.f32 %v2109, %v2114
        %v2146 = vadd.f32 %v2112, %v2114
        %v2147 = vmax.f32 %v2115, 1e-06
        %v2148 = vmax.f32 %v2116, 1e-06
        %v2149 = vmax.f32 %v2117, 1e-06
        %v2150 = vmax.f32 %v2118, 1e-06
        %v2151 = vmax.f32 %v2119, 1e-06
        %v2152 = vmax.f32 %v2120, 1e-06
        %v2153 = vmax.f32 %v2121, 1e-06
        %v2154 = vmax.f32 %v2122, 1e-06
        %v2155 = vmax.f32 %v2123, 1e-06
        %v2156 = vmax.f32 %v2124, 1e-06
        %v2157 = vmax.f32 %v2125, 1e-06
        %v2158 = vmax.f32 %v2126, 1e-06
        %v2159 = vmax.f32 %v2127, 1e-06
        %v2160 = vmax.f32 %v2128, 1e-06
        %v2161 = vmax.f32 %v2129, 1e-06
        %v2162 = vmax.f32 %v2130, 1e-06
        %v2163 = vmax.f32 %v2131, 1e-06
        %v2164 = vmax.f32 %v2132, 1e-06
        %v2165 = vmax.f32 %v2133, 1e-06
        %v2166 = vmax.f32 %v2134, 1e-06
        %v2167 = vmax.f32 %v2135, 1e-06
        %v2168 = vmax.f32 %v2136, 1e-06
        %v2169 = vmax.f32 %v2137, 1e-06
        %v2170 = vmax.f32 %v2138, 1e-06
        %v2171 = vmax.f32 %v2139, 1e-06
        %v2172 = vmax.f32 %v2140, 1e-06
        %v2173 = vmax.f32 %v2141, 1e-06
        %v2174 = vmax.f32 %v2142, 1e-06
        %v2175 = vmax.f32 %v2143, 1e-06
        %v2176 = vmax.f32 %v2144, 1e-06
        %v2177 = vmax.f32 %v2145, 1e-06
        %v2178 = vmax.f32 %v2146, 1e-06
        %2179 = vrot.lane.b32.xlu0 %v584, 96
        %v2180 = vpop.permute.xlu0 %2179
        %2181 = vrot.lane.b32.xlu0 %v588, 96
        %v2182 = vpop.permute.xlu0 %2181
        %2183 = vrot.lane.b32.xlu0 %v586, 96
        %v2184 = vpop.permute.xlu0 %2183
        %2185 = vrot.lane.b32.xlu0 %v590, 96
        %v2186 = vpop.permute.xlu0 %2185
        %v2187 = vsel %vm672, %v2180, 0
        %v2189 = vsel %vm672, %v2182, 0
        %v2191 = vsel %vm672, %v2184, 0
        %v2193 = vsel %vm672, %v2186, 0
        %2195 = vmatprep.subr.mxu0 0.0
        %2196 = vmatpush1.xpose.msra.mxu0 0.0
        %2197 = vmatprep.subr.mxu0 0.0
        %2198 = vmatpush1.xpose.msra.mxu0 0.0
        %2199 = vmatprep.subr.mxu0 0.0
        %2200 = vmatpush1.xpose.msra.mxu0 0.0
        %2201 = vmatprep.subr.mxu0 0.0
        %2202 = vmatpush1.xpose.msra.mxu0 0.0
        %2203 = vmatprep.subr.mxu0 0.0
        %2204 = vmatpush1.xpose.msra.mxu0 0.0
        %2205 = vmatprep.subr.mxu0 0.0
        %2206 = vmatpush1.xpose.msra.mxu0 0.0
        %2207 = vmatprep.subr.mxu0 0.0
        %2208 = vmatpush1.xpose.msra.mxu0 0.0
        %2209 = vmatprep.subr.mxu0 0.0
        %2210 = vmatpush1.xpose.msra.mxu0 0.0
        %2211 = vmatprep.subr.mxu0 0.0
        %2212 = vmatpush1.xpose.msra.mxu0 0.0
        %2213 = vmatprep.subr.mxu0 0.0
        %2214 = vmatpush1.xpose.msra.mxu0 0.0
        %2215 = vmatprep.subr.mxu0 0.0
        %2216 = vmatpush1.xpose.msra.mxu0 0.0
        %2217 = vmatprep.subr.mxu0 0.0
        %2218 = vmatpush1.xpose.msra.mxu0 0.0
        %2219 = vmatprep.subr.mxu0 0.0
        %2220 = vmatpush1.xpose.msra.mxu0 0.0
        %2221 = vmatprep.subr.mxu0 0.0
        %2222 = vmatpush1.xpose.msra.mxu0 0.0
        %2223 = vmatprep.subr.mxu0 0.0
        %2224 = vmatpush1.xpose.msra.mxu0 %v2193
        %2225 = vmatprep.subr.mxu0 0.0
        %2226 = vmatpush1.xpose.msra.mxu0 %v2191
        %2227 = vmatprep.subr.mxu0 0.0
        %2228 = vmatpush2.xpose.msra.mxu0 0.0
        %2229 = vmatprep.subr.mxu0 0.0
        %2230 = vmatpush2.xpose.msra.mxu0 0.0
        %2231 = vmatprep.subr.mxu0 0.0
        %2232 = vmatpush2.xpose.msra.mxu0 0.0
        %2233 = vmatprep.subr.mxu0 0.0
        %2234 = vmatpush2.xpose.msra.mxu0 0.0
        %2235 = vmatprep.subr.mxu0 0.0
        %2236 = vmatpush2.xpose.msra.mxu0 0.0
        %2237 = vmatprep.subr.mxu0 0.0
        %2238 = vmatpush2.xpose.msra.mxu0 0.0
        %2239 = vmatprep.subr.mxu0 0.0
        %2240 = vmatpush2.xpose.msra.mxu0 0.0
        %2241 = vmatprep.subr.mxu0 0.0
        %2242 = vmatpush2.xpose.msra.mxu0 0.0
        %2243 = vmatprep.subr.mxu0 0.0
        %2244 = vmatpush2.xpose.msra.mxu0 0.0
        %2245 = vmatprep.subr.mxu0 0.0
        %2246 = vmatpush2.xpose.msra.mxu0 0.0
        %2247 = vmatprep.subr.mxu0 0.0
        %2248 = vmatpush2.xpose.msra.mxu0 0.0
        %2249 = vmatprep.subr.mxu0 0.0
        %2250 = vmatpush2.xpose.msra.mxu0 0.0
        %2251 = vmatprep.subr.mxu0 0.0
        %2252 = vmatpush2.xpose.msra.mxu0 0.0
        %2253 = vmatprep.subr.mxu0 0.0
        %2254 = vmatpush2.xpose.msra.mxu0 0.0
        %2255 = vmatprep.subr.mxu0 0.0
        %2256 = vmatpush2.xpose.msra.mxu0 0.0
        %2257 = vmatprep.subr.mxu0 0.0
        %2258 = vmatpush2.xpose.msra.mxu0 0.0
        %2259 = vmatprep.mubr.f32.mxu0 0.0
        %2260 = vmatmul.mubr.f32.gmra.mxu0 %v2187
        %v2261 = vpop.f32.mrf.mxu0
        %v2262 = vadd.f32 0.0, %v2261
        %v2263 = vpop.f32.mrf.mxu0
        %2264 = vmatprep.mubr.f32.mxu0 0.0
        %2265 = vmatmul.mubr.f32.gmra.mxu0 %v2189
        %v2266 = vpop.f32.mrf.mxu0
        %v2267 = vadd.f32 0.0, %v2266
        %v2268 = vpop.f32.mrf.mxu0
        %2269 = vdwg.mxu0
        %v2270 = vsel %vm922, %v2262, -inf
        %2271 = vmax.xlane.f32.xlu0 %v2270
        %v2272 = vpop.xlane.xlu0 %2271
        %v2273 = vsel %vm922, %v2267, -inf
        %2274 = vmax.xlane.f32.xlu0 %v2273
        %v2275 = vpop.xlane.xlu0 %2274
        %v2276 = vsub.f32 %v2262, %v2272
        %v2277 = vsub.f32 %v2267, %v2275
        %v2278 = vmul.f32 %v2276, 1.442695
        %v2279 = vpow.pop %v2278
        %v2280 = vmul.f32 %v2277, 1.442695
        %v2281 = vpow.pop %v2280
        %v2284 = vlaneseq
        %v2285 = vshrl.u32 %v2284, 7
        %v2286 = vsub.s32 0, %v2285
        %v2287 = vrot.slane %v2279, %v2286
        %2289 = vbcast.lane.b32.xlu0 %v2287, 256
        %v2290 = vpop.permute.xlu0 %2289
        %s2292 = sor.u32 256, 8
        %2293 = vbcast.lane.b32.xlu0 %v2287, %s2292
        %v2294 = vpop.permute.xlu0 %2293
        %v2295 = vlaneseq
        %v2296 = vshrl.u32 %v2295, 7
        %v2297 = vsub.s32 1, %v2296
        %v2298 = vrot.slane %v2279, %v2297
        %2300 = vbcast.lane.b32.xlu0 %v2298, 256
        %v2301 = vpop.permute.xlu0 %2300
        %s2303 = sor.u32 256, 8
        %2304 = vbcast.lane.b32.xlu0 %v2298, %s2303
        %v2305 = vpop.permute.xlu0 %2304
        %v2306 = vlaneseq
        %v2307 = vshrl.u32 %v2306, 7
        %v2308 = vsub.s32 2, %v2307
        %v2309 = vrot.slane %v2279, %v2308
        %2311 = vbcast.lane.b32.xlu0 %v2309, 256
        %v2312 = vpop.permute.xlu0 %2311
        %s2314 = sor.u32 256, 8
        %2315 = vbcast.lane.b32.xlu0 %v2309, %s2314
        %v2316 = vpop.permute.xlu0 %2315
        %v2317 = vlaneseq
        %v2318 = vshrl.u32 %v2317, 7
        %v2319 = vsub.s32 3, %v2318
        %v2320 = vrot.slane %v2279, %v2319
        %2322 = vbcast.lane.b32.xlu0 %v2320, 256
        %v2323 = vpop.permute.xlu0 %2322
        %s2325 = sor.u32 256, 8
        %2326 = vbcast.lane.b32.xlu0 %v2320, %s2325
        %v2327 = vpop.permute.xlu0 %2326
        %v2328 = vlaneseq
        %v2329 = vshrl.u32 %v2328, 7
        %v2330 = vsub.s32 4, %v2329
        %v2331 = vrot.slane %v2279, %v2330
        %2333 = vbcast.lane.b32.xlu0 %v2331, 256
        %v2334 = vpop.permute.xlu0 %2333
        %s2336 = sor.u32 256, 8
        %2337 = vbcast.lane.b32.xlu0 %v2331, %s2336
        %v2338 = vpop.permute.xlu0 %2337
        %v2339 = vlaneseq
        %v2340 = vshrl.u32 %v2339, 7
        %v2341 = vsub.s32 5, %v2340
        %v2342 = vrot.slane %v2279, %v2341
        %2344 = vbcast.lane.b32.xlu0 %v2342, 256
        %v2345 = vpop.permute.xlu0 %2344
        %s2347 = sor.u32 256, 8
        %2348 = vbcast.lane.b32.xlu0 %v2342, %s2347
        %v2349 = vpop.permute.xlu0 %2348
        %v2350 = vlaneseq
        %v2351 = vshrl.u32 %v2350, 7
        %v2352 = vsub.s32 6, %v2351
        %v2353 = vrot.slane %v2279, %v2352
        %2355 = vbcast.lane.b32.xlu0 %v2353, 256
        %v2356 = vpop.permute.xlu0 %2355
        %s2358 = sor.u32 256, 8
        %2359 = vbcast.lane.b32.xlu0 %v2353, %s2358
        %v2360 = vpop.permute.xlu0 %2359
        %v2361 = vlaneseq
        %v2362 = vshrl.u32 %v2361, 7
        %v2363 = vsub.s32 7, %v2362
        %v2364 = vrot.slane %v2279, %v2363
        %2366 = vbcast.lane.b32.xlu0 %v2364, 256
        %v2367 = vpop.permute.xlu0 %2366
        %s2369 = sor.u32 256, 8
        %2370 = vbcast.lane.b32.xlu0 %v2364, %s2369
        %v2371 = vpop.permute.xlu0 %2370
        %v2372 = vlaneseq
        %v2373 = vshrl.u32 %v2372, 7
        %v2374 = vsub.s32 0, %v2373
        %v2375 = vrot.slane %v2281, %v2374
        %2377 = vbcast.lane.b32.xlu0 %v2375, 256
        %v2378 = vpop.permute.xlu0 %2377
        %s2380 = sor.u32 256, 8
        %2381 = vbcast.lane.b32.xlu0 %v2375, %s2380
        %v2382 = vpop.permute.xlu0 %2381
        %v2383 = vlaneseq
        %v2384 = vshrl.u32 %v2383, 7
        %v2385 = vsub.s32 1, %v2384
        %v2386 = vrot.slane %v2281, %v2385
        %2388 = vbcast.lane.b32.xlu0 %v2386, 256
        %v2389 = vpop.permute.xlu0 %2388
        %s2391 = sor.u32 256, 8
        %2392 = vbcast.lane.b32.xlu0 %v2386, %s2391
        %v2393 = vpop.permute.xlu0 %2392
        %v2394 = vlaneseq
        %v2395 = vshrl.u32 %v2394, 7
        %v2396 = vsub.s32 2, %v2395
        %v2397 = vrot.slane %v2281, %v2396
        %2399 = vbcast.lane.b32.xlu0 %v2397, 256
        %v2400 = vpop.permute.xlu0 %2399
        %s2402 = sor.u32 256, 8
        %2403 = vbcast.lane.b32.xlu0 %v2397, %s2402
        %v2404 = vpop.permute.xlu0 %2403
        %v2405 = vlaneseq
        %v2406 = vshrl.u32 %v2405, 7
        %v2407 = vsub.s32 3, %v2406
        %v2408 = vrot.slane %v2281, %v2407
        %2410 = vbcast.lane.b32.xlu0 %v2408, 256
        %v2411 = vpop.permute.xlu0 %2410
        %s2413 = sor.u32 256, 8
        %2414 = vbcast.lane.b32.xlu0 %v2408, %s2413
        %v2415 = vpop.permute.xlu0 %2414
        %v2416 = vlaneseq
        %v2417 = vshrl.u32 %v2416, 7
        %v2418 = vsub.s32 4, %v2417
        %v2419 = vrot.slane %v2281, %v2418
        %2421 = vbcast.lane.b32.xlu0 %v2419, 256
        %v2422 = vpop.permute.xlu0 %2421
        %s2424 = sor.u32 256, 8
        %2425 = vbcast.lane.b32.xlu0 %v2419, %s2424
        %v2426 = vpop.permute.xlu0 %2425
        %v2427 = vlaneseq
        %v2428 = vshrl.u32 %v2427, 7
        %v2429 = vsub.s32 5, %v2428
        %v2430 = vrot.slane %v2281, %v2429
        %2432 = vbcast.lane.b32.xlu0 %v2430, 256
        %v2433 = vpop.permute.xlu0 %2432
        %s2435 = sor.u32 256, 8
        %2436 = vbcast.lane.b32.xlu0 %v2430, %s2435
        %v2437 = vpop.permute.xlu0 %2436
        %v2438 = vlaneseq
        %v2439 = vshrl.u32 %v2438, 7
        %v2440 = vsub.s32 6, %v2439
        %v2441 = vrot.slane %v2281, %v2440
        %2443 = vbcast.lane.b32.xlu0 %v2441, 256
        %v2444 = vpop.permute.xlu0 %2443
        %s2446 = sor.u32 256, 8
        %2447 = vbcast.lane.b32.xlu0 %v2441, %s2446
        %v2448 = vpop.permute.xlu0 %2447
        %v2449 = vlaneseq
        %v2450 = vshrl.u32 %v2449, 7
        %v2451 = vsub.s32 7, %v2450
        %v2452 = vrot.slane %v2281, %v2451
        %2454 = vbcast.lane.b32.xlu0 %v2452, 256
        %v2455 = vpop.permute.xlu0 %2454
        %s2457 = sor.u32 256, 8
        %2458 = vbcast.lane.b32.xlu0 %v2452, %s2457
        %v2459 = vpop.permute.xlu0 %2458
        %v2492 = vmul.f32 %v2147, %v2290
        %v2493 = vmul.f32 %v2148, %v2294
        %v2494 = vmul.f32 %v2149, %v2301
        %v2495 = vmul.f32 %v2150, %v2305
        %v2496 = vmul.f32 %v2151, %v2312
        %v2497 = vmul.f32 %v2152, %v2316
        %v2498 = vmul.f32 %v2153, %v2323
        %v2499 = vmul.f32 %v2154, %v2327
        %v2500 = vmul.f32 %v2155, %v2334
        %v2501 = vmul.f32 %v2156, %v2338
        %v2502 = vmul.f32 %v2157, %v2345
        %v2503 = vmul.f32 %v2158, %v2349
        %v2504 = vmul.f32 %v2159, %v2356
        %v2505 = vmul.f32 %v2160, %v2360
        %v2506 = vmul.f32 %v2161, %v2367
        %v2507 = vmul.f32 %v2162, %v2371
        %v2508 = vmul.f32 %v2163, %v2378
        %v2509 = vmul.f32 %v2164, %v2382
        %v2510 = vmul.f32 %v2165, %v2389
        %v2511 = vmul.f32 %v2166, %v2393
        %v2512 = vmul.f32 %v2167, %v2400
        %v2513 = vmul.f32 %v2168, %v2404
        %v2514 = vmul.f32 %v2169, %v2411
        %v2515 = vmul.f32 %v2170, %v2415
        %v2516 = vmul.f32 %v2171, %v2422
        %v2517 = vmul.f32 %v2172, %v2426
        %v2518 = vmul.f32 %v2173, %v2433
        %v2519 = vmul.f32 %v2174, %v2437
        %v2520 = vmul.f32 %v2175, %v2444
        %v2521 = vmul.f32 %v2176, %v2448
        %v2522 = vmul.f32 %v2177, %v2455
        %v2523 = vmul.f32 %v2178, %v2459
        %2556 = vset.pattern.permute.xlu0 0
        %2557 = vperm.xlu0 %2556, %v2492
        %v2558 = vpop.permute.xlu0 %2557
        %2559 = vset.pattern.permute.xlu0 0
        %2560 = vperm.xlu0 %2559, %v2493
        %v2561 = vpop.permute.xlu0 %2560
        %2562 = vset.pattern.permute.xlu0 0
        %2563 = vperm.xlu0 %2562, %v2494
        %v2564 = vpop.permute.xlu0 %2563
        %2565 = vset.pattern.permute.xlu0 0
        %2566 = vperm.xlu0 %2565, %v2495
        %v2567 = vpop.permute.xlu0 %2566
        %2568 = vset.pattern.permute.xlu0 0
        %2569 = vperm.xlu0 %2568, %v2496
        %v2570 = vpop.permute.xlu0 %2569
        %2571 = vset.pattern.permute.xlu0 0
        %2572 = vperm.xlu0 %2571, %v2497
        %v2573 = vpop.permute.xlu0 %2572
        %2574 = vset.pattern.permute.xlu0 0
        %2575 = vperm.xlu0 %2574, %v2498
        %v2576 = vpop.permute.xlu0 %2575
        %2577 = vset.pattern.permute.xlu0 0
        %2578 = vperm.xlu0 %2577, %v2499
        %v2579 = vpop.permute.xlu0 %2578
        %2580 = vset.pattern.permute.xlu0 0
        %2581 = vperm.xlu0 %2580, %v2500
        %v2582 = vpop.permute.xlu0 %2581
        %2583 = vset.pattern.permute.xlu0 0
        %2584 = vperm.xlu0 %2583, %v2501
        %v2585 = vpop.permute.xlu0 %2584
        %2586 = vset.pattern.permute.xlu0 0
        %2587 = vperm.xlu0 %2586, %v2502
        %v2588 = vpop.permute.xlu0 %2587
        %2589 = vset.pattern.permute.xlu0 0
        %2590 = vperm.xlu0 %2589, %v2503
        %v2591 = vpop.permute.xlu0 %2590
        %2592 = vset.pattern.permute.xlu0 0
        %2593 = vperm.xlu0 %2592, %v2504
        %v2594 = vpop.permute.xlu0 %2593
        %2595 = vset.pattern.permute.xlu0 0
        %2596 = vperm.xlu0 %2595, %v2505
        %v2597 = vpop.permute.xlu0 %2596
        %2598 = vset.pattern.permute.xlu0 0
        %2599 = vperm.xlu0 %2598, %v2506
        %v2600 = vpop.permute.xlu0 %2599
        %2601 = vset.pattern.permute.xlu0 0
        %2602 = vperm.xlu0 %2601, %v2507
        %v2603 = vpop.permute.xlu0 %2602
        %2604 = vset.pattern.permute.xlu0 0
        %2605 = vperm.xlu0 %2604, %v2508
        %v2606 = vpop.permute.xlu0 %2605
        %2607 = vset.pattern.permute.xlu0 0
        %2608 = vperm.xlu0 %2607, %v2509
        %v2609 = vpop.permute.xlu0 %2608
        %2610 = vset.pattern.permute.xlu0 0
        %2611 = vperm.xlu0 %2610, %v2510
        %v2612 = vpop.permute.xlu0 %2611
        %2613 = vset.pattern.permute.xlu0 0
        %2614 = vperm.xlu0 %2613, %v2511
        %v2615 = vpop.permute.xlu0 %2614
        %2616 = vset.pattern.permute.xlu0 0
        %2617 = vperm.xlu0 %2616, %v2512
        %v2618 = vpop.permute.xlu0 %2617
        %2619 = vset.pattern.permute.xlu0 0
        %2620 = vperm.xlu0 %2619, %v2513
        %v2621 = vpop.permute.xlu0 %2620
        %2622 = vset.pattern.permute.xlu0 0
        %2623 = vperm.xlu0 %2622, %v2514
        %v2624 = vpop.permute.xlu0 %2623
        %2625 = vset.pattern.permute.xlu0 0
        %2626 = vperm.xlu0 %2625, %v2515
        %v2627 = vpop.permute.xlu0 %2626
        %2628 = vset.pattern.permute.xlu0 0
        %2629 = vperm.xlu0 %2628, %v2516
        %v2630 = vpop.permute.xlu0 %2629
        %2631 = vset.pattern.permute.xlu0 0
        %2632 = vperm.xlu0 %2631, %v2517
        %v2633 = vpop.permute.xlu0 %2632
        %2634 = vset.pattern.permute.xlu0 0
        %2635 = vperm.xlu0 %2634, %v2518
        %v2636 = vpop.permute.xlu0 %2635
        %2637 = vset.pattern.permute.xlu0 0
        %2638 = vperm.xlu0 %2637, %v2519
        %v2639 = vpop.permute.xlu0 %2638
        %2640 = vset.pattern.permute.xlu0 0
        %2641 = vperm.xlu0 %2640, %v2520
        %v2642 = vpop.permute.xlu0 %2641
        %2643 = vset.pattern.permute.xlu0 0
        %2644 = vperm.xlu0 %2643, %v2521
        %v2645 = vpop.permute.xlu0 %2644
        %2646 = vset.pattern.permute.xlu0 0
        %2647 = vperm.xlu0 %2646, %v2522
        %v2648 = vpop.permute.xlu0 %2647
        %2649 = vset.pattern.permute.xlu0 0
        %2650 = vperm.xlu0 %2649, %v2523
        %v2651 = vpop.permute.xlu0 %2650
        %v2652 = vlaneseq
        %v2653 = vshrl.u32 %v2652, 7
        %v2654 = vsub.s32 %v1306, %v2653
        %v2655 = vrot.slane %v2558, %v2654
        %v2656 = vlaneseq
        %v2657 = vshrl.u32 %v2656, 7
        %v2658 = vsub.s32 %v1311, %v2657
        %v2659 = vrot.slane %v2561, %v2658
        %v2660 = vsel %vm1316, %v2659, %v2655
        %v2661 = vlaneseq
        %v2662 = vshrl.u32 %v2661, 7
        %v2663 = vsub.s32 %v1306, %v2662
        %v2664 = vrot.slane %v2564, %v2663
        %v2665 = vlaneseq
        %v2666 = vshrl.u32 %v2665, 7
        %v2667 = vsub.s32 %v1311, %v2666
        %v2668 = vrot.slane %v2567, %v2667
        %v2669 = vsel %vm1316, %v2668, %v2664
        %v2670 = vlaneseq
        %v2671 = vshrl.u32 %v2670, 7
        %v2672 = vsub.s32 %v1306, %v2671
        %v2673 = vrot.slane %v2570, %v2672
        %v2674 = vlaneseq
        %v2675 = vshrl.u32 %v2674, 7
        %v2676 = vsub.s32 %v1311, %v2675
        %v2677 = vrot.slane %v2573, %v2676
        %v2678 = vsel %vm1316, %v2677, %v2673
        %v2679 = vlaneseq
        %v2680 = vshrl.u32 %v2679, 7
        %v2681 = vsub.s32 %v1306, %v2680
        %v2682 = vrot.slane %v2576, %v2681
        %v2683 = vlaneseq
        %v2684 = vshrl.u32 %v2683, 7
        %v2685 = vsub.s32 %v1311, %v2684
        %v2686 = vrot.slane %v2579, %v2685
        %v2687 = vsel %vm1316, %v2686, %v2682
        %v2688 = vlaneseq
        %v2689 = vshrl.u32 %v2688, 7
        %v2690 = vsub.s32 %v1306, %v2689
        %v2691 = vrot.slane %v2582, %v2690
        %v2692 = vlaneseq
        %v2693 = vshrl.u32 %v2692, 7
        %v2694 = vsub.s32 %v1311, %v2693
        %v2695 = vrot.slane %v2585, %v2694
        %v2696 = vsel %vm1316, %v2695, %v2691
        %v2697 = vlaneseq
        %v2698 = vshrl.u32 %v2697, 7
        %v2699 = vsub.s32 %v1306, %v2698
        %v2700 = vrot.slane %v2588, %v2699
        %v2701 = vlaneseq
        %v2702 = vshrl.u32 %v2701, 7
        %v2703 = vsub.s32 %v1311, %v2702
        %v2704 = vrot.slane %v2591, %v2703
        %v2705 = vsel %vm1316, %v2704, %v2700
        %v2706 = vlaneseq
        %v2707 = vshrl.u32 %v2706, 7
        %v2708 = vsub.s32 %v1306, %v2707
        %v2709 = vrot.slane %v2594, %v2708
        %v2710 = vlaneseq
        %v2711 = vshrl.u32 %v2710, 7
        %v2712 = vsub.s32 %v1311, %v2711
        %v2713 = vrot.slane %v2597, %v2712
        %v2714 = vsel %vm1316, %v2713, %v2709
        %v2715 = vlaneseq
        %v2716 = vshrl.u32 %v2715, 7
        %v2717 = vsub.s32 %v1306, %v2716
        %v2718 = vrot.slane %v2600, %v2717
        %v2719 = vlaneseq
        %v2720 = vshrl.u32 %v2719, 7
        %v2721 = vsub.s32 %v1311, %v2720
        %v2722 = vrot.slane %v2603, %v2721
        %v2723 = vsel %vm1316, %v2722, %v2718
        %v2724 = vlaneseq
        %v2725 = vshrl.u32 %v2724, 7
        %v2726 = vsub.s32 %v1306, %v2725
        %v2727 = vrot.slane %v2606, %v2726
        %v2728 = vlaneseq
        %v2729 = vshrl.u32 %v2728, 7
        %v2730 = vsub.s32 %v1311, %v2729
        %v2731 = vrot.slane %v2609, %v2730
        %v2732 = vsel %vm1316, %v2731, %v2727
        %v2733 = vlaneseq
        %v2734 = vshrl.u32 %v2733, 7
        %v2735 = vsub.s32 %v1306, %v2734
        %v2736 = vrot.slane %v2612, %v2735
        %v2737 = vlaneseq
        %v2738 = vshrl.u32 %v2737, 7
        %v2739 = vsub.s32 %v1311, %v2738
        %v2740 = vrot.slane %v2615, %v2739
        %v2741 = vsel %vm1316, %v2740, %v2736
        %v2742 = vlaneseq
        %v2743 = vshrl.u32 %v2742, 7
        %v2744 = vsub.s32 %v1306, %v2743
        %v2745 = vrot.slane %v2618, %v2744
        %v2746 = vlaneseq
        %v2747 = vshrl.u32 %v2746, 7
        %v2748 = vsub.s32 %v1311, %v2747
        %v2749 = vrot.slane %v2621, %v2748
        %v2750 = vsel %vm1316, %v2749, %v2745
        %v2751 = vlaneseq
        %v2752 = vshrl.u32 %v2751, 7
        %v2753 = vsub.s32 %v1306, %v2752
        %v2754 = vrot.slane %v2624, %v2753
        %v2755 = vlaneseq
        %v2756 = vshrl.u32 %v2755, 7
        %v2757 = vsub.s32 %v1311, %v2756
        %v2758 = vrot.slane %v2627, %v2757
        %v2759 = vsel %vm1316, %v2758, %v2754
        %v2760 = vlaneseq
        %v2761 = vshrl.u32 %v2760, 7
        %v2762 = vsub.s32 %v1306, %v2761
        %v2763 = vrot.slane %v2630, %v2762
        %v2764 = vlaneseq
        %v2765 = vshrl.u32 %v2764, 7
        %v2766 = vsub.s32 %v1311, %v2765
        %v2767 = vrot.slane %v2633, %v2766
        %v2768 = vsel %vm1316, %v2767, %v2763
        %v2769 = vlaneseq
        %v2770 = vshrl.u32 %v2769, 7
        %v2771 = vsub.s32 %v1306, %v2770
        %v2772 = vrot.slane %v2636, %v2771
        %v2773 = vlaneseq
        %v2774 = vshrl.u32 %v2773, 7
        %v2775 = vsub.s32 %v1311, %v2774
        %v2776 = vrot.slane %v2639, %v2775
        %v2777 = vsel %vm1316, %v2776, %v2772
        %v2778 = vlaneseq
        %v2779 = vshrl.u32 %v2778, 7
        %v2780 = vsub.s32 %v1306, %v2779
        %v2781 = vrot.slane %v2642, %v2780
        %v2782 = vlaneseq
        %v2783 = vshrl.u32 %v2782, 7
        %v2784 = vsub.s32 %v1311, %v2783
        %v2785 = vrot.slane %v2645, %v2784
        %v2786 = vsel %vm1316, %v2785, %v2781
        %v2787 = vlaneseq
        %v2788 = vshrl.u32 %v2787, 7
        %v2789 = vsub.s32 %v1306, %v2788
        %v2790 = vrot.slane %v2648, %v2789
        %v2791 = vlaneseq
        %v2792 = vshrl.u32 %v2791, 7
        %v2793 = vsub.s32 %v1311, %v2792
        %v2794 = vrot.slane %v2651, %v2793
        %v2795 = vsel %vm1316, %v2794, %v2790
        %v2796 = vsel %vm1453, %v2669, %v2660
        %v2797 = vsel %vm1455, %v2678, %v2796
        %v2798 = vsel %vm1457, %v2687, %v2797
        %v2799 = vsel %vm1459, %v2696, %v2798
        %v2800 = vsel %vm1461, %v2705, %v2799
        %v2801 = vsel %vm1463, %v2714, %v2800
        %v2802 = vsel %vm1465, %v2723, %v2801
        %v2803 = vsel %vm1453, %v2741, %v2732
        %v2804 = vsel %vm1455, %v2750, %v2803
        %v2805 = vsel %vm1457, %v2759, %v2804
        %v2806 = vsel %vm1459, %v2768, %v2805
        %v2807 = vsel %vm1461, %v2777, %v2806
        %v2808 = vsel %vm1463, %v2786, %v2807
        %v2809 = vsel %vm1465, %v2795, %v2808
        %v2812 = vsel %vm922, %v2802, 0.0
        %2813 = vadd.xlane.f32.xlu0 %v2812
        %v2814 = vpop.xlane.xlu0 %2813
        %v2815 = vsel %vm922, %v2809, 0.0
        %2816 = vadd.xlane.f32.xlu0 %v2815
        %v2817 = vpop.xlane.xlu0 %2816
        %v2820 = vlaneseq
        %v2821 = vshrl.u32 %v2820, 7
        %v2822 = vsub.s32 0, %v2821
        %v2823 = vrot.slane %v2814, %v2822
        %v2824 = vlaneseq
        %v2825 = vshrl.u32 %v2824, 7
        %v2826 = vsub.s32 1, %v2825
        %v2827 = vrot.slane %v2814, %v2826
        %v2828 = vlaneseq
        %v2829 = vshrl.u32 %v2828, 7
        %v2830 = vsub.s32 2, %v2829
        %v2831 = vrot.slane %v2814, %v2830
        %v2832 = vlaneseq
        %v2833 = vshrl.u32 %v2832, 7
        %v2834 = vsub.s32 3, %v2833
        %v2835 = vrot.slane %v2814, %v2834
        %v2836 = vlaneseq
        %v2837 = vshrl.u32 %v2836, 7
        %v2838 = vsub.s32 4, %v2837
        %v2839 = vrot.slane %v2814, %v2838
        %v2840 = vlaneseq
        %v2841 = vshrl.u32 %v2840, 7
        %v2842 = vsub.s32 5, %v2841
        %v2843 = vrot.slane %v2814, %v2842
        %v2844 = vlaneseq
        %v2845 = vshrl.u32 %v2844, 7
        %v2846 = vsub.s32 6, %v2845
        %v2847 = vrot.slane %v2814, %v2846
        %v2848 = vlaneseq
        %v2849 = vshrl.u32 %v2848, 7
        %v2850 = vsub.s32 7, %v2849
        %v2851 = vrot.slane %v2814, %v2850
        %v2852 = vlaneseq
        %v2853 = vshrl.u32 %v2852, 7
        %v2854 = vsub.s32 0, %v2853
        %v2855 = vrot.slane %v2817, %v2854
        %v2856 = vlaneseq
        %v2857 = vshrl.u32 %v2856, 7
        %v2858 = vsub.s32 1, %v2857
        %v2859 = vrot.slane %v2817, %v2858
        %v2860 = vlaneseq
        %v2861 = vshrl.u32 %v2860, 7
        %v2862 = vsub.s32 2, %v2861
        %v2863 = vrot.slane %v2817, %v2862
        %v2864 = vlaneseq
        %v2865 = vshrl.u32 %v2864, 7
        %v2866 = vsub.s32 3, %v2865
        %v2867 = vrot.slane %v2817, %v2866
        %v2868 = vlaneseq
        %v2869 = vshrl.u32 %v2868, 7
        %v2870 = vsub.s32 4, %v2869
        %v2871 = vrot.slane %v2817, %v2870
        %v2872 = vlaneseq
        %v2873 = vshrl.u32 %v2872, 7
        %v2874 = vsub.s32 5, %v2873
        %v2875 = vrot.slane %v2817, %v2874
        %v2876 = vlaneseq
        %v2877 = vshrl.u32 %v2876, 7
        %v2878 = vsub.s32 6, %v2877
        %v2879 = vrot.slane %v2817, %v2878
        %v2880 = vlaneseq
        %v2881 = vshrl.u32 %v2880, 7
        %v2882 = vsub.s32 7, %v2881
        %v2883 = vrot.slane %v2817, %v2882
        %v2900 = vrcp.pop %v2823
        %v2901 = vmul.f32 %v2492, %v2900
        %v2902 = vmul.f32 %v2493, %v2900
        %v2903 = vrcp.pop %v2827
        %v2904 = vmul.f32 %v2494, %v2903
        %v2905 = vmul.f32 %v2495, %v2903
        %v2906 = vrcp.pop %v2831
        %v2907 = vmul.f32 %v2496, %v2906
        %v2908 = vmul.f32 %v2497, %v2906
        %v2909 = vrcp.pop %v2835
        %v2910 = vmul.f32 %v2498, %v2909
        %v2911 = vmul.f32 %v2499, %v2909
        %v2912 = vrcp.pop %v2839
        %v2913 = vmul.f32 %v2500, %v2912
        %v2914 = vmul.f32 %v2501, %v2912
        %v2915 = vrcp.pop %v2843
        %v2916 = vmul.f32 %v2502, %v2915
        %v2917 = vmul.f32 %v2503, %v2915
        %v2918 = vrcp.pop %v2847
        %v2919 = vmul.f32 %v2504, %v2918
        %v2920 = vmul.f32 %v2505, %v2918
        %v2921 = vrcp.pop %v2851
        %v2922 = vmul.f32 %v2506, %v2921
        %v2923 = vmul.f32 %v2507, %v2921
        %v2924 = vrcp.pop %v2855
        %v2925 = vmul.f32 %v2508, %v2924
        %v2926 = vmul.f32 %v2509, %v2924
        %v2927 = vrcp.pop %v2859
        %v2928 = vmul.f32 %v2510, %v2927
        %v2929 = vmul.f32 %v2511, %v2927
        %v2930 = vrcp.pop %v2863
        %v2931 = vmul.f32 %v2512, %v2930
        %v2932 = vmul.f32 %v2513, %v2930
        %v2933 = vrcp.pop %v2867
        %v2934 = vmul.f32 %v2514, %v2933
        %v2935 = vmul.f32 %v2515, %v2933
        %v2936 = vrcp.pop %v2871
        %v2937 = vmul.f32 %v2516, %v2936
        %v2938 = vmul.f32 %v2517, %v2936
        %v2939 = vrcp.pop %v2875
        %v2940 = vmul.f32 %v2518, %v2939
        %v2941 = vmul.f32 %v2519, %v2939
        %v2942 = vrcp.pop %v2879
        %v2943 = vmul.f32 %v2520, %v2942
        %v2944 = vmul.f32 %v2521, %v2942
        %v2945 = vrcp.pop %v2883
        %v2946 = vmul.f32 %v2522, %v2945
        %v2947 = vmul.f32 %v2523, %v2945
        %2980 = vset.pattern.permute.xlu0 0
        %2981 = vperm.xlu0 %2980, %v2901
        %v2982 = vpop.permute.xlu0 %2981
        %2983 = vset.pattern.permute.xlu0 0
        %2984 = vperm.xlu0 %2983, %v2902
        %v2985 = vpop.permute.xlu0 %2984
        %2986 = vset.pattern.permute.xlu0 0
        %2987 = vperm.xlu0 %2986, %v2904
        %v2988 = vpop.permute.xlu0 %2987
        %2989 = vset.pattern.permute.xlu0 0
        %2990 = vperm.xlu0 %2989, %v2905
        %v2991 = vpop.permute.xlu0 %2990
        %2992 = vset.pattern.permute.xlu0 0
        %2993 = vperm.xlu0 %2992, %v2907
        %v2994 = vpop.permute.xlu0 %2993
        %2995 = vset.pattern.permute.xlu0 0
        %2996 = vperm.xlu0 %2995, %v2908
        %v2997 = vpop.permute.xlu0 %2996
        %2998 = vset.pattern.permute.xlu0 0
        %2999 = vperm.xlu0 %2998, %v2910
        %v3000 = vpop.permute.xlu0 %2999
        %3001 = vset.pattern.permute.xlu0 0
        %3002 = vperm.xlu0 %3001, %v2911
        %v3003 = vpop.permute.xlu0 %3002
        %3004 = vset.pattern.permute.xlu0 0
        %3005 = vperm.xlu0 %3004, %v2913
        %v3006 = vpop.permute.xlu0 %3005
        %3007 = vset.pattern.permute.xlu0 0
        %3008 = vperm.xlu0 %3007, %v2914
        %v3009 = vpop.permute.xlu0 %3008
        %3010 = vset.pattern.permute.xlu0 0
        %3011 = vperm.xlu0 %3010, %v2916
        %v3012 = vpop.permute.xlu0 %3011
        %3013 = vset.pattern.permute.xlu0 0
        %3014 = vperm.xlu0 %3013, %v2917
        %v3015 = vpop.permute.xlu0 %3014
        %3016 = vset.pattern.permute.xlu0 0
        %3017 = vperm.xlu0 %3016, %v2919
        %v3018 = vpop.permute.xlu0 %3017
        %3019 = vset.pattern.permute.xlu0 0
        %3020 = vperm.xlu0 %3019, %v2920
        %v3021 = vpop.permute.xlu0 %3020
        %3022 = vset.pattern.permute.xlu0 0
        %3023 = vperm.xlu0 %3022, %v2922
        %v3024 = vpop.permute.xlu0 %3023
        %3025 = vset.pattern.permute.xlu0 0
        %3026 = vperm.xlu0 %3025, %v2923
        %v3027 = vpop.permute.xlu0 %3026
        %3028 = vset.pattern.permute.xlu0 0
        %3029 = vperm.xlu0 %3028, %v2925
        %v3030 = vpop.permute.xlu0 %3029
        %3031 = vset.pattern.permute.xlu0 0
        %3032 = vperm.xlu0 %3031, %v2926
        %v3033 = vpop.permute.xlu0 %3032
        %3034 = vset.pattern.permute.xlu0 0
        %3035 = vperm.xlu0 %3034, %v2928
        %v3036 = vpop.permute.xlu0 %3035
        %3037 = vset.pattern.permute.xlu0 0
        %3038 = vperm.xlu0 %3037, %v2929
        %v3039 = vpop.permute.xlu0 %3038
        %3040 = vset.pattern.permute.xlu0 0
        %3041 = vperm.xlu0 %3040, %v2931
        %v3042 = vpop.permute.xlu0 %3041
        %3043 = vset.pattern.permute.xlu0 0
        %3044 = vperm.xlu0 %3043, %v2932
        %v3045 = vpop.permute.xlu0 %3044
        %3046 = vset.pattern.permute.xlu0 0
        %3047 = vperm.xlu0 %3046, %v2934
        %v3048 = vpop.permute.xlu0 %3047
        %3049 = vset.pattern.permute.xlu0 0
        %3050 = vperm.xlu0 %3049, %v2935
        %v3051 = vpop.permute.xlu0 %3050
        %3052 = vset.pattern.permute.xlu0 0
        %3053 = vperm.xlu0 %3052, %v2937
        %v3054 = vpop.permute.xlu0 %3053
        %3055 = vset.pattern.permute.xlu0 0
        %3056 = vperm.xlu0 %3055, %v2938
        %v3057 = vpop.permute.xlu0 %3056
        %3058 = vset.pattern.permute.xlu0 0
        %3059 = vperm.xlu0 %3058, %v2940
        %v3060 = vpop.permute.xlu0 %3059
        %3061 = vset.pattern.permute.xlu0 0
        %3062 = vperm.xlu0 %3061, %v2941
        %v3063 = vpop.permute.xlu0 %3062
        %3064 = vset.pattern.permute.xlu0 0
        %3065 = vperm.xlu0 %3064, %v2943
        %v3066 = vpop.permute.xlu0 %3065
        %3067 = vset.pattern.permute.xlu0 0
        %3068 = vperm.xlu0 %3067, %v2944
        %v3069 = vpop.permute.xlu0 %3068
        %3070 = vset.pattern.permute.xlu0 0
        %3071 = vperm.xlu0 %3070, %v2946
        %v3072 = vpop.permute.xlu0 %3071
        %3073 = vset.pattern.permute.xlu0 0
        %3074 = vperm.xlu0 %3073, %v2947
        %v3075 = vpop.permute.xlu0 %3074
        %v3076 = vlaneseq
        %v3077 = vshrl.u32 %v3076, 7
        %v3078 = vsub.s32 %v1306, %v3077
        %v3079 = vrot.slane %v2982, %v3078
        %v3080 = vlaneseq
        %v3081 = vshrl.u32 %v3080, 7
        %v3082 = vsub.s32 %v1311, %v3081
        %v3083 = vrot.slane %v2985, %v3082
        %v3084 = vsel %vm1316, %v3083, %v3079
        %v3085 = vlaneseq
        %v3086 = vshrl.u32 %v3085, 7
        %v3087 = vsub.s32 %v1306, %v3086
        %v3088 = vrot.slane %v2988, %v3087
        %v3089 = vlaneseq
        %v3090 = vshrl.u32 %v3089, 7
        %v3091 = vsub.s32 %v1311, %v3090
        %v3092 = vrot.slane %v2991, %v3091
        %v3093 = vsel %vm1316, %v3092, %v3088
        %v3094 = vlaneseq
        %v3095 = vshrl.u32 %v3094, 7
        %v3096 = vsub.s32 %v1306, %v3095
        %v3097 = vrot.slane %v2994, %v3096
        %v3098 = vlaneseq
        %v3099 = vshrl.u32 %v3098, 7
        %v3100 = vsub.s32 %v1311, %v3099
        %v3101 = vrot.slane %v2997, %v3100
        %v3102 = vsel %vm1316, %v3101, %v3097
        %v3103 = vlaneseq
        %v3104 = vshrl.u32 %v3103, 7
        %v3105 = vsub.s32 %v1306, %v3104
        %v3106 = vrot.slane %v3000, %v3105
        %v3107 = vlaneseq
        %v3108 = vshrl.u32 %v3107, 7
        %v3109 = vsub.s32 %v1311, %v3108
        %v3110 = vrot.slane %v3003, %v3109
        %v3111 = vsel %vm1316, %v3110, %v3106
        %v3112 = vlaneseq
        %v3113 = vshrl.u32 %v3112, 7
        %v3114 = vsub.s32 %v1306, %v3113
        %v3115 = vrot.slane %v3006, %v3114
        %v3116 = vlaneseq
        %v3117 = vshrl.u32 %v3116, 7
        %v3118 = vsub.s32 %v1311, %v3117
        %v3119 = vrot.slane %v3009, %v3118
        %v3120 = vsel %vm1316, %v3119, %v3115
        %v3121 = vlaneseq
        %v3122 = vshrl.u32 %v3121, 7
        %v3123 = vsub.s32 %v1306, %v3122
        %v3124 = vrot.slane %v3012, %v3123
        %v3125 = vlaneseq
        %v3126 = vshrl.u32 %v3125, 7
        %v3127 = vsub.s32 %v1311, %v3126
        %v3128 = vrot.slane %v3015, %v3127
        %v3129 = vsel %vm1316, %v3128, %v3124
        %v3130 = vlaneseq
        %v3131 = vshrl.u32 %v3130, 7
        %v3132 = vsub.s32 %v1306, %v3131
        %v3133 = vrot.slane %v3018, %v3132
        %v3134 = vlaneseq
        %v3135 = vshrl.u32 %v3134, 7
        %v3136 = vsub.s32 %v1311, %v3135
        %v3137 = vrot.slane %v3021, %v3136
        %v3138 = vsel %vm1316, %v3137, %v3133
        %v3139 = vlaneseq
        %v3140 = vshrl.u32 %v3139, 7
        %v3141 = vsub.s32 %v1306, %v3140
        %v3142 = vrot.slane %v3024, %v3141
        %v3143 = vlaneseq
        %v3144 = vshrl.u32 %v3143, 7
        %v3145 = vsub.s32 %v1311, %v3144
        %v3146 = vrot.slane %v3027, %v3145
        %v3147 = vsel %vm1316, %v3146, %v3142
        %v3148 = vlaneseq
        %v3149 = vshrl.u32 %v3148, 7
        %v3150 = vsub.s32 %v1306, %v3149
        %v3151 = vrot.slane %v3030, %v3150
        %v3152 = vlaneseq
        %v3153 = vshrl.u32 %v3152, 7
        %v3154 = vsub.s32 %v1311, %v3153
        %v3155 = vrot.slane %v3033, %v3154
        %v3156 = vsel %vm1316, %v3155, %v3151
        %v3157 = vlaneseq
        %v3158 = vshrl.u32 %v3157, 7
        %v3159 = vsub.s32 %v1306, %v3158
        %v3160 = vrot.slane %v3036, %v3159
        %v3161 = vlaneseq
        %v3162 = vshrl.u32 %v3161, 7
        %v3163 = vsub.s32 %v1311, %v3162
        %v3164 = vrot.slane %v3039, %v3163
        %v3165 = vsel %vm1316, %v3164, %v3160
        %v3166 = vlaneseq
        %v3167 = vshrl.u32 %v3166, 7
        %v3168 = vsub.s32 %v1306, %v3167
        %v3169 = vrot.slane %v3042, %v3168
        %v3170 = vlaneseq
        %v3171 = vshrl.u32 %v3170, 7
        %v3172 = vsub.s32 %v1311, %v3171
        %v3173 = vrot.slane %v3045, %v3172
        %v3174 = vsel %vm1316, %v3173, %v3169
        %v3175 = vlaneseq
        %v3176 = vshrl.u32 %v3175, 7
        %v3177 = vsub.s32 %v1306, %v3176
        %v3178 = vrot.slane %v3048, %v3177
        %v3179 = vlaneseq
        %v3180 = vshrl.u32 %v3179, 7
        %v3181 = vsub.s32 %v1311, %v3180
        %v3182 = vrot.slane %v3051, %v3181
        %v3183 = vsel %vm1316, %v3182, %v3178
        %v3184 = vlaneseq
        %v3185 = vshrl.u32 %v3184, 7
        %v3186 = vsub.s32 %v1306, %v3185
        %v3187 = vrot.slane %v3054, %v3186
        %v3188 = vlaneseq
        %v3189 = vshrl.u32 %v3188, 7
        %v3190 = vsub.s32 %v1311, %v3189
        %v3191 = vrot.slane %v3057, %v3190
        %v3192 = vsel %vm1316, %v3191, %v3187
        %v3193 = vlaneseq
        %v3194 = vshrl.u32 %v3193, 7
        %v3195 = vsub.s32 %v1306, %v3194
        %v3196 = vrot.slane %v3060, %v3195
        %v3197 = vlaneseq
        %v3198 = vshrl.u32 %v3197, 7
        %v3199 = vsub.s32 %v1311, %v3198
        %v3200 = vrot.slane %v3063, %v3199
        %v3201 = vsel %vm1316, %v3200, %v3196
        %v3202 = vlaneseq
        %v3203 = vshrl.u32 %v3202, 7
        %v3204 = vsub.s32 %v1306, %v3203
        %v3205 = vrot.slane %v3066, %v3204
        %v3206 = vlaneseq
        %v3207 = vshrl.u32 %v3206, 7
        %v3208 = vsub.s32 %v1311, %v3207
        %v3209 = vrot.slane %v3069, %v3208
        %v3210 = vsel %vm1316, %v3209, %v3205
        %v3211 = vlaneseq
        %v3212 = vshrl.u32 %v3211, 7
        %v3213 = vsub.s32 %v1306, %v3212
        %v3214 = vrot.slane %v3072, %v3213
        %v3215 = vlaneseq
        %v3216 = vshrl.u32 %v3215, 7
        %v3217 = vsub.s32 %v1311, %v3216
        %v3218 = vrot.slane %v3075, %v3217
        %v3219 = vsel %vm1316, %v3218, %v3214
        %v3220 = vsel %vm1453, %v3093, %v3084
        %v3221 = vsel %vm1455, %v3102, %v3220
        %v3222 = vsel %vm1457, %v3111, %v3221
        %v3223 = vsel %vm1459, %v3120, %v3222
        %v3224 = vsel %vm1461, %v3129, %v3223
        %v3225 = vsel %vm1463, %v3138, %v3224
        %v3226 = vsel %vm1465, %v3147, %v3225
        %v3227 = vsel %vm1453, %v3165, %v3156
        %v3228 = vsel %vm1455, %v3174, %v3227
        %v3229 = vsel %vm1457, %v3183, %v3228
        %v3230 = vsel %vm1459, %v3192, %v3229
        %v3231 = vsel %vm1461, %v3201, %v3230
        %v3232 = vsel %vm1463, %v3210, %v3231
        %v3233 = vsel %vm1465, %v3219, %v3232
        %3236 = vrot.lane.b32.xlu0 %v627, 96
        %v3237 = vpop.permute.xlu0 %3236
        %3238 = vrot.lane.b32.xlu0 %v630, 96
        %v3239 = vpop.permute.xlu0 %3238
        %v3242 = vsel %vm922, %v3226, 0
        %v3244 = vsel %vm922, %v3233, 0
        %3246 = vmatprep.subr.mxu0 0.0
        %3247 = vmatpush1.msra.mxu0 0.0
        %3248 = vmatprep.subr.mxu0 0.0
        %3249 = vmatpush1.msra.mxu0 0.0
        %3250 = vmatprep.subr.mxu0 0.0
        %3251 = vmatpush1.msra.mxu0 0.0
        %3252 = vmatprep.subr.mxu0 0.0
        %3253 = vmatpush1.msra.mxu0 0.0
        %3254 = vmatprep.subr.mxu0 0.0
        %3255 = vmatpush1.msra.mxu0 0.0
        %3256 = vmatprep.subr.mxu0 0.0
        %3257 = vmatpush1.msra.mxu0 0.0
        %3258 = vmatprep.subr.mxu0 0.0
        %3259 = vmatpush1.msra.mxu0 0.0
        %3260 = vmatprep.subr.mxu0 0.0
        %3261 = vmatpush1.msra.mxu0 0.0
        %3262 = vmatprep.subr.mxu0 0.0
        %3263 = vmatpush1.msra.mxu0 0.0
        %3264 = vmatprep.subr.mxu0 0.0
        %3265 = vmatpush1.msra.mxu0 0.0
        %3266 = vmatprep.subr.mxu0 0.0
        %3267 = vmatpush1.msra.mxu0 0.0
        %3268 = vmatprep.subr.mxu0 0.0
        %3269 = vmatpush1.msra.mxu0 0.0
        %3270 = vmatprep.subr.mxu0 0.0
        %3271 = vmatpush1.msra.mxu0 0.0
        %3272 = vmatprep.subr.mxu0 0.0
        %3273 = vmatpush1.msra.mxu0 0.0
        %3274 = vmatprep.subr.mxu0 0.0
        %3275 = vmatpush1.msra.mxu0 %v3239
        %3276 = vmatprep.subr.mxu0 0.0
        %3277 = vmatpush1.msra.mxu0 %v3237
        %3278 = vmatprep.subr.mxu0 0.0
        %3279 = vmatpush2.msra.mxu0 0.0
        %3280 = vmatprep.subr.mxu0 0.0
        %3281 = vmatpush2.msra.mxu0 0.0
        %3282 = vmatprep.subr.mxu0 0.0
        %3283 = vmatpush2.msra.mxu0 0.0
        %3284 = vmatprep.subr.mxu0 0.0
        %3285 = vmatpush2.msra.mxu0 0.0
        %3286 = vmatprep.subr.mxu0 0.0
        %3287 = vmatpush2.msra.mxu0 0.0
        %3288 = vmatprep.subr.mxu0 0.0
        %3289 = vmatpush2.msra.mxu0 0.0
        %3290 = vmatprep.subr.mxu0 0.0
        %3291 = vmatpush2.msra.mxu0 0.0
        %3292 = vmatprep.subr.mxu0 0.0
        %3293 = vmatpush2.msra.mxu0 0.0
        %3294 = vmatprep.subr.mxu0 0.0
        %3295 = vmatpush2.msra.mxu0 0.0
        %3296 = vmatprep.subr.mxu0 0.0
        %3297 = vmatpush2.msra.mxu0 0.0
        %3298 = vmatprep.subr.mxu0 0.0
        %3299 = vmatpush2.msra.mxu0 0.0
        %3300 = vmatprep.subr.mxu0 0.0
        %3301 = vmatpush2.msra.mxu0 0.0
        %3302 = vmatprep.subr.mxu0 0.0
        %3303 = vmatpush2.msra.mxu0 0.0
        %3304 = vmatprep.subr.mxu0 0.0
        %3305 = vmatpush2.msra.mxu0 0.0
        %3306 = vmatprep.subr.mxu0 0.0
        %3307 = vmatpush2.msra.mxu0 0.0
        %3308 = vmatprep.subr.mxu0 0.0
        %3309 = vmatpush2.msra.mxu0 0.0
        %3310 = vmatprep.mubr.f32.mxu0 0.0
        %3311 = vmatmul.mubr.f32.gmra.mxu0 %v3242
        %v3312 = vpop.f32.mrf.mxu0
        %v3313 = vadd.f32 0.0, %v3312
        %v3314 = vpop.f32.mrf.mxu0
        %3315 = vmatprep.mubr.f32.mxu0 0.0
        %3316 = vmatmul.mubr.f32.gmra.mxu0 %v3244
        %v3317 = vpop.f32.mrf.mxu0
        %v3318 = vadd.f32 0.0, %v3317
        %v3319 = vpop.f32.mrf.mxu0
        %3320 = vdwg.mxu0
        %s3321 = scalar_lea.vmem %s4, 2
        %v3322 = vld [vmem:[%s3321] sm:$0x1]
        %v3324 = vlaneseq
        %v3325 = vshrl.u32 %v3324, 7
        %v3326 = vsub.s32 0, %v3325
        %v3327 = vrot.slane %v3322, %v3326
        %v3329 = vmul.f32 %v339, %v3327
        %v3330 = vmul.f32 %v340, %v3327
        %v3331 = vmul.f32 %v341, %v3327
        %v3332 = vmul.f32 %v342, %v3327
        %v3333 = vmul.f32 %v343, %v3327
        %v3334 = vmul.f32 %v344, %v3327
        %v3335 = vmul.f32 %v345, %v3327
        %v3336 = vmul.f32 %v346, %v3327
        %v3337 = vmul.f32 %v347, %v3327
        %v3338 = vmul.f32 %v348, %v3327
        %v3339 = vmul.f32 %v349, %v3327
        %v3340 = vmul.f32 %v350, %v3327
        %v3341 = vmul.f32 %v351, %v3327
        %v3342 = vmul.f32 %v352, %v3327
        %v3343 = vmul.f32 %v353, %v3327
        %v3344 = vmul.f32 %v354, %v3327
        %v3345 = vmul.f32 %v355, %v3327
        %v3346 = vmul.f32 %v356, %v3327
        %v3347 = vmul.f32 %v357, %v3327
        %v3348 = vmul.f32 %v358, %v3327
        %v3349 = vmul.f32 %v359, %v3327
        %v3350 = vmul.f32 %v360, %v3327
        %v3351 = vmul.f32 %v361, %v3327
        %v3352 = vmul.f32 %v362, %v3327
        %v3353 = vmul.f32 %v363, %v3327
        %v3354 = vmul.f32 %v364, %v3327
        %v3355 = vmul.f32 %v365, %v3327
        %v3356 = vmul.f32 %v366, %v3327
        %v3357 = vmul.f32 %v367, %v3327
        %v3358 = vmul.f32 %v368, %v3327
        %v3359 = vmul.f32 %v369, %v3327
        %v3360 = vmul.f32 %v370, %v3327
        %v3361 = vsel %vm672, %v3329, 0.0
        %3362 = vadd.xlane.f32.xlu0 %v3361
        %v3363 = vpop.xlane.xlu0 %3362
        %v3364 = vsel %vm672, %v3330, 0.0
        %3365 = vadd.xlane.f32.xlu0 %v3364
        %v3366 = vpop.xlane.xlu0 %3365
        %v3367 = vsel %vm672, %v3331, 0.0
        %3368 = vadd.xlane.f32.xlu0 %v3367
        %v3369 = vpop.xlane.xlu0 %3368
        %v3370 = vsel %vm672, %v3332, 0.0
        %3371 = vadd.xlane.f32.xlu0 %v3370
        %v3372 = vpop.xlane.xlu0 %3371
        %v3373 = vsel %vm672, %v3333, 0.0
        %3374 = vadd.xlane.f32.xlu0 %v3373
        %v3375 = vpop.xlane.xlu0 %3374
        %v3376 = vsel %vm672, %v3334, 0.0
        %3377 = vadd.xlane.f32.xlu0 %v3376
        %v3378 = vpop.xlane.xlu0 %3377
        %v3379 = vsel %vm672, %v3335, 0.0
        %3380 = vadd.xlane.f32.xlu0 %v3379
        %v3381 = vpop.xlane.xlu0 %3380
        %v3382 = vsel %vm672, %v3336, 0.0
        %3383 = vadd.xlane.f32.xlu0 %v3382
        %v3384 = vpop.xlane.xlu0 %3383
        %v3385 = vsel %vm672, %v3337, 0.0
        %3386 = vadd.xlane.f32.xlu0 %v3385
        %v3387 = vpop.xlane.xlu0 %3386
        %v3388 = vsel %vm672, %v3338, 0.0
        %3389 = vadd.xlane.f32.xlu0 %v3388
        %v3390 = vpop.xlane.xlu0 %3389
        %v3391 = vsel %vm672, %v3339, 0.0
        %3392 = vadd.xlane.f32.xlu0 %v3391
        %v3393 = vpop.xlane.xlu0 %3392
        %v3394 = vsel %vm672, %v3340, 0.0
        %3395 = vadd.xlane.f32.xlu0 %v3394
        %v3396 = vpop.xlane.xlu0 %3395
        %v3397 = vsel %vm672, %v3341, 0.0
        %3398 = vadd.xlane.f32.xlu0 %v3397
        %v3399 = vpop.xlane.xlu0 %3398
        %v3400 = vsel %vm672, %v3342, 0.0
        %3401 = vadd.xlane.f32.xlu0 %v3400
        %v3402 = vpop.xlane.xlu0 %3401
        %v3403 = vsel %vm672, %v3343, 0.0
        %3404 = vadd.xlane.f32.xlu0 %v3403
        %v3405 = vpop.xlane.xlu0 %3404
        %v3406 = vsel %vm672, %v3344, 0.0
        %3407 = vadd.xlane.f32.xlu0 %v3406
        %v3408 = vpop.xlane.xlu0 %3407
        %v3409 = vsel %vm672, %v3345, 0.0
        %3410 = vadd.xlane.f32.xlu0 %v3409
        %v3411 = vpop.xlane.xlu0 %3410
        %v3412 = vsel %vm672, %v3346, 0.0
        %3413 = vadd.xlane.f32.xlu0 %v3412
        %v3414 = vpop.xlane.xlu0 %3413
        %v3415 = vsel %vm672, %v3347, 0.0
        %3416 = vadd.xlane.f32.xlu0 %v3415
        %v3417 = vpop.xlane.xlu0 %3416
        %v3418 = vsel %vm672, %v3348, 0.0
        %3419 = vadd.xlane.f32.xlu0 %v3418
        %v3420 = vpop.xlane.xlu0 %3419
        %v3421 = vsel %vm672, %v3349, 0.0
        %3422 = vadd.xlane.f32.xlu0 %v3421
        %v3423 = vpop.xlane.xlu0 %3422
        %v3424 = vsel %vm672, %v3350, 0.0
        %3425 = vadd.xlane.f32.xlu0 %v3424
        %v3426 = vpop.xlane.xlu0 %3425
        %v3427 = vsel %vm672, %v3351, 0.0
        %3428 = vadd.xlane.f32.xlu0 %v3427
        %v3429 = vpop.xlane.xlu0 %3428
        %v3430 = vsel %vm672, %v3352, 0.0
        %3431 = vadd.xlane.f32.xlu0 %v3430
        %v3432 = vpop.xlane.xlu0 %3431
        %v3433 = vsel %vm672, %v3353, 0.0
        %3434 = vadd.xlane.f32.xlu0 %v3433
        %v3435 = vpop.xlane.xlu0 %3434
        %v3436 = vsel %vm672, %v3354, 0.0
        %3437 = vadd.xlane.f32.xlu0 %v3436
        %v3438 = vpop.xlane.xlu0 %3437
        %v3439 = vsel %vm672, %v3355, 0.0
        %3440 = vadd.xlane.f32.xlu0 %v3439
        %v3441 = vpop.xlane.xlu0 %3440
        %v3442 = vsel %vm672, %v3356, 0.0
        %3443 = vadd.xlane.f32.xlu0 %v3442
        %v3444 = vpop.xlane.xlu0 %3443
        %v3445 = vsel %vm672, %v3357, 0.0
        %3446 = vadd.xlane.f32.xlu0 %v3445
        %v3447 = vpop.xlane.xlu0 %3446
        %v3448 = vsel %vm672, %v3358, 0.0
        %3449 = vadd.xlane.f32.xlu0 %v3448
        %v3450 = vpop.xlane.xlu0 %3449
        %v3451 = vsel %vm672, %v3359, 0.0
        %3452 = vadd.xlane.f32.xlu0 %v3451
        %v3453 = vpop.xlane.xlu0 %3452
        %v3454 = vsel %vm672, %v3360, 0.0
        %3455 = vadd.xlane.f32.xlu0 %v3454
        %v3456 = vpop.xlane.xlu0 %3455
        %s3457 = sld [smem:[#allocation9 + $0x2]]
        %v3458 = vstv %s3457
        %v3459 = vadd.f32 %v3363, %v3458
        %v3460 = vadd.f32 %v3366, %v3458
        %v3461 = vadd.f32 %v3369, %v3458
        %v3462 = vadd.f32 %v3372, %v3458
        %v3463 = vadd.f32 %v3375, %v3458
        %v3464 = vadd.f32 %v3378, %v3458
        %v3465 = vadd.f32 %v3381, %v3458
        %v3466 = vadd.f32 %v3384, %v3458
        %v3467 = vadd.f32 %v3387, %v3458
        %v3468 = vadd.f32 %v3390, %v3458
        %v3469 = vadd.f32 %v3393, %v3458
        %v3470 = vadd.f32 %v3396, %v3458
        %v3471 = vadd.f32 %v3399, %v3458
        %v3472 = vadd.f32 %v3402, %v3458
        %v3473 = vadd.f32 %v3405, %v3458
        %v3474 = vadd.f32 %v3408, %v3458
        %v3475 = vadd.f32 %v3411, %v3458
        %v3476 = vadd.f32 %v3414, %v3458
        %v3477 = vadd.f32 %v3417, %v3458
        %v3478 = vadd.f32 %v3420, %v3458
        %v3479 = vadd.f32 %v3423, %v3458
        %v3480 = vadd.f32 %v3426, %v3458
        %v3481 = vadd.f32 %v3429, %v3458
        %v3482 = vadd.f32 %v3432, %v3458
        %v3483 = vadd.f32 %v3435, %v3458
        %v3484 = vadd.f32 %v3438, %v3458
        %v3485 = vadd.f32 %v3441, %v3458
        %v3486 = vadd.f32 %v3444, %v3458
        %v3487 = vadd.f32 %v3447, %v3458
        %v3488 = vadd.f32 %v3450, %v3458
        %v3489 = vadd.f32 %v3453, %v3458
        %v3490 = vadd.f32 %v3456, %v3458
        %v3491 = vmax.f32 %v3459, 1e-06
        %v3492 = vmax.f32 %v3460, 1e-06
        %v3493 = vmax.f32 %v3461, 1e-06
        %v3494 = vmax.f32 %v3462, 1e-06
        %v3495 = vmax.f32 %v3463, 1e-06
        %v3496 = vmax.f32 %v3464, 1e-06
        %v3497 = vmax.f32 %v3465, 1e-06
        %v3498 = vmax.f32 %v3466, 1e-06
        %v3499 = vmax.f32 %v3467, 1e-06
        %v3500 = vmax.f32 %v3468, 1e-06
        %v3501 = vmax.f32 %v3469, 1e-06
        %v3502 = vmax.f32 %v3470, 1e-06
        %v3503 = vmax.f32 %v3471, 1e-06
        %v3504 = vmax.f32 %v3472, 1e-06
        %v3505 = vmax.f32 %v3473, 1e-06
        %v3506 = vmax.f32 %v3474, 1e-06
        %v3507 = vmax.f32 %v3475, 1e-06
        %v3508 = vmax.f32 %v3476, 1e-06
        %v3509 = vmax.f32 %v3477, 1e-06
        %v3510 = vmax.f32 %v3478, 1e-06
        %v3511 = vmax.f32 %v3479, 1e-06
        %v3512 = vmax.f32 %v3480, 1e-06
        %v3513 = vmax.f32 %v3481, 1e-06
        %v3514 = vmax.f32 %v3482, 1e-06
        %v3515 = vmax.f32 %v3483, 1e-06
        %v3516 = vmax.f32 %v3484, 1e-06
        %v3517 = vmax.f32 %v3485, 1e-06
        %v3518 = vmax.f32 %v3486, 1e-06
        %v3519 = vmax.f32 %v3487, 1e-06
        %v3520 = vmax.f32 %v3488, 1e-06
        %v3521 = vmax.f32 %v3489, 1e-06
        %v3522 = vmax.f32 %v3490, 1e-06
        %3523 = vrot.lane.b32.xlu0 %v584, 64
        %v3524 = vpop.permute.xlu0 %3523
        %3525 = vrot.lane.b32.xlu0 %v588, 64
        %v3526 = vpop.permute.xlu0 %3525
        %3527 = vrot.lane.b32.xlu0 %v586, 64
        %v3528 = vpop.permute.xlu0 %3527
        %3529 = vrot.lane.b32.xlu0 %v590, 64
        %v3530 = vpop.permute.xlu0 %3529
        %v3531 = vsel %vm672, %v3524, 0
        %v3533 = vsel %vm672, %v3526, 0
        %v3535 = vsel %vm672, %v3528, 0
        %v3537 = vsel %vm672, %v3530, 0
        %3539 = vmatprep.subr.mxu0 0.0
        %3540 = vmatpush1.xpose.msra.mxu0 0.0
        %3541 = vmatprep.subr.mxu0 0.0
        %3542 = vmatpush1.xpose.msra.mxu0 0.0
        %3543 = vmatprep.subr.mxu0 0.0
        %3544 = vmatpush1.xpose.msra.mxu0 0.0
        %3545 = vmatprep.subr.mxu0 0.0
        %3546 = vmatpush1.xpose.msra.mxu0 0.0
        %3547 = vmatprep.subr.mxu0 0.0
        %3548 = vmatpush1.xpose.msra.mxu0 0.0
        %3549 = vmatprep.subr.mxu0 0.0
        %3550 = vmatpush1.xpose.msra.mxu0 0.0
        %3551 = vmatprep.subr.mxu0 0.0
        %3552 = vmatpush1.xpose.msra.mxu0 0.0
        %3553 = vmatprep.subr.mxu0 0.0
        %3554 = vmatpush1.xpose.msra.mxu0 0.0
        %3555 = vmatprep.subr.mxu0 0.0
        %3556 = vmatpush1.xpose.msra.mxu0 0.0
        %3557 = vmatprep.subr.mxu0 0.0
        %3558 = vmatpush1.xpose.msra.mxu0 0.0
        %3559 = vmatprep.subr.mxu0 0.0
        %3560 = vmatpush1.xpose.msra.mxu0 0.0
        %3561 = vmatprep.subr.mxu0 0.0
        %3562 = vmatpush1.xpose.msra.mxu0 0.0
        %3563 = vmatprep.subr.mxu0 0.0
        %3564 = vmatpush1.xpose.msra.mxu0 0.0
        %3565 = vmatprep.subr.mxu0 0.0
        %3566 = vmatpush1.xpose.msra.mxu0 0.0
        %3567 = vmatprep.subr.mxu0 0.0
        %3568 = vmatpush1.xpose.msra.mxu0 %v3537
        %3569 = vmatprep.subr.mxu0 0.0
        %3570 = vmatpush1.xpose.msra.mxu0 %v3535
        %3571 = vmatprep.subr.mxu0 0.0
        %3572 = vmatpush2.xpose.msra.mxu0 0.0
        %3573 = vmatprep.subr.mxu0 0.0
        %3574 = vmatpush2.xpose.msra.mxu0 0.0
        %3575 = vmatprep.subr.mxu0 0.0
        %3576 = vmatpush2.xpose.msra.mxu0 0.0
        %3577 = vmatprep.subr.mxu0 0.0
        %3578 = vmatpush2.xpose.msra.mxu0 0.0
        %3579 = vmatprep.subr.mxu0 0.0
        %3580 = vmatpush2.xpose.msra.mxu0 0.0
        %3581 = vmatprep.subr.mxu0 0.0
        %3582 = vmatpush2.xpose.msra.mxu0 0.0
        %3583 = vmatprep.subr.mxu0 0.0
        %3584 = vmatpush2.xpose.msra.mxu0 0.0
        %3585 = vmatprep.subr.mxu0 0.0
        %3586 = vmatpush2.xpose.msra.mxu0 0.0
        %3587 = vmatprep.subr.mxu0 0.0
        %3588 = vmatpush2.xpose.msra.mxu0 0.0
        %3589 = vmatprep.subr.mxu0 0.0
        %3590 = vmatpush2.xpose.msra.mxu0 0.0
        %3591 = vmatprep.subr.mxu0 0.0
        %3592 = vmatpush2.xpose.msra.mxu0 0.0
        %3593 = vmatprep.subr.mxu0 0.0
        %3594 = vmatpush2.xpose.msra.mxu0 0.0
        %3595 = vmatprep.subr.mxu0 0.0
        %3596 = vmatpush2.xpose.msra.mxu0 0.0
        %3597 = vmatprep.subr.mxu0 0.0
        %3598 = vmatpush2.xpose.msra.mxu0 0.0
        %3599 = vmatprep.subr.mxu0 0.0
        %3600 = vmatpush2.xpose.msra.mxu0 0.0
        %3601 = vmatprep.subr.mxu0 0.0
        %3602 = vmatpush2.xpose.msra.mxu0 0.0
        %3603 = vmatprep.mubr.f32.mxu0 0.0
        %3604 = vmatmul.mubr.f32.gmra.mxu0 %v3531
        %v3605 = vpop.f32.mrf.mxu0
        %v3606 = vadd.f32 0.0, %v3605
        %v3607 = vpop.f32.mrf.mxu0
        %3608 = vmatprep.mubr.f32.mxu0 0.0
        %3609 = vmatmul.mubr.f32.gmra.mxu0 %v3533
        %v3610 = vpop.f32.mrf.mxu0
        %v3611 = vadd.f32 0.0, %v3610
        %v3612 = vpop.f32.mrf.mxu0
        %3613 = vdwg.mxu0
        %v3614 = vsel %vm922, %v3606, -inf
        %3615 = vmax.xlane.f32.xlu0 %v3614
        %v3616 = vpop.xlane.xlu0 %3615
        %v3617 = vsel %vm922, %v3611, -inf
        %3618 = vmax.xlane.f32.xlu0 %v3617
        %v3619 = vpop.xlane.xlu0 %3618
        %v3620 = vsub.f32 %v3606, %v3616
        %v3621 = vsub.f32 %v3611, %v3619
        %v3622 = vmul.f32 %v3620, 1.442695
        %v3623 = vpow.pop %v3622
        %v3624 = vmul.f32 %v3621, 1.442695
        %v3625 = vpow.pop %v3624
        %v3628 = vlaneseq
        %v3629 = vshrl.u32 %v3628, 7
        %v3630 = vsub.s32 0, %v3629
        %v3631 = vrot.slane %v3623, %v3630
        %3633 = vbcast.lane.b32.xlu0 %v3631, 256
        %v3634 = vpop.permute.xlu0 %3633
        %s3636 = sor.u32 256, 8
        %3637 = vbcast.lane.b32.xlu0 %v3631, %s3636
        %v3638 = vpop.permute.xlu0 %3637
        %v3639 = vlaneseq
        %v3640 = vshrl.u32 %v3639, 7
        %v3641 = vsub.s32 1, %v3640
        %v3642 = vrot.slane %v3623, %v3641
        %3644 = vbcast.lane.b32.xlu0 %v3642, 256
        %v3645 = vpop.permute.xlu0 %3644
        %s3647 = sor.u32 256, 8
        %3648 = vbcast.lane.b32.xlu0 %v3642, %s3647
        %v3649 = vpop.permute.xlu0 %3648
        %v3650 = vlaneseq
        %v3651 = vshrl.u32 %v3650, 7
        %v3652 = vsub.s32 2, %v3651
        %v3653 = vrot.slane %v3623, %v3652
        %3655 = vbcast.lane.b32.xlu0 %v3653, 256
        %v3656 = vpop.permute.xlu0 %3655
        %s3658 = sor.u32 256, 8
        %3659 = vbcast.lane.b32.xlu0 %v3653, %s3658
        %v3660 = vpop.permute.xlu0 %3659
        %v3661 = vlaneseq
        %v3662 = vshrl.u32 %v3661, 7
        %v3663 = vsub.s32 3, %v3662
        %v3664 = vrot.slane %v3623, %v3663
        %3666 = vbcast.lane.b32.xlu0 %v3664, 256
        %v3667 = vpop.permute.xlu0 %3666
        %s3669 = sor.u32 256, 8
        %3670 = vbcast.lane.b32.xlu0 %v3664, %s3669
        %v3671 = vpop.permute.xlu0 %3670
        %v3672 = vlaneseq
        %v3673 = vshrl.u32 %v3672, 7
        %v3674 = vsub.s32 4, %v3673
        %v3675 = vrot.slane %v3623, %v3674
        %3677 = vbcast.lane.b32.xlu0 %v3675, 256
        %v3678 = vpop.permute.xlu0 %3677
        %s3680 = sor.u32 256, 8
        %3681 = vbcast.lane.b32.xlu0 %v3675, %s3680
        %v3682 = vpop.permute.xlu0 %3681
        %v3683 = vlaneseq
        %v3684 = vshrl.u32 %v3683, 7
        %v3685 = vsub.s32 5, %v3684
        %v3686 = vrot.slane %v3623, %v3685
        %3688 = vbcast.lane.b32.xlu0 %v3686, 256
        %v3689 = vpop.permute.xlu0 %3688
        %s3691 = sor.u32 256, 8
        %3692 = vbcast.lane.b32.xlu0 %v3686, %s3691
        %v3693 = vpop.permute.xlu0 %3692
        %v3694 = vlaneseq
        %v3695 = vshrl.u32 %v3694, 7
        %v3696 = vsub.s32 6, %v3695
        %v3697 = vrot.slane %v3623, %v3696
        %3699 = vbcast.lane.b32.xlu0 %v3697, 256
        %v3700 = vpop.permute.xlu0 %3699
        %s3702 = sor.u32 256, 8
        %3703 = vbcast.lane.b32.xlu0 %v3697, %s3702
        %v3704 = vpop.permute.xlu0 %3703
        %v3705 = vlaneseq
        %v3706 = vshrl.u32 %v3705, 7
        %v3707 = vsub.s32 7, %v3706
        %v3708 = vrot.slane %v3623, %v3707
        %3710 = vbcast.lane.b32.xlu0 %v3708, 256
        %v3711 = vpop.permute.xlu0 %3710
        %s3713 = sor.u32 256, 8
        %3714 = vbcast.lane.b32.xlu0 %v3708, %s3713
        %v3715 = vpop.permute.xlu0 %3714
        %v3716 = vlaneseq
        %v3717 = vshrl.u32 %v3716, 7
        %v3718 = vsub.s32 0, %v3717
        %v3719 = vrot.slane %v3625, %v3718
        %3721 = vbcast.lane.b32.xlu0 %v3719, 256
        %v3722 = vpop.permute.xlu0 %3721
        %s3724 = sor.u32 256, 8
        %3725 = vbcast.lane.b32.xlu0 %v3719, %s3724
        %v3726 = vpop.permute.xlu0 %3725
        %v3727 = vlaneseq
        %v3728 = vshrl.u32 %v3727, 7
        %v3729 = vsub.s32 1, %v3728
        %v3730 = vrot.slane %v3625, %v3729
        %3732 = vbcast.lane.b32.xlu0 %v3730, 256
        %v3733 = vpop.permute.xlu0 %3732
        %s3735 = sor.u32 256, 8
        %3736 = vbcast.lane.b32.xlu0 %v3730, %s3735
        %v3737 = vpop.permute.xlu0 %3736
        %v3738 = vlaneseq
        %v3739 = vshrl.u32 %v3738, 7
        %v3740 = vsub.s32 2, %v3739
        %v3741 = vrot.slane %v3625, %v3740
        %3743 = vbcast.lane.b32.xlu0 %v3741, 256
        %v3744 = vpop.permute.xlu0 %3743
        %s3746 = sor.u32 256, 8
        %3747 = vbcast.lane.b32.xlu0 %v3741, %s3746
        %v3748 = vpop.permute.xlu0 %3747
        %v3749 = vlaneseq
        %v3750 = vshrl.u32 %v3749, 7
        %v3751 = vsub.s32 3, %v3750
        %v3752 = vrot.slane %v3625, %v3751
        %3754 = vbcast.lane.b32.xlu0 %v3752, 256
        %v3755 = vpop.permute.xlu0 %3754
        %s3757 = sor.u32 256, 8
        %3758 = vbcast.lane.b32.xlu0 %v3752, %s3757
        %v3759 = vpop.permute.xlu0 %3758
        %v3760 = vlaneseq
        %v3761 = vshrl.u32 %v3760, 7
        %v3762 = vsub.s32 4, %v3761
        %v3763 = vrot.slane %v3625, %v3762
        %3765 = vbcast.lane.b32.xlu0 %v3763, 256
        %v3766 = vpop.permute.xlu0 %3765
        %s3768 = sor.u32 256, 8
        %3769 = vbcast.lane.b32.xlu0 %v3763, %s3768
        %v3770 = vpop.permute.xlu0 %3769
        %v3771 = vlaneseq
        %v3772 = vshrl.u32 %v3771, 7
        %v3773 = vsub.s32 5, %v3772
        %v3774 = vrot.slane %v3625, %v3773
        %3776 = vbcast.lane.b32.xlu0 %v3774, 256
        %v3777 = vpop.permute.xlu0 %3776
        %s3779 = sor.u32 256, 8
        %3780 = vbcast.lane.b32.xlu0 %v3774, %s3779
        %v3781 = vpop.permute.xlu0 %3780
        %v3782 = vlaneseq
        %v3783 = vshrl.u32 %v3782, 7
        %v3784 = vsub.s32 6, %v3783
        %v3785 = vrot.slane %v3625, %v3784
        %3787 = vbcast.lane.b32.xlu0 %v3785, 256
        %v3788 = vpop.permute.xlu0 %3787
        %s3790 = sor.u32 256, 8
        %3791 = vbcast.lane.b32.xlu0 %v3785, %s3790
        %v3792 = vpop.permute.xlu0 %3791
        %v3793 = vlaneseq
        %v3794 = vshrl.u32 %v3793, 7
        %v3795 = vsub.s32 7, %v3794
        %v3796 = vrot.slane %v3625, %v3795
        %3798 = vbcast.lane.b32.xlu0 %v3796, 256
        %v3799 = vpop.permute.xlu0 %3798
        %s3801 = sor.u32 256, 8
        %3802 = vbcast.lane.b32.xlu0 %v3796, %s3801
        %v3803 = vpop.permute.xlu0 %3802
        %v3836 = vmul.f32 %v3491, %v3634
        %v3837 = vmul.f32 %v3492, %v3638
        %v3838 = vmul.f32 %v3493, %v3645
        %v3839 = vmul.f32 %v3494, %v3649
        %v3840 = vmul.f32 %v3495, %v3656
        %v3841 = vmul.f32 %v3496, %v3660
        %v3842 = vmul.f32 %v3497, %v3667
        %v3843 = vmul.f32 %v3498, %v3671
        %v3844 = vmul.f32 %v3499, %v3678
        %v3845 = vmul.f32 %v3500, %v3682
        %v3846 = vmul.f32 %v3501, %v3689
        %v3847 = vmul.f32 %v3502, %v3693
        %v3848 = vmul.f32 %v3503, %v3700
        %v3849 = vmul.f32 %v3504, %v3704
        %v3850 = vmul.f32 %v3505, %v3711
        %v3851 = vmul.f32 %v3506, %v3715
        %v3852 = vmul.f32 %v3507, %v3722
        %v3853 = vmul.f32 %v3508, %v3726
        %v3854 = vmul.f32 %v3509, %v3733
        %v3855 = vmul.f32 %v3510, %v3737
        %v3856 = vmul.f32 %v3511, %v3744
        %v3857 = vmul.f32 %v3512, %v3748
        %v3858 = vmul.f32 %v3513, %v3755
        %v3859 = vmul.f32 %v3514, %v3759
        %v3860 = vmul.f32 %v3515, %v3766
        %v3861 = vmul.f32 %v3516, %v3770
        %v3862 = vmul.f32 %v3517, %v3777
        %v3863 = vmul.f32 %v3518, %v3781
        %v3864 = vmul.f32 %v3519, %v3788
        %v3865 = vmul.f32 %v3520, %v3792
        %v3866 = vmul.f32 %v3521, %v3799
        %v3867 = vmul.f32 %v3522, %v3803
        %3900 = vset.pattern.permute.xlu0 0
        %3901 = vperm.xlu0 %3900, %v3836
        %v3902 = vpop.permute.xlu0 %3901
        %3903 = vset.pattern.permute.xlu0 0
        %3904 = vperm.xlu0 %3903, %v3837
        %v3905 = vpop.permute.xlu0 %3904
        %3906 = vset.pattern.permute.xlu0 0
        %3907 = vperm.xlu0 %3906, %v3838
        %v3908 = vpop.permute.xlu0 %3907
        %3909 = vset.pattern.permute.xlu0 0
        %3910 = vperm.xlu0 %3909, %v3839
        %v3911 = vpop.permute.xlu0 %3910
        %3912 = vset.pattern.permute.xlu0 0
        %3913 = vperm.xlu0 %3912, %v3840
        %v3914 = vpop.permute.xlu0 %3913
        %3915 = vset.pattern.permute.xlu0 0
        %3916 = vperm.xlu0 %3915, %v3841
        %v3917 = vpop.permute.xlu0 %3916
        %3918 = vset.pattern.permute.xlu0 0
        %3919 = vperm.xlu0 %3918, %v3842
        %v3920 = vpop.permute.xlu0 %3919
        %3921 = vset.pattern.permute.xlu0 0
        %3922 = vperm.xlu0 %3921, %v3843
        %v3923 = vpop.permute.xlu0 %3922
        %3924 = vset.pattern.permute.xlu0 0
        %3925 = vperm.xlu0 %3924, %v3844
        %v3926 = vpop.permute.xlu0 %3925
        %3927 = vset.pattern.permute.xlu0 0
        %3928 = vperm.xlu0 %3927, %v3845
        %v3929 = vpop.permute.xlu0 %3928
        %3930 = vset.pattern.permute.xlu0 0
        %3931 = vperm.xlu0 %3930, %v3846
        %v3932 = vpop.permute.xlu0 %3931
        %3933 = vset.pattern.permute.xlu0 0
        %3934 = vperm.xlu0 %3933, %v3847
        %v3935 = vpop.permute.xlu0 %3934
        %3936 = vset.pattern.permute.xlu0 0
        %3937 = vperm.xlu0 %3936, %v3848
        %v3938 = vpop.permute.xlu0 %3937
        %3939 = vset.pattern.permute.xlu0 0
        %3940 = vperm.xlu0 %3939, %v3849
        %v3941 = vpop.permute.xlu0 %3940
        %3942 = vset.pattern.permute.xlu0 0
        %3943 = vperm.xlu0 %3942, %v3850
        %v3944 = vpop.permute.xlu0 %3943
        %3945 = vset.pattern.permute.xlu0 0
        %3946 = vperm.xlu0 %3945, %v3851
        %v3947 = vpop.permute.xlu0 %3946
        %3948 = vset.pattern.permute.xlu0 0
        %3949 = vperm.xlu0 %3948, %v3852
        %v3950 = vpop.permute.xlu0 %3949
        %3951 = vset.pattern.permute.xlu0 0
        %3952 = vperm.xlu0 %3951, %v3853
        %v3953 = vpop.permute.xlu0 %3952
        %3954 = vset.pattern.permute.xlu0 0
        %3955 = vperm.xlu0 %3954, %v3854
        %v3956 = vpop.permute.xlu0 %3955
        %3957 = vset.pattern.permute.xlu0 0
        %3958 = vperm.xlu0 %3957, %v3855
        %v3959 = vpop.permute.xlu0 %3958
        %3960 = vset.pattern.permute.xlu0 0
        %3961 = vperm.xlu0 %3960, %v3856
        %v3962 = vpop.permute.xlu0 %3961
        %3963 = vset.pattern.permute.xlu0 0
        %3964 = vperm.xlu0 %3963, %v3857
        %v3965 = vpop.permute.xlu0 %3964
        %3966 = vset.pattern.permute.xlu0 0
        %3967 = vperm.xlu0 %3966, %v3858
        %v3968 = vpop.permute.xlu0 %3967
        %3969 = vset.pattern.permute.xlu0 0
        %3970 = vperm.xlu0 %3969, %v3859
        %v3971 = vpop.permute.xlu0 %3970
        %3972 = vset.pattern.permute.xlu0 0
        %3973 = vperm.xlu0 %3972, %v3860
        %v3974 = vpop.permute.xlu0 %3973
        %3975 = vset.pattern.permute.xlu0 0
        %3976 = vperm.xlu0 %3975, %v3861
        %v3977 = vpop.permute.xlu0 %3976
        %3978 = vset.pattern.permute.xlu0 0
        %3979 = vperm.xlu0 %3978, %v3862
        %v3980 = vpop.permute.xlu0 %3979
        %3981 = vset.pattern.permute.xlu0 0
        %3982 = vperm.xlu0 %3981, %v3863
        %v3983 = vpop.permute.xlu0 %3982
        %3984 = vset.pattern.permute.xlu0 0
        %3985 = vperm.xlu0 %3984, %v3864
        %v3986 = vpop.permute.xlu0 %3985
        %3987 = vset.pattern.permute.xlu0 0
        %3988 = vperm.xlu0 %3987, %v3865
        %v3989 = vpop.permute.xlu0 %3988
        %3990 = vset.pattern.permute.xlu0 0
        %3991 = vperm.xlu0 %3990, %v3866
        %v3992 = vpop.permute.xlu0 %3991
        %3993 = vset.pattern.permute.xlu0 0
        %3994 = vperm.xlu0 %3993, %v3867
        %v3995 = vpop.permute.xlu0 %3994
        %v3996 = vlaneseq
        %v3997 = vshrl.u32 %v3996, 7
        %v3998 = vsub.s32 %v1306, %v3997
        %v3999 = vrot.slane %v3902, %v3998
        %v4000 = vlaneseq
        %v4001 = vshrl.u32 %v4000, 7
        %v4002 = vsub.s32 %v1311, %v4001
        %v4003 = vrot.slane %v3905, %v4002
        %v4004 = vsel %vm1316, %v4003, %v3999
        %v4005 = vlaneseq
        %v4006 = vshrl.u32 %v4005, 7
        %v4007 = vsub.s32 %v1306, %v4006
        %v4008 = vrot.slane %v3908, %v4007
        %v4009 = vlaneseq
        %v4010 = vshrl.u32 %v4009, 7
        %v4011 = vsub.s32 %v1311, %v4010
        %v4012 = vrot.slane %v3911, %v4011
        %v4013 = vsel %vm1316, %v4012, %v4008
        %v4014 = vlaneseq
        %v4015 = vshrl.u32 %v4014, 7
        %v4016 = vsub.s32 %v1306, %v4015
        %v4017 = vrot.slane %v3914, %v4016
        %v4018 = vlaneseq
        %v4019 = vshrl.u32 %v4018, 7
        %v4020 = vsub.s32 %v1311, %v4019
        %v4021 = vrot.slane %v3917, %v4020
        %v4022 = vsel %vm1316, %v4021, %v4017
        %v4023 = vlaneseq
        %v4024 = vshrl.u32 %v4023, 7
        %v4025 = vsub.s32 %v1306, %v4024
        %v4026 = vrot.slane %v3920, %v4025
        %v4027 = vlaneseq
        %v4028 = vshrl.u32 %v4027, 7
        %v4029 = vsub.s32 %v1311, %v4028
        %v4030 = vrot.slane %v3923, %v4029
        %v4031 = vsel %vm1316, %v4030, %v4026
        %v4032 = vlaneseq
        %v4033 = vshrl.u32 %v4032, 7
        %v4034 = vsub.s32 %v1306, %v4033
        %v4035 = vrot.slane %v3926, %v4034
        %v4036 = vlaneseq
        %v4037 = vshrl.u32 %v4036, 7
        %v4038 = vsub.s32 %v1311, %v4037
        %v4039 = vrot.slane %v3929, %v4038
        %v4040 = vsel %vm1316, %v4039, %v4035
        %v4041 = vlaneseq
        %v4042 = vshrl.u32 %v4041, 7
        %v4043 = vsub.s32 %v1306, %v4042
        %v4044 = vrot.slane %v3932, %v4043
        %v4045 = vlaneseq
        %v4046 = vshrl.u32 %v4045, 7
        %v4047 = vsub.s32 %v1311, %v4046
        %v4048 = vrot.slane %v3935, %v4047
        %v4049 = vsel %vm1316, %v4048, %v4044
        %v4050 = vlaneseq
        %v4051 = vshrl.u32 %v4050, 7
        %v4052 = vsub.s32 %v1306, %v4051
        %v4053 = vrot.slane %v3938, %v4052
        %v4054 = vlaneseq
        %v4055 = vshrl.u32 %v4054, 7
        %v4056 = vsub.s32 %v1311, %v4055
        %v4057 = vrot.slane %v3941, %v4056
        %v4058 = vsel %vm1316, %v4057, %v4053
        %v4059 = vlaneseq
        %v4060 = vshrl.u32 %v4059, 7
        %v4061 = vsub.s32 %v1306, %v4060
        %v4062 = vrot.slane %v3944, %v4061
        %v4063 = vlaneseq
        %v4064 = vshrl.u32 %v4063, 7
        %v4065 = vsub.s32 %v1311, %v4064
        %v4066 = vrot.slane %v3947, %v4065
        %v4067 = vsel %vm1316, %v4066, %v4062
        %v4068 = vlaneseq
        %v4069 = vshrl.u32 %v4068, 7
        %v4070 = vsub.s32 %v1306, %v4069
        %v4071 = vrot.slane %v3950, %v4070
        %v4072 = vlaneseq
        %v4073 = vshrl.u32 %v4072, 7
        %v4074 = vsub.s32 %v1311, %v4073
        %v4075 = vrot.slane %v3953, %v4074
        %v4076 = vsel %vm1316, %v4075, %v4071
        %v4077 = vlaneseq
        %v4078 = vshrl.u32 %v4077, 7
        %v4079 = vsub.s32 %v1306, %v4078
        %v4080 = vrot.slane %v3956, %v4079
        %v4081 = vlaneseq
        %v4082 = vshrl.u32 %v4081, 7
        %v4083 = vsub.s32 %v1311, %v4082
        %v4084 = vrot.slane %v3959, %v4083
        %v4085 = vsel %vm1316, %v4084, %v4080
        %v4086 = vlaneseq
        %v4087 = vshrl.u32 %v4086, 7
        %v4088 = vsub.s32 %v1306, %v4087
        %v4089 = vrot.slane %v3962, %v4088
        %v4090 = vlaneseq
        %v4091 = vshrl.u32 %v4090, 7
        %v4092 = vsub.s32 %v1311, %v4091
        %v4093 = vrot.slane %v3965, %v4092
        %v4094 = vsel %vm1316, %v4093, %v4089
        %v4095 = vlaneseq
        %v4096 = vshrl.u32 %v4095, 7
        %v4097 = vsub.s32 %v1306, %v4096
        %v4098 = vrot.slane %v3968, %v4097
        %v4099 = vlaneseq
        %v4100 = vshrl.u32 %v4099, 7
        %v4101 = vsub.s32 %v1311, %v4100
        %v4102 = vrot.slane %v3971, %v4101
        %v4103 = vsel %vm1316, %v4102, %v4098
        %v4104 = vlaneseq
        %v4105 = vshrl.u32 %v4104, 7
        %v4106 = vsub.s32 %v1306, %v4105
        %v4107 = vrot.slane %v3974, %v4106
        %v4108 = vlaneseq
        %v4109 = vshrl.u32 %v4108, 7
        %v4110 = vsub.s32 %v1311, %v4109
        %v4111 = vrot.slane %v3977, %v4110
        %v4112 = vsel %vm1316, %v4111, %v4107
        %v4113 = vlaneseq
        %v4114 = vshrl.u32 %v4113, 7
        %v4115 = vsub.s32 %v1306, %v4114
        %v4116 = vrot.slane %v3980, %v4115
        %v4117 = vlaneseq
        %v4118 = vshrl.u32 %v4117, 7
        %v4119 = vsub.s32 %v1311, %v4118
        %v4120 = vrot.slane %v3983, %v4119
        %v4121 = vsel %vm1316, %v4120, %v4116
        %v4122 = vlaneseq
        %v4123 = vshrl.u32 %v4122, 7
        %v4124 = vsub.s32 %v1306, %v4123
        %v4125 = vrot.slane %v3986, %v4124
        %v4126 = vlaneseq
        %v4127 = vshrl.u32 %v4126, 7
        %v4128 = vsub.s32 %v1311, %v4127
        %v4129 = vrot.slane %v3989, %v4128
        %v4130 = vsel %vm1316, %v4129, %v4125
        %v4131 = vlaneseq
        %v4132 = vshrl.u32 %v4131, 7
        %v4133 = vsub.s32 %v1306, %v4132
        %v4134 = vrot.slane %v3992, %v4133
        %v4135 = vlaneseq
        %v4136 = vshrl.u32 %v4135, 7
        %v4137 = vsub.s32 %v1311, %v4136
        %v4138 = vrot.slane %v3995, %v4137
        %v4139 = vsel %vm1316, %v4138, %v4134
        %v4140 = vsel %vm1453, %v4013, %v4004
        %v4141 = vsel %vm1455, %v4022, %v4140
        %v4142 = vsel %vm1457, %v4031, %v4141
        %v4143 = vsel %vm1459, %v4040, %v4142
        %v4144 = vsel %vm1461, %v4049, %v4143
        %v4145 = vsel %vm1463, %v4058, %v4144
        %v4146 = vsel %vm1465, %v4067, %v4145
        %v4147 = vsel %vm1453, %v4085, %v4076
        %v4148 = vsel %vm1455, %v4094, %v4147
        %v4149 = vsel %vm1457, %v4103, %v4148
        %v4150 = vsel %vm1459, %v4112, %v4149
        %v4151 = vsel %vm1461, %v4121, %v4150
        %v4152 = vsel %vm1463, %v4130, %v4151
        %v4153 = vsel %vm1465, %v4139, %v4152
        %v4156 = vsel %vm922, %v4146, 0.0
        %4157 = vadd.xlane.f32.xlu0 %v4156
        %v4158 = vpop.xlane.xlu0 %4157
        %v4159 = vsel %vm922, %v4153, 0.0
        %4160 = vadd.xlane.f32.xlu0 %v4159
        %v4161 = vpop.xlane.xlu0 %4160
        %v4164 = vlaneseq
        %v4165 = vshrl.u32 %v4164, 7
        %v4166 = vsub.s32 0, %v4165
        %v4167 = vrot.slane %v4158, %v4166
        %v4168 = vlaneseq
        %v4169 = vshrl.u32 %v4168, 7
        %v4170 = vsub.s32 1, %v4169
        %v4171 = vrot.slane %v4158, %v4170
        %v4172 = vlaneseq
        %v4173 = vshrl.u32 %v4172, 7
        %v4174 = vsub.s32 2, %v4173
        %v4175 = vrot.slane %v4158, %v4174
        %v4176 = vlaneseq
        %v4177 = vshrl.u32 %v4176, 7
        %v4178 = vsub.s32 3, %v4177
        %v4179 = vrot.slane %v4158, %v4178
        %v4180 = vlaneseq
        %v4181 = vshrl.u32 %v4180, 7
        %v4182 = vsub.s32 4, %v4181
        %v4183 = vrot.slane %v4158, %v4182
        %v4184 = vlaneseq
        %v4185 = vshrl.u32 %v4184, 7
        %v4186 = vsub.s32 5, %v4185
        %v4187 = vrot.slane %v4158, %v4186
        %v4188 = vlaneseq
        %v4189 = vshrl.u32 %v4188, 7
        %v4190 = vsub.s32 6, %v4189
        %v4191 = vrot.slane %v4158, %v4190
        %v4192 = vlaneseq
        %v4193 = vshrl.u32 %v4192, 7
        %v4194 = vsub.s32 7, %v4193
        %v4195 = vrot.slane %v4158, %v4194
        %v4196 = vlaneseq
        %v4197 = vshrl.u32 %v4196, 7
        %v4198 = vsub.s32 0, %v4197
        %v4199 = vrot.slane %v4161, %v4198
        %v4200 = vlaneseq
        %v4201 = vshrl.u32 %v4200, 7
        %v4202 = vsub.s32 1, %v4201
        %v4203 = vrot.slane %v4161, %v4202
        %v4204 = vlaneseq
        %v4205 = vshrl.u32 %v4204, 7
        %v4206 = vsub.s32 2, %v4205
        %v4207 = vrot.slane %v4161, %v4206
        %v4208 = vlaneseq
        %v4209 = vshrl.u32 %v4208, 7
        %v4210 = vsub.s32 3, %v4209
        %v4211 = vrot.slane %v4161, %v4210
        %v4212 = vlaneseq
        %v4213 = vshrl.u32 %v4212, 7
        %v4214 = vsub.s32 4, %v4213
        %v4215 = vrot.slane %v4161, %v4214
        %v4216 = vlaneseq
        %v4217 = vshrl.u32 %v4216, 7
        %v4218 = vsub.s32 5, %v4217
        %v4219 = vrot.slane %v4161, %v4218
        %v4220 = vlaneseq
        %v4221 = vshrl.u32 %v4220, 7
        %v4222 = vsub.s32 6, %v4221
        %v4223 = vrot.slane %v4161, %v4222
        %v4224 = vlaneseq
        %v4225 = vshrl.u32 %v4224, 7
        %v4226 = vsub.s32 7, %v4225
        %v4227 = vrot.slane %v4161, %v4226
        %v4244 = vrcp.pop %v4167
        %v4245 = vmul.f32 %v3836, %v4244
        %v4246 = vmul.f32 %v3837, %v4244
        %v4247 = vrcp.pop %v4171
        %v4248 = vmul.f32 %v3838, %v4247
        %v4249 = vmul.f32 %v3839, %v4247
        %v4250 = vrcp.pop %v4175
        %v4251 = vmul.f32 %v3840, %v4250
        %v4252 = vmul.f32 %v3841, %v4250
        %v4253 = vrcp.pop %v4179
        %v4254 = vmul.f32 %v3842, %v4253
        %v4255 = vmul.f32 %v3843, %v4253
        %v4256 = vrcp.pop %v4183
        %v4257 = vmul.f32 %v3844, %v4256
        %v4258 = vmul.f32 %v3845, %v4256
        %v4259 = vrcp.pop %v4187
        %v4260 = vmul.f32 %v3846, %v4259
        %v4261 = vmul.f32 %v3847, %v4259
        %v4262 = vrcp.pop %v4191
        %v4263 = vmul.f32 %v3848, %v4262
        %v4264 = vmul.f32 %v3849, %v4262
        %v4265 = vrcp.pop %v4195
        %v4266 = vmul.f32 %v3850, %v4265
        %v4267 = vmul.f32 %v3851, %v4265
        %v4268 = vrcp.pop %v4199
        %v4269 = vmul.f32 %v3852, %v4268
        %v4270 = vmul.f32 %v3853, %v4268
        %v4271 = vrcp.pop %v4203
        %v4272 = vmul.f32 %v3854, %v4271
        %v4273 = vmul.f32 %v3855, %v4271
        %v4274 = vrcp.pop %v4207
        %v4275 = vmul.f32 %v3856, %v4274
        %v4276 = vmul.f32 %v3857, %v4274
        %v4277 = vrcp.pop %v4211
        %v4278 = vmul.f32 %v3858, %v4277
        %v4279 = vmul.f32 %v3859, %v4277
        %v4280 = vrcp.pop %v4215
        %v4281 = vmul.f32 %v3860, %v4280
        %v4282 = vmul.f32 %v3861, %v4280
        %v4283 = vrcp.pop %v4219
        %v4284 = vmul.f32 %v3862, %v4283
        %v4285 = vmul.f32 %v3863, %v4283
        %v4286 = vrcp.pop %v4223
        %v4287 = vmul.f32 %v3864, %v4286
        %v4288 = vmul.f32 %v3865, %v4286
        %v4289 = vrcp.pop %v4227
        %v4290 = vmul.f32 %v3866, %v4289
        %v4291 = vmul.f32 %v3867, %v4289
        %4324 = vset.pattern.permute.xlu0 0
        %4325 = vperm.xlu0 %4324, %v4245
        %v4326 = vpop.permute.xlu0 %4325
        %4327 = vset.pattern.permute.xlu0 0
        %4328 = vperm.xlu0 %4327, %v4246
        %v4329 = vpop.permute.xlu0 %4328
        %4330 = vset.pattern.permute.xlu0 0
        %4331 = vperm.xlu0 %4330, %v4248
        %v4332 = vpop.permute.xlu0 %4331
        %4333 = vset.pattern.permute.xlu0 0
        %4334 = vperm.xlu0 %4333, %v4249
        %v4335 = vpop.permute.xlu0 %4334
        %4336 = vset.pattern.permute.xlu0 0
        %4337 = vperm.xlu0 %4336, %v4251
        %v4338 = vpop.permute.xlu0 %4337
        %4339 = vset.pattern.permute.xlu0 0
        %4340 = vperm.xlu0 %4339, %v4252
        %v4341 = vpop.permute.xlu0 %4340
        %4342 = vset.pattern.permute.xlu0 0
        %4343 = vperm.xlu0 %4342, %v4254
        %v4344 = vpop.permute.xlu0 %4343
        %4345 = vset.pattern.permute.xlu0 0
        %4346 = vperm.xlu0 %4345, %v4255
        %v4347 = vpop.permute.xlu0 %4346
        %4348 = vset.pattern.permute.xlu0 0
        %4349 = vperm.xlu0 %4348, %v4257
        %v4350 = vpop.permute.xlu0 %4349
        %4351 = vset.pattern.permute.xlu0 0
        %4352 = vperm.xlu0 %4351, %v4258
        %v4353 = vpop.permute.xlu0 %4352
        %4354 = vset.pattern.permute.xlu0 0
        %4355 = vperm.xlu0 %4354, %v4260
        %v4356 = vpop.permute.xlu0 %4355
        %4357 = vset.pattern.permute.xlu0 0
        %4358 = vperm.xlu0 %4357, %v4261
        %v4359 = vpop.permute.xlu0 %4358
        %4360 = vset.pattern.permute.xlu0 0
        %4361 = vperm.xlu0 %4360, %v4263
        %v4362 = vpop.permute.xlu0 %4361
        %4363 = vset.pattern.permute.xlu0 0
        %4364 = vperm.xlu0 %4363, %v4264
        %v4365 = vpop.permute.xlu0 %4364
        %4366 = vset.pattern.permute.xlu0 0
        %4367 = vperm.xlu0 %4366, %v4266
        %v4368 = vpop.permute.xlu0 %4367
        %4369 = vset.pattern.permute.xlu0 0
        %4370 = vperm.xlu0 %4369, %v4267
        %v4371 = vpop.permute.xlu0 %4370
        %4372 = vset.pattern.permute.xlu0 0
        %4373 = vperm.xlu0 %4372, %v4269
        %v4374 = vpop.permute.xlu0 %4373
        %4375 = vset.pattern.permute.xlu0 0
        %4376 = vperm.xlu0 %4375, %v4270
        %v4377 = vpop.permute.xlu0 %4376
        %4378 = vset.pattern.permute.xlu0 0
        %4379 = vperm.xlu0 %4378, %v4272
        %v4380 = vpop.permute.xlu0 %4379
        %4381 = vset.pattern.permute.xlu0 0
        %4382 = vperm.xlu0 %4381, %v4273
        %v4383 = vpop.permute.xlu0 %4382
        %4384 = vset.pattern.permute.xlu0 0
        %4385 = vperm.xlu0 %4384, %v4275
        %v4386 = vpop.permute.xlu0 %4385
        %4387 = vset.pattern.permute.xlu0 0
        %4388 = vperm.xlu0 %4387, %v4276
        %v4389 = vpop.permute.xlu0 %4388
        %4390 = vset.pattern.permute.xlu0 0
        %4391 = vperm.xlu0 %4390, %v4278
        %v4392 = vpop.permute.xlu0 %4391
        %4393 = vset.pattern.permute.xlu0 0
        %4394 = vperm.xlu0 %4393, %v4279
        %v4395 = vpop.permute.xlu0 %4394
        %4396 = vset.pattern.permute.xlu0 0
        %4397 = vperm.xlu0 %4396, %v4281
        %v4398 = vpop.permute.xlu0 %4397
        %4399 = vset.pattern.permute.xlu0 0
        %4400 = vperm.xlu0 %4399, %v4282
        %v4401 = vpop.permute.xlu0 %4400
        %4402 = vset.pattern.permute.xlu0 0
        %4403 = vperm.xlu0 %4402, %v4284
        %v4404 = vpop.permute.xlu0 %4403
        %4405 = vset.pattern.permute.xlu0 0
        %4406 = vperm.xlu0 %4405, %v4285
        %v4407 = vpop.permute.xlu0 %4406
        %4408 = vset.pattern.permute.xlu0 0
        %4409 = vperm.xlu0 %4408, %v4287
        %v4410 = vpop.permute.xlu0 %4409
        %4411 = vset.pattern.permute.xlu0 0
        %4412 = vperm.xlu0 %4411, %v4288
        %v4413 = vpop.permute.xlu0 %4412
        %4414 = vset.pattern.permute.xlu0 0
        %4415 = vperm.xlu0 %4414, %v4290
        %v4416 = vpop.permute.xlu0 %4415
        %4417 = vset.pattern.permute.xlu0 0
        %4418 = vperm.xlu0 %4417, %v4291
        %v4419 = vpop.permute.xlu0 %4418
        %v4420 = vlaneseq
        %v4421 = vshrl.u32 %v4420, 7
        %v4422 = vsub.s32 %v1306, %v4421
        %v4423 = vrot.slane %v4326, %v4422
        %v4424 = vlaneseq
        %v4425 = vshrl.u32 %v4424, 7
        %v4426 = vsub.s32 %v1311, %v4425
        %v4427 = vrot.slane %v4329, %v4426
        %v4428 = vsel %vm1316, %v4427, %v4423
        %v4429 = vlaneseq
        %v4430 = vshrl.u32 %v4429, 7
        %v4431 = vsub.s32 %v1306, %v4430
        %v4432 = vrot.slane %v4332, %v4431
        %v4433 = vlaneseq
        %v4434 = vshrl.u32 %v4433, 7
        %v4435 = vsub.s32 %v1311, %v4434
        %v4436 = vrot.slane %v4335, %v4435
        %v4437 = vsel %vm1316, %v4436, %v4432
        %v4438 = vlaneseq
        %v4439 = vshrl.u32 %v4438, 7
        %v4440 = vsub.s32 %v1306, %v4439
        %v4441 = vrot.slane %v4338, %v4440
        %v4442 = vlaneseq
        %v4443 = vshrl.u32 %v4442, 7
        %v4444 = vsub.s32 %v1311, %v4443
        %v4445 = vrot.slane %v4341, %v4444
        %v4446 = vsel %vm1316, %v4445, %v4441
        %v4447 = vlaneseq
        %v4448 = vshrl.u32 %v4447, 7
        %v4449 = vsub.s32 %v1306, %v4448
        %v4450 = vrot.slane %v4344, %v4449
        %v4451 = vlaneseq
        %v4452 = vshrl.u32 %v4451, 7
        %v4453 = vsub.s32 %v1311, %v4452
        %v4454 = vrot.slane %v4347, %v4453
        %v4455 = vsel %vm1316, %v4454, %v4450
        %v4456 = vlaneseq
        %v4457 = vshrl.u32 %v4456, 7
        %v4458 = vsub.s32 %v1306, %v4457
        %v4459 = vrot.slane %v4350, %v4458
        %v4460 = vlaneseq
        %v4461 = vshrl.u32 %v4460, 7
        %v4462 = vsub.s32 %v1311, %v4461
        %v4463 = vrot.slane %v4353, %v4462
        %v4464 = vsel %vm1316, %v4463, %v4459
        %v4465 = vlaneseq
        %v4466 = vshrl.u32 %v4465, 7
        %v4467 = vsub.s32 %v1306, %v4466
        %v4468 = vrot.slane %v4356, %v4467
        %v4469 = vlaneseq
        %v4470 = vshrl.u32 %v4469, 7
        %v4471 = vsub.s32 %v1311, %v4470
        %v4472 = vrot.slane %v4359, %v4471
        %v4473 = vsel %vm1316, %v4472, %v4468
        %v4474 = vlaneseq
        %v4475 = vshrl.u32 %v4474, 7
        %v4476 = vsub.s32 %v1306, %v4475
        %v4477 = vrot.slane %v4362, %v4476
        %v4478 = vlaneseq
        %v4479 = vshrl.u32 %v4478, 7
        %v4480 = vsub.s32 %v1311, %v4479
        %v4481 = vrot.slane %v4365, %v4480
        %v4482 = vsel %vm1316, %v4481, %v4477
        %v4483 = vlaneseq
        %v4484 = vshrl.u32 %v4483, 7
        %v4485 = vsub.s32 %v1306, %v4484
        %v4486 = vrot.slane %v4368, %v4485
        %v4487 = vlaneseq
        %v4488 = vshrl.u32 %v4487, 7
        %v4489 = vsub.s32 %v1311, %v4488
        %v4490 = vrot.slane %v4371, %v4489
        %v4491 = vsel %vm1316, %v4490, %v4486
        %v4492 = vlaneseq
        %v4493 = vshrl.u32 %v4492, 7
        %v4494 = vsub.s32 %v1306, %v4493
        %v4495 = vrot.slane %v4374, %v4494
        %v4496 = vlaneseq
        %v4497 = vshrl.u32 %v4496, 7
        %v4498 = vsub.s32 %v1311, %v4497
        %v4499 = vrot.slane %v4377, %v4498
        %v4500 = vsel %vm1316, %v4499, %v4495
        %v4501 = vlaneseq
        %v4502 = vshrl.u32 %v4501, 7
        %v4503 = vsub.s32 %v1306, %v4502
        %v4504 = vrot.slane %v4380, %v4503
        %v4505 = vlaneseq
        %v4506 = vshrl.u32 %v4505, 7
        %v4507 = vsub.s32 %v1311, %v4506
        %v4508 = vrot.slane %v4383, %v4507
        %v4509 = vsel %vm1316, %v4508, %v4504
        %v4510 = vlaneseq
        %v4511 = vshrl.u32 %v4510, 7
        %v4512 = vsub.s32 %v1306, %v4511
        %v4513 = vrot.slane %v4386, %v4512
        %v4514 = vlaneseq
        %v4515 = vshrl.u32 %v4514, 7
        %v4516 = vsub.s32 %v1311, %v4515
        %v4517 = vrot.slane %v4389, %v4516
        %v4518 = vsel %vm1316, %v4517, %v4513
        %v4519 = vlaneseq
        %v4520 = vshrl.u32 %v4519, 7
        %v4521 = vsub.s32 %v1306, %v4520
        %v4522 = vrot.slane %v4392, %v4521
        %v4523 = vlaneseq
        %v4524 = vshrl.u32 %v4523, 7
        %v4525 = vsub.s32 %v1311, %v4524
        %v4526 = vrot.slane %v4395, %v4525
        %v4527 = vsel %vm1316, %v4526, %v4522
        %v4528 = vlaneseq
        %v4529 = vshrl.u32 %v4528, 7
        %v4530 = vsub.s32 %v1306, %v4529
        %v4531 = vrot.slane %v4398, %v4530
        %v4532 = vlaneseq
        %v4533 = vshrl.u32 %v4532, 7
        %v4534 = vsub.s32 %v1311, %v4533
        %v4535 = vrot.slane %v4401, %v4534
        %v4536 = vsel %vm1316, %v4535, %v4531
        %v4537 = vlaneseq
        %v4538 = vshrl.u32 %v4537, 7
        %v4539 = vsub.s32 %v1306, %v4538
        %v4540 = vrot.slane %v4404, %v4539
        %v4541 = vlaneseq
        %v4542 = vshrl.u32 %v4541, 7
        %v4543 = vsub.s32 %v1311, %v4542
        %v4544 = vrot.slane %v4407, %v4543
        %v4545 = vsel %vm1316, %v4544, %v4540
        %v4546 = vlaneseq
        %v4547 = vshrl.u32 %v4546, 7
        %v4548 = vsub.s32 %v1306, %v4547
        %v4549 = vrot.slane %v4410, %v4548
        %v4550 = vlaneseq
        %v4551 = vshrl.u32 %v4550, 7
        %v4552 = vsub.s32 %v1311, %v4551
        %v4553 = vrot.slane %v4413, %v4552
        %v4554 = vsel %vm1316, %v4553, %v4549
        %v4555 = vlaneseq
        %v4556 = vshrl.u32 %v4555, 7
        %v4557 = vsub.s32 %v1306, %v4556
        %v4558 = vrot.slane %v4416, %v4557
        %v4559 = vlaneseq
        %v4560 = vshrl.u32 %v4559, 7
        %v4561 = vsub.s32 %v1311, %v4560
        %v4562 = vrot.slane %v4419, %v4561
        %v4563 = vsel %vm1316, %v4562, %v4558
        %v4564 = vsel %vm1453, %v4437, %v4428
        %v4565 = vsel %vm1455, %v4446, %v4564
        %v4566 = vsel %vm1457, %v4455, %v4565
        %v4567 = vsel %vm1459, %v4464, %v4566
        %v4568 = vsel %vm1461, %v4473, %v4567
        %v4569 = vsel %vm1463, %v4482, %v4568
        %v4570 = vsel %vm1465, %v4491, %v4569
        %v4571 = vsel %vm1453, %v4509, %v4500
        %v4572 = vsel %vm1455, %v4518, %v4571
        %v4573 = vsel %vm1457, %v4527, %v4572
        %v4574 = vsel %vm1459, %v4536, %v4573
        %v4575 = vsel %vm1461, %v4545, %v4574
        %v4576 = vsel %vm1463, %v4554, %v4575
        %v4577 = vsel %vm1465, %v4563, %v4576
        %4578 = vrot.lane.b32.xlu0 %v627, 64
        %v4579 = vpop.permute.xlu0 %4578
        %4580 = vrot.lane.b32.xlu0 %v630, 64
        %v4581 = vpop.permute.xlu0 %4580
        %v4584 = vsel %vm922, %v4570, 0
        %v4586 = vsel %vm922, %v4577, 0
        %4588 = vmatprep.subr.mxu0 0.0
        %4589 = vmatpush1.msra.mxu0 0.0
        %4590 = vmatprep.subr.mxu0 0.0
        %4591 = vmatpush1.msra.mxu0 0.0
        %4592 = vmatprep.subr.mxu0 0.0
        %4593 = vmatpush1.msra.mxu0 0.0
        %4594 = vmatprep.subr.mxu0 0.0
        %4595 = vmatpush1.msra.mxu0 0.0
        %4596 = vmatprep.subr.mxu0 0.0
        %4597 = vmatpush1.msra.mxu0 0.0
        %4598 = vmatprep.subr.mxu0 0.0
        %4599 = vmatpush1.msra.mxu0 0.0
        %4600 = vmatprep.subr.mxu0 0.0
        %4601 = vmatpush1.msra.mxu0 0.0
        %4602 = vmatprep.subr.mxu0 0.0
        %4603 = vmatpush1.msra.mxu0 0.0
        %4604 = vmatprep.subr.mxu0 0.0
        %4605 = vmatpush1.msra.mxu0 0.0
        %4606 = vmatprep.subr.mxu0 0.0
        %4607 = vmatpush1.msra.mxu0 0.0
        %4608 = vmatprep.subr.mxu0 0.0
        %4609 = vmatpush1.msra.mxu0 0.0
        %4610 = vmatprep.subr.mxu0 0.0
        %4611 = vmatpush1.msra.mxu0 0.0
        %4612 = vmatprep.subr.mxu0 0.0
        %4613 = vmatpush1.msra.mxu0 0.0
        %4614 = vmatprep.subr.mxu0 0.0
        %4615 = vmatpush1.msra.mxu0 0.0
        %4616 = vmatprep.subr.mxu0 0.0
        %4617 = vmatpush1.msra.mxu0 %v4581
        %4618 = vmatprep.subr.mxu0 0.0
        %4619 = vmatpush1.msra.mxu0 %v4579
        %4620 = vmatprep.subr.mxu0 0.0
        %4621 = vmatpush2.msra.mxu0 0.0
        %4622 = vmatprep.subr.mxu0 0.0
        %4623 = vmatpush2.msra.mxu0 0.0
        %4624 = vmatprep.subr.mxu0 0.0
        %4625 = vmatpush2.msra.mxu0 0.0
        %4626 = vmatprep.subr.mxu0 0.0
        %4627 = vmatpush2.msra.mxu0 0.0
        %4628 = vmatprep.subr.mxu0 0.0
        %4629 = vmatpush2.msra.mxu0 0.0
        %4630 = vmatprep.subr.mxu0 0.0
        %4631 = vmatpush2.msra.mxu0 0.0
        %4632 = vmatprep.subr.mxu0 0.0
        %4633 = vmatpush2.msra.mxu0 0.0
        %4634 = vmatprep.subr.mxu0 0.0
        %4635 = vmatpush2.msra.mxu0 0.0
        %4636 = vmatprep.subr.mxu0 0.0
        %4637 = vmatpush2.msra.mxu0 0.0
        %4638 = vmatprep.subr.mxu0 0.0
        %4639 = vmatpush2.msra.mxu0 0.0
        %4640 = vmatprep.subr.mxu0 0.0
        %4641 = vmatpush2.msra.mxu0 0.0
        %4642 = vmatprep.subr.mxu0 0.0
        %4643 = vmatpush2.msra.mxu0 0.0
        %4644 = vmatprep.subr.mxu0 0.0
        %4645 = vmatpush2.msra.mxu0 0.0
        %4646 = vmatprep.subr.mxu0 0.0
        %4647 = vmatpush2.msra.mxu0 0.0
        %4648 = vmatprep.subr.mxu0 0.0
        %4649 = vmatpush2.msra.mxu0 0.0
        %4650 = vmatprep.subr.mxu0 0.0
        %4651 = vmatpush2.msra.mxu0 0.0
        %4652 = vmatprep.mubr.f32.mxu0 0.0
        %4653 = vmatmul.mubr.f32.gmra.mxu0 %v4584
        %v4654 = vpop.f32.mrf.mxu0
        %v4655 = vadd.f32 0.0, %v4654
        %v4656 = vpop.f32.mrf.mxu0
        %4657 = vmatprep.mubr.f32.mxu0 0.0
        %4658 = vmatmul.mubr.f32.gmra.mxu0 %v4586
        %v4659 = vpop.f32.mrf.mxu0
        %v4660 = vadd.f32 0.0, %v4659
        %v4661 = vpop.f32.mrf.mxu0
        %4662 = vdwg.mxu0
        %s4663 = scalar_lea.vmem %s4, 3
        %v4664 = vld [vmem:[%s4663] sm:$0x1]
        %v4666 = vlaneseq
        %v4667 = vshrl.u32 %v4666, 7
        %v4668 = vsub.s32 0, %v4667
        %v4669 = vrot.slane %v4664, %v4668
        %v4671 = vmul.f32 %v339, %v4669
        %v4672 = vmul.f32 %v340, %v4669
        %v4673 = vmul.f32 %v341, %v4669
        %v4674 = vmul.f32 %v342, %v4669
        %v4675 = vmul.f32 %v343, %v4669
        %v4676 = vmul.f32 %v344, %v4669
        %v4677 = vmul.f32 %v345, %v4669
        %v4678 = vmul.f32 %v346, %v4669
        %v4679 = vmul.f32 %v347, %v4669
        %v4680 = vmul.f32 %v348, %v4669
        %v4681 = vmul.f32 %v349, %v4669
        %v4682 = vmul.f32 %v350, %v4669
        %v4683 = vmul.f32 %v351, %v4669
        %v4684 = vmul.f32 %v352, %v4669
        %v4685 = vmul.f32 %v353, %v4669
        %v4686 = vmul.f32 %v354, %v4669
        %v4687 = vmul.f32 %v355, %v4669
        %v4688 = vmul.f32 %v356, %v4669
        %v4689 = vmul.f32 %v357, %v4669
        %v4690 = vmul.f32 %v358, %v4669
        %v4691 = vmul.f32 %v359, %v4669
        %v4692 = vmul.f32 %v360, %v4669
        %v4693 = vmul.f32 %v361, %v4669
        %v4694 = vmul.f32 %v362, %v4669
        %v4695 = vmul.f32 %v363, %v4669
        %v4696 = vmul.f32 %v364, %v4669
        %v4697 = vmul.f32 %v365, %v4669
        %v4698 = vmul.f32 %v366, %v4669
        %v4699 = vmul.f32 %v367, %v4669
        %v4700 = vmul.f32 %v368, %v4669
        %v4701 = vmul.f32 %v369, %v4669
        %v4702 = vmul.f32 %v370, %v4669
        %v4703 = vsel %vm672, %v4671, 0.0
        %4704 = vadd.xlane.f32.xlu0 %v4703
        %v4705 = vpop.xlane.xlu0 %4704
        %v4706 = vsel %vm672, %v4672, 0.0
        %4707 = vadd.xlane.f32.xlu0 %v4706
        %v4708 = vpop.xlane.xlu0 %4707
        %v4709 = vsel %vm672, %v4673, 0.0
        %4710 = vadd.xlane.f32.xlu0 %v4709
        %v4711 = vpop.xlane.xlu0 %4710
        %v4712 = vsel %vm672, %v4674, 0.0
        %4713 = vadd.xlane.f32.xlu0 %v4712
        %v4714 = vpop.xlane.xlu0 %4713
        %v4715 = vsel %vm672, %v4675, 0.0
        %4716 = vadd.xlane.f32.xlu0 %v4715
        %v4717 = vpop.xlane.xlu0 %4716
        %v4718 = vsel %vm672, %v4676, 0.0
        %4719 = vadd.xlane.f32.xlu0 %v4718
        %v4720 = vpop.xlane.xlu0 %4719
        %v4721 = vsel %vm672, %v4677, 0.0
        %4722 = vadd.xlane.f32.xlu0 %v4721
        %v4723 = vpop.xlane.xlu0 %4722
        %v4724 = vsel %vm672, %v4678, 0.0
        %4725 = vadd.xlane.f32.xlu0 %v4724
        %v4726 = vpop.xlane.xlu0 %4725
        %v4727 = vsel %vm672, %v4679, 0.0
        %4728 = vadd.xlane.f32.xlu0 %v4727
        %v4729 = vpop.xlane.xlu0 %4728
        %v4730 = vsel %vm672, %v4680, 0.0
        %4731 = vadd.xlane.f32.xlu0 %v4730
        %v4732 = vpop.xlane.xlu0 %4731
        %v4733 = vsel %vm672, %v4681, 0.0
        %4734 = vadd.xlane.f32.xlu0 %v4733
        %v4735 = vpop.xlane.xlu0 %4734
        %v4736 = vsel %vm672, %v4682, 0.0
        %4737 = vadd.xlane.f32.xlu0 %v4736
        %v4738 = vpop.xlane.xlu0 %4737
        %v4739 = vsel %vm672, %v4683, 0.0
        %4740 = vadd.xlane.f32.xlu0 %v4739
        %v4741 = vpop.xlane.xlu0 %4740
        %v4742 = vsel %vm672, %v4684, 0.0
        %4743 = vadd.xlane.f32.xlu0 %v4742
        %v4744 = vpop.xlane.xlu0 %4743
        %v4745 = vsel %vm672, %v4685, 0.0
        %4746 = vadd.xlane.f32.xlu0 %v4745
        %v4747 = vpop.xlane.xlu0 %4746
        %v4748 = vsel %vm672, %v4686, 0.0
        %4749 = vadd.xlane.f32.xlu0 %v4748
        %v4750 = vpop.xlane.xlu0 %4749
        %v4751 = vsel %vm672, %v4687, 0.0
        %4752 = vadd.xlane.f32.xlu0 %v4751
        %v4753 = vpop.xlane.xlu0 %4752
        %v4754 = vsel %vm672, %v4688, 0.0
        %4755 = vadd.xlane.f32.xlu0 %v4754
        %v4756 = vpop.xlane.xlu0 %4755
        %v4757 = vsel %vm672, %v4689, 0.0
        %4758 = vadd.xlane.f32.xlu0 %v4757
        %v4759 = vpop.xlane.xlu0 %4758
        %v4760 = vsel %vm672, %v4690, 0.0
        %4761 = vadd.xlane.f32.xlu0 %v4760
        %v4762 = vpop.xlane.xlu0 %4761
        %v4763 = vsel %vm672, %v4691, 0.0
        %4764 = vadd.xlane.f32.xlu0 %v4763
        %v4765 = vpop.xlane.xlu0 %4764
        %v4766 = vsel %vm672, %v4692, 0.0
        %4767 = vadd.xlane.f32.xlu0 %v4766
        %v4768 = vpop.xlane.xlu0 %4767
        %v4769 = vsel %vm672, %v4693, 0.0
        %4770 = vadd.xlane.f32.xlu0 %v4769
        %v4771 = vpop.xlane.xlu0 %4770
        %v4772 = vsel %vm672, %v4694, 0.0
        %4773 = vadd.xlane.f32.xlu0 %v4772
        %v4774 = vpop.xlane.xlu0 %4773
        %v4775 = vsel %vm672, %v4695, 0.0
        %4776 = vadd.xlane.f32.xlu0 %v4775
        %v4777 = vpop.xlane.xlu0 %4776
        %v4778 = vsel %vm672, %v4696, 0.0
        %4779 = vadd.xlane.f32.xlu0 %v4778
        %v4780 = vpop.xlane.xlu0 %4779
        %v4781 = vsel %vm672, %v4697, 0.0
        %4782 = vadd.xlane.f32.xlu0 %v4781
        %v4783 = vpop.xlane.xlu0 %4782
        %v4784 = vsel %vm672, %v4698, 0.0
        %4785 = vadd.xlane.f32.xlu0 %v4784
        %v4786 = vpop.xlane.xlu0 %4785
        %v4787 = vsel %vm672, %v4699, 0.0
        %4788 = vadd.xlane.f32.xlu0 %v4787
        %v4789 = vpop.xlane.xlu0 %4788
        %v4790 = vsel %vm672, %v4700, 0.0
        %4791 = vadd.xlane.f32.xlu0 %v4790
        %v4792 = vpop.xlane.xlu0 %4791
        %v4793 = vsel %vm672, %v4701, 0.0
        %4794 = vadd.xlane.f32.xlu0 %v4793
        %v4795 = vpop.xlane.xlu0 %4794
        %v4796 = vsel %vm672, %v4702, 0.0
        %4797 = vadd.xlane.f32.xlu0 %v4796
        %v4798 = vpop.xlane.xlu0 %4797
        %s4799 = sld [smem:[#allocation9 + $0x3]]
        %v4800 = vstv %s4799
        %v4801 = vadd.f32 %v4705, %v4800
        %v4802 = vadd.f32 %v4708, %v4800
        %v4803 = vadd.f32 %v4711, %v4800
        %v4804 = vadd.f32 %v4714, %v4800
        %v4805 = vadd.f32 %v4717, %v4800
        %v4806 = vadd.f32 %v4720, %v4800
        %v4807 = vadd.f32 %v4723, %v4800
        %v4808 = vadd.f32 %v4726, %v4800
        %v4809 = vadd.f32 %v4729, %v4800
        %v4810 = vadd.f32 %v4732, %v4800
        %v4811 = vadd.f32 %v4735, %v4800
        %v4812 = vadd.f32 %v4738, %v4800
        %v4813 = vadd.f32 %v4741, %v4800
        %v4814 = vadd.f32 %v4744, %v4800
        %v4815 = vadd.f32 %v4747, %v4800
        %v4816 = vadd.f32 %v4750, %v4800
        %v4817 = vadd.f32 %v4753, %v4800
        %v4818 = vadd.f32 %v4756, %v4800
        %v4819 = vadd.f32 %v4759, %v4800
        %v4820 = vadd.f32 %v4762, %v4800
        %v4821 = vadd.f32 %v4765, %v4800
        %v4822 = vadd.f32 %v4768, %v4800
        %v4823 = vadd.f32 %v4771, %v4800
        %v4824 = vadd.f32 %v4774, %v4800
        %v4825 = vadd.f32 %v4777, %v4800
        %v4826 = vadd.f32 %v4780, %v4800
        %v4827 = vadd.f32 %v4783, %v4800
        %v4828 = vadd.f32 %v4786, %v4800
        %v4829 = vadd.f32 %v4789, %v4800
        %v4830 = vadd.f32 %v4792, %v4800
        %v4831 = vadd.f32 %v4795, %v4800
        %v4832 = vadd.f32 %v4798, %v4800
        %v4833 = vmax.f32 %v4801, 1e-06
        %v4834 = vmax.f32 %v4802, 1e-06
        %v4835 = vmax.f32 %v4803, 1e-06
        %v4836 = vmax.f32 %v4804, 1e-06
        %v4837 = vmax.f32 %v4805, 1e-06
        %v4838 = vmax.f32 %v4806, 1e-06
        %v4839 = vmax.f32 %v4807, 1e-06
        %v4840 = vmax.f32 %v4808, 1e-06
        %v4841 = vmax.f32 %v4809, 1e-06
        %v4842 = vmax.f32 %v4810, 1e-06
        %v4843 = vmax.f32 %v4811, 1e-06
        %v4844 = vmax.f32 %v4812, 1e-06
        %v4845 = vmax.f32 %v4813, 1e-06
        %v4846 = vmax.f32 %v4814, 1e-06
        %v4847 = vmax.f32 %v4815, 1e-06
        %v4848 = vmax.f32 %v4816, 1e-06
        %v4849 = vmax.f32 %v4817, 1e-06
        %v4850 = vmax.f32 %v4818, 1e-06
        %v4851 = vmax.f32 %v4819, 1e-06
        %v4852 = vmax.f32 %v4820, 1e-06
        %v4853 = vmax.f32 %v4821, 1e-06
        %v4854 = vmax.f32 %v4822, 1e-06
        %v4855 = vmax.f32 %v4823, 1e-06
        %v4856 = vmax.f32 %v4824, 1e-06
        %v4857 = vmax.f32 %v4825, 1e-06
        %v4858 = vmax.f32 %v4826, 1e-06
        %v4859 = vmax.f32 %v4827, 1e-06
        %v4860 = vmax.f32 %v4828, 1e-06
        %v4861 = vmax.f32 %v4829, 1e-06
        %v4862 = vmax.f32 %v4830, 1e-06
        %v4863 = vmax.f32 %v4831, 1e-06
        %v4864 = vmax.f32 %v4832, 1e-06
        %4865 = vrot.lane.b32.xlu0 %v584, 32
        %v4866 = vpop.permute.xlu0 %4865
        %4867 = vrot.lane.b32.xlu0 %v588, 32
        %v4868 = vpop.permute.xlu0 %4867
        %4869 = vrot.lane.b32.xlu0 %v586, 32
        %v4870 = vpop.permute.xlu0 %4869
        %4871 = vrot.lane.b32.xlu0 %v590, 32
        %v4872 = vpop.permute.xlu0 %4871
        %v4873 = vsel %vm672, %v4866, 0
        %v4875 = vsel %vm672, %v4868, 0
        %v4877 = vsel %vm672, %v4870, 0
        %v4879 = vsel %vm672, %v4872, 0
        %4881 = vmatprep.subr.mxu0 0.0
        %4882 = vmatpush1.xpose.msra.mxu0 0.0
        %4883 = vmatprep.subr.mxu0 0.0
        %4884 = vmatpush1.xpose.msra.mxu0 0.0
        %4885 = vmatprep.subr.mxu0 0.0
        %4886 = vmatpush1.xpose.msra.mxu0 0.0
        %4887 = vmatprep.subr.mxu0 0.0
        %4888 = vmatpush1.xpose.msra.mxu0 0.0
        %4889 = vmatprep.subr.mxu0 0.0
        %4890 = vmatpush1.xpose.msra.mxu0 0.0
        %4891 = vmatprep.subr.mxu0 0.0
        %4892 = vmatpush1.xpose.msra.mxu0 0.0
        %4893 = vmatprep.subr.mxu0 0.0
        %4894 = vmatpush1.xpose.msra.mxu0 0.0
        %4895 = vmatprep.subr.mxu0 0.0
        %4896 = vmatpush1.xpose.msra.mxu0 0.0
        %4897 = vmatprep.subr.mxu0 0.0
        %4898 = vmatpush1.xpose.msra.mxu0 0.0
        %4899 = vmatprep.subr.mxu0 0.0
        %4900 = vmatpush1.xpose.msra.mxu0 0.0
        %4901 = vmatprep.subr.mxu0 0.0
        %4902 = vmatpush1.xpose.msra.mxu0 0.0
        %4903 = vmatprep.subr.mxu0 0.0
        %4904 = vmatpush1.xpose.msra.mxu0 0.0
        %4905 = vmatprep.subr.mxu0 0.0
        %4906 = vmatpush1.xpose.msra.mxu0 0.0
        %4907 = vmatprep.subr.mxu0 0.0
        %4908 = vmatpush1.xpose.msra.mxu0 0.0
        %4909 = vmatprep.subr.mxu0 0.0
        %4910 = vmatpush1.xpose.msra.mxu0 %v4879
        %4911 = vmatprep.subr.mxu0 0.0
        %4912 = vmatpush1.xpose.msra.mxu0 %v4877
        %4913 = vmatprep.subr.mxu0 0.0
        %4914 = vmatpush2.xpose.msra.mxu0 0.0
        %4915 = vmatprep.subr.mxu0 0.0
        %4916 = vmatpush2.xpose.msra.mxu0 0.0
        %4917 = vmatprep.subr.mxu0 0.0
        %4918 = vmatpush2.xpose.msra.mxu0 0.0
        %4919 = vmatprep.subr.mxu0 0.0
        %4920 = vmatpush2.xpose.msra.mxu0 0.0
        %4921 = vmatprep.subr.mxu0 0.0
        %4922 = vmatpush2.xpose.msra.mxu0 0.0
        %4923 = vmatprep.subr.mxu0 0.0
        %4924 = vmatpush2.xpose.msra.mxu0 0.0
        %4925 = vmatprep.subr.mxu0 0.0
        %4926 = vmatpush2.xpose.msra.mxu0 0.0
        %4927 = vmatprep.subr.mxu0 0.0
        %4928 = vmatpush2.xpose.msra.mxu0 0.0
        %4929 = vmatprep.subr.mxu0 0.0
        %4930 = vmatpush2.xpose.msra.mxu0 0.0
        %4931 = vmatprep.subr.mxu0 0.0
        %4932 = vmatpush2.xpose.msra.mxu0 0.0
        %4933 = vmatprep.subr.mxu0 0.0
        %4934 = vmatpush2.xpose.msra.mxu0 0.0
        %4935 = vmatprep.subr.mxu0 0.0
        %4936 = vmatpush2.xpose.msra.mxu0 0.0
        %4937 = vmatprep.subr.mxu0 0.0
        %4938 = vmatpush2.xpose.msra.mxu0 0.0
        %4939 = vmatprep.subr.mxu0 0.0
        %4940 = vmatpush2.xpose.msra.mxu0 0.0
        %4941 = vmatprep.subr.mxu0 0.0
        %4942 = vmatpush2.xpose.msra.mxu0 0.0
        %4943 = vmatprep.subr.mxu0 0.0
        %4944 = vmatpush2.xpose.msra.mxu0 0.0
        %4945 = vmatprep.mubr.f32.mxu0 0.0
        %4946 = vmatmul.mubr.f32.gmra.mxu0 %v4873
        %v4947 = vpop.f32.mrf.mxu0
        %v4948 = vadd.f32 0.0, %v4947
        %v4949 = vpop.f32.mrf.mxu0
        %4950 = vmatprep.mubr.f32.mxu0 0.0
        %4951 = vmatmul.mubr.f32.gmra.mxu0 %v4875
        %v4952 = vpop.f32.mrf.mxu0
        %v4953 = vadd.f32 0.0, %v4952
        %v4954 = vpop.f32.mrf.mxu0
        %4955 = vdwg.mxu0
        %v4956 = vsel %vm922, %v4948, -inf
        %4957 = vmax.xlane.f32.xlu0 %v4956
        %v4958 = vpop.xlane.xlu0 %4957
        %v4959 = vsel %vm922, %v4953, -inf
        %4960 = vmax.xlane.f32.xlu0 %v4959
        %v4961 = vpop.xlane.xlu0 %4960
        %v4962 = vsub.f32 %v4948, %v4958
        %v4963 = vsub.f32 %v4953, %v4961
        %v4964 = vmul.f32 %v4962, 1.442695
        %v4965 = vpow.pop %v4964
        %v4966 = vmul.f32 %v4963, 1.442695
        %v4967 = vpow.pop %v4966
        %v4970 = vlaneseq
        %v4971 = vshrl.u32 %v4970, 7
        %v4972 = vsub.s32 0, %v4971
        %v4973 = vrot.slane %v4965, %v4972
        %4975 = vbcast.lane.b32.xlu0 %v4973, 256
        %v4976 = vpop.permute.xlu0 %4975
        %s4978 = sor.u32 256, 8
        %4979 = vbcast.lane.b32.xlu0 %v4973, %s4978
        %v4980 = vpop.permute.xlu0 %4979
        %v4981 = vlaneseq
        %v4982 = vshrl.u32 %v4981, 7
        %v4983 = vsub.s32 1, %v4982
        %v4984 = vrot.slane %v4965, %v4983
        %4986 = vbcast.lane.b32.xlu0 %v4984, 256
        %v4987 = vpop.permute.xlu0 %4986
        %s4989 = sor.u32 256, 8
        %4990 = vbcast.lane.b32.xlu0 %v4984, %s4989
        %v4991 = vpop.permute.xlu0 %4990
        %v4992 = vlaneseq
        %v4993 = vshrl.u32 %v4992, 7
        %v4994 = vsub.s32 2, %v4993
        %v4995 = vrot.slane %v4965, %v4994
        %4997 = vbcast.lane.b32.xlu0 %v4995, 256
        %v4998 = vpop.permute.xlu0 %4997
        %s5000 = sor.u32 256, 8
        %5001 = vbcast.lane.b32.xlu0 %v4995, %s5000
        %v5002 = vpop.permute.xlu0 %5001
        %v5003 = vlaneseq
        %v5004 = vshrl.u32 %v5003, 7
        %v5005 = vsub.s32 3, %v5004
        %v5006 = vrot.slane %v4965, %v5005
        %5008 = vbcast.lane.b32.xlu0 %v5006, 256
        %v5009 = vpop.permute.xlu0 %5008
        %s5011 = sor.u32 256, 8
        %5012 = vbcast.lane.b32.xlu0 %v5006, %s5011
        %v5013 = vpop.permute.xlu0 %5012
        %v5014 = vlaneseq
        %v5015 = vshrl.u32 %v5014, 7
        %v5016 = vsub.s32 4, %v5015
        %v5017 = vrot.slane %v4965, %v5016
        %5019 = vbcast.lane.b32.xlu0 %v5017, 256
        %v5020 = vpop.permute.xlu0 %5019
        %s5022 = sor.u32 256, 8
        %5023 = vbcast.lane.b32.xlu0 %v5017, %s5022
        %v5024 = vpop.permute.xlu0 %5023
        %v5025 = vlaneseq
        %v5026 = vshrl.u32 %v5025, 7
        %v5027 = vsub.s32 5, %v5026
        %v5028 = vrot.slane %v4965, %v5027
        %5030 = vbcast.lane.b32.xlu0 %v5028, 256
        %v5031 = vpop.permute.xlu0 %5030
        %s5033 = sor.u32 256, 8
        %5034 = vbcast.lane.b32.xlu0 %v5028, %s5033
        %v5035 = vpop.permute.xlu0 %5034
        %v5036 = vlaneseq
        %v5037 = vshrl.u32 %v5036, 7
        %v5038 = vsub.s32 6, %v5037
        %v5039 = vrot.slane %v4965, %v5038
        %5041 = vbcast.lane.b32.xlu0 %v5039, 256
        %v5042 = vpop.permute.xlu0 %5041
        %s5044 = sor.u32 256, 8
        %5045 = vbcast.lane.b32.xlu0 %v5039, %s5044
        %v5046 = vpop.permute.xlu0 %5045
        %v5047 = vlaneseq
        %v5048 = vshrl.u32 %v5047, 7
        %v5049 = vsub.s32 7, %v5048
        %v5050 = vrot.slane %v4965, %v5049
        %5052 = vbcast.lane.b32.xlu0 %v5050, 256
        %v5053 = vpop.permute.xlu0 %5052
        %s5055 = sor.u32 256, 8
        %5056 = vbcast.lane.b32.xlu0 %v5050, %s5055
        %v5057 = vpop.permute.xlu0 %5056
        %v5058 = vlaneseq
        %v5059 = vshrl.u32 %v5058, 7
        %v5060 = vsub.s32 0, %v5059
        %v5061 = vrot.slane %v4967, %v5060
        %5063 = vbcast.lane.b32.xlu0 %v5061, 256
        %v5064 = vpop.permute.xlu0 %5063
        %s5066 = sor.u32 256, 8
        %5067 = vbcast.lane.b32.xlu0 %v5061, %s5066
        %v5068 = vpop.permute.xlu0 %5067
        %v5069 = vlaneseq
        %v5070 = vshrl.u32 %v5069, 7
        %v5071 = vsub.s32 1, %v5070
        %v5072 = vrot.slane %v4967, %v5071
        %5074 = vbcast.lane.b32.xlu0 %v5072, 256
        %v5075 = vpop.permute.xlu0 %5074
        %s5077 = sor.u32 256, 8
        %5078 = vbcast.lane.b32.xlu0 %v5072, %s5077
        %v5079 = vpop.permute.xlu0 %5078
        %v5080 = vlaneseq
        %v5081 = vshrl.u32 %v5080, 7
        %v5082 = vsub.s32 2, %v5081
        %v5083 = vrot.slane %v4967, %v5082
        %5085 = vbcast.lane.b32.xlu0 %v5083, 256
        %v5086 = vpop.permute.xlu0 %5085
        %s5088 = sor.u32 256, 8
        %5089 = vbcast.lane.b32.xlu0 %v5083, %s5088
        %v5090 = vpop.permute.xlu0 %5089
        %v5091 = vlaneseq
        %v5092 = vshrl.u32 %v5091, 7
        %v5093 = vsub.s32 3, %v5092
        %v5094 = vrot.slane %v4967, %v5093
        %5096 = vbcast.lane.b32.xlu0 %v5094, 256
        %v5097 = vpop.permute.xlu0 %5096
        %s5099 = sor.u32 256, 8
        %5100 = vbcast.lane.b32.xlu0 %v5094, %s5099
        %v5101 = vpop.permute.xlu0 %5100
        %v5102 = vlaneseq
        %v5103 = vshrl.u32 %v5102, 7
        %v5104 = vsub.s32 4, %v5103
        %v5105 = vrot.slane %v4967, %v5104
        %5107 = vbcast.lane.b32.xlu0 %v5105, 256
        %v5108 = vpop.permute.xlu0 %5107
        %s5110 = sor.u32 256, 8
        %5111 = vbcast.lane.b32.xlu0 %v5105, %s5110
        %v5112 = vpop.permute.xlu0 %5111
        %v5113 = vlaneseq
        %v5114 = vshrl.u32 %v5113, 7
        %v5115 = vsub.s32 5, %v5114
        %v5116 = vrot.slane %v4967, %v5115
        %5118 = vbcast.lane.b32.xlu0 %v5116, 256
        %v5119 = vpop.permute.xlu0 %5118
        %s5121 = sor.u32 256, 8
        %5122 = vbcast.lane.b32.xlu0 %v5116, %s5121
        %v5123 = vpop.permute.xlu0 %5122
        %v5124 = vlaneseq
        %v5125 = vshrl.u32 %v5124, 7
        %v5126 = vsub.s32 6, %v5125
        %v5127 = vrot.slane %v4967, %v5126
        %5129 = vbcast.lane.b32.xlu0 %v5127, 256
        %v5130 = vpop.permute.xlu0 %5129
        %s5132 = sor.u32 256, 8
        %5133 = vbcast.lane.b32.xlu0 %v5127, %s5132
        %v5134 = vpop.permute.xlu0 %5133
        %v5135 = vlaneseq
        %v5136 = vshrl.u32 %v5135, 7
        %v5137 = vsub.s32 7, %v5136
        %v5138 = vrot.slane %v4967, %v5137
        %5140 = vbcast.lane.b32.xlu0 %v5138, 256
        %v5141 = vpop.permute.xlu0 %5140
        %s5143 = sor.u32 256, 8
        %5144 = vbcast.lane.b32.xlu0 %v5138, %s5143
        %v5145 = vpop.permute.xlu0 %5144
        %v5178 = vmul.f32 %v4833, %v4976
        %v5179 = vmul.f32 %v4834, %v4980
        %v5180 = vmul.f32 %v4835, %v4987
        %v5181 = vmul.f32 %v4836, %v4991
        %v5182 = vmul.f32 %v4837, %v4998
        %v5183 = vmul.f32 %v4838, %v5002
        %v5184 = vmul.f32 %v4839, %v5009
        %v5185 = vmul.f32 %v4840, %v5013
        %v5186 = vmul.f32 %v4841, %v5020
        %v5187 = vmul.f32 %v4842, %v5024
        %v5188 = vmul.f32 %v4843, %v5031
        %v5189 = vmul.f32 %v4844, %v5035
        %v5190 = vmul.f32 %v4845, %v5042
        %v5191 = vmul.f32 %v4846, %v5046
        %v5192 = vmul.f32 %v4847, %v5053
        %v5193 = vmul.f32 %v4848, %v5057
        %v5194 = vmul.f32 %v4849, %v5064
        %v5195 = vmul.f32 %v4850, %v5068
        %v5196 = vmul.f32 %v4851, %v5075
        %v5197 = vmul.f32 %v4852, %v5079
        %v5198 = vmul.f32 %v4853, %v5086
        %v5199 = vmul.f32 %v4854, %v5090
        %v5200 = vmul.f32 %v4855, %v5097
        %v5201 = vmul.f32 %v4856, %v5101
        %v5202 = vmul.f32 %v4857, %v5108
        %v5203 = vmul.f32 %v4858, %v5112
        %v5204 = vmul.f32 %v4859, %v5119
        %v5205 = vmul.f32 %v4860, %v5123
        %v5206 = vmul.f32 %v4861, %v5130
        %v5207 = vmul.f32 %v4862, %v5134
        %v5208 = vmul.f32 %v4863, %v5141
        %v5209 = vmul.f32 %v4864, %v5145
        %5242 = vset.pattern.permute.xlu0 0
        %5243 = vperm.xlu0 %5242, %v5178
        %v5244 = vpop.permute.xlu0 %5243
        %5245 = vset.pattern.permute.xlu0 0
        %5246 = vperm.xlu0 %5245, %v5179
        %v5247 = vpop.permute.xlu0 %5246
        %5248 = vset.pattern.permute.xlu0 0
        %5249 = vperm.xlu0 %5248, %v5180
        %v5250 = vpop.permute.xlu0 %5249
        %5251 = vset.pattern.permute.xlu0 0
        %5252 = vperm.xlu0 %5251, %v5181
        %v5253 = vpop.permute.xlu0 %5252
        %5254 = vset.pattern.permute.xlu0 0
        %5255 = vperm.xlu0 %5254, %v5182
        %v5256 = vpop.permute.xlu0 %5255
        %5257 = vset.pattern.permute.xlu0 0
        %5258 = vperm.xlu0 %5257, %v5183
        %v5259 = vpop.permute.xlu0 %5258
        %5260 = vset.pattern.permute.xlu0 0
        %5261 = vperm.xlu0 %5260, %v5184
        %v5262 = vpop.permute.xlu0 %5261
        %5263 = vset.pattern.permute.xlu0 0
        %5264 = vperm.xlu0 %5263, %v5185
        %v5265 = vpop.permute.xlu0 %5264
        %5266 = vset.pattern.permute.xlu0 0
        %5267 = vperm.xlu0 %5266, %v5186
        %v5268 = vpop.permute.xlu0 %5267
        %5269 = vset.pattern.permute.xlu0 0
        %5270 = vperm.xlu0 %5269, %v5187
        %v5271 = vpop.permute.xlu0 %5270
        %5272 = vset.pattern.permute.xlu0 0
        %5273 = vperm.xlu0 %5272, %v5188
        %v5274 = vpop.permute.xlu0 %5273
        %5275 = vset.pattern.permute.xlu0 0
        %5276 = vperm.xlu0 %5275, %v5189
        %v5277 = vpop.permute.xlu0 %5276
        %5278 = vset.pattern.permute.xlu0 0
        %5279 = vperm.xlu0 %5278, %v5190
        %v5280 = vpop.permute.xlu0 %5279
        %5281 = vset.pattern.permute.xlu0 0
        %5282 = vperm.xlu0 %5281, %v5191
        %v5283 = vpop.permute.xlu0 %5282
        %5284 = vset.pattern.permute.xlu0 0
        %5285 = vperm.xlu0 %5284, %v5192
        %v5286 = vpop.permute.xlu0 %5285
        %5287 = vset.pattern.permute.xlu0 0
        %5288 = vperm.xlu0 %5287, %v5193
        %v5289 = vpop.permute.xlu0 %5288
        %5290 = vset.pattern.permute.xlu0 0
        %5291 = vperm.xlu0 %5290, %v5194
        %v5292 = vpop.permute.xlu0 %5291
        %5293 = vset.pattern.permute.xlu0 0
        %5294 = vperm.xlu0 %5293, %v5195
        %v5295 = vpop.permute.xlu0 %5294
        %5296 = vset.pattern.permute.xlu0 0
        %5297 = vperm.xlu0 %5296, %v5196
        %v5298 = vpop.permute.xlu0 %5297
        %5299 = vset.pattern.permute.xlu0 0
        %5300 = vperm.xlu0 %5299, %v5197
        %v5301 = vpop.permute.xlu0 %5300
        %5302 = vset.pattern.permute.xlu0 0
        %5303 = vperm.xlu0 %5302, %v5198
        %v5304 = vpop.permute.xlu0 %5303
        %5305 = vset.pattern.permute.xlu0 0
        %5306 = vperm.xlu0 %5305, %v5199
        %v5307 = vpop.permute.xlu0 %5306
        %5308 = vset.pattern.permute.xlu0 0
        %5309 = vperm.xlu0 %5308, %v5200
        %v5310 = vpop.permute.xlu0 %5309
        %5311 = vset.pattern.permute.xlu0 0
        %5312 = vperm.xlu0 %5311, %v5201
        %v5313 = vpop.permute.xlu0 %5312
        %5314 = vset.pattern.permute.xlu0 0
        %5315 = vperm.xlu0 %5314, %v5202
        %v5316 = vpop.permute.xlu0 %5315
        %5317 = vset.pattern.permute.xlu0 0
        %5318 = vperm.xlu0 %5317, %v5203
        %v5319 = vpop.permute.xlu0 %5318
        %5320 = vset.pattern.permute.xlu0 0
        %5321 = vperm.xlu0 %5320, %v5204
        %v5322 = vpop.permute.xlu0 %5321
        %5323 = vset.pattern.permute.xlu0 0
        %5324 = vperm.xlu0 %5323, %v5205
        %v5325 = vpop.permute.xlu0 %5324
        %5326 = vset.pattern.permute.xlu0 0
        %5327 = vperm.xlu0 %5326, %v5206
        %v5328 = vpop.permute.xlu0 %5327
        %5329 = vset.pattern.permute.xlu0 0
        %5330 = vperm.xlu0 %5329, %v5207
        %v5331 = vpop.permute.xlu0 %5330
        %5332 = vset.pattern.permute.xlu0 0
        %5333 = vperm.xlu0 %5332, %v5208
        %v5334 = vpop.permute.xlu0 %5333
        %5335 = vset.pattern.permute.xlu0 0
        %5336 = vperm.xlu0 %5335, %v5209
        %v5337 = vpop.permute.xlu0 %5336
        %v5338 = vlaneseq
        %v5339 = vshrl.u32 %v5338, 7
        %v5340 = vsub.s32 %v1306, %v5339
        %v5341 = vrot.slane %v5244, %v5340
        %v5342 = vlaneseq
        %v5343 = vshrl.u32 %v5342, 7
        %v5344 = vsub.s32 %v1311, %v5343
        %v5345 = vrot.slane %v5247, %v5344
        %v5346 = vsel %vm1316, %v5345, %v5341
        %v5347 = vlaneseq
        %v5348 = vshrl.u32 %v5347, 7
        %v5349 = vsub.s32 %v1306, %v5348
        %v5350 = vrot.slane %v5250, %v5349
        %v5351 = vlaneseq
        %v5352 = vshrl.u32 %v5351, 7
        %v5353 = vsub.s32 %v1311, %v5352
        %v5354 = vrot.slane %v5253, %v5353
        %v5355 = vsel %vm1316, %v5354, %v5350
        %v5356 = vlaneseq
        %v5357 = vshrl.u32 %v5356, 7
        %v5358 = vsub.s32 %v1306, %v5357
        %v5359 = vrot.slane %v5256, %v5358
        %v5360 = vlaneseq
        %v5361 = vshrl.u32 %v5360, 7
        %v5362 = vsub.s32 %v1311, %v5361
        %v5363 = vrot.slane %v5259, %v5362
        %v5364 = vsel %vm1316, %v5363, %v5359
        %v5365 = vlaneseq
        %v5366 = vshrl.u32 %v5365, 7
        %v5367 = vsub.s32 %v1306, %v5366
        %v5368 = vrot.slane %v5262, %v5367
        %v5369 = vlaneseq
        %v5370 = vshrl.u32 %v5369, 7
        %v5371 = vsub.s32 %v1311, %v5370
        %v5372 = vrot.slane %v5265, %v5371
        %v5373 = vsel %vm1316, %v5372, %v5368
        %v5374 = vlaneseq
        %v5375 = vshrl.u32 %v5374, 7
        %v5376 = vsub.s32 %v1306, %v5375
        %v5377 = vrot.slane %v5268, %v5376
        %v5378 = vlaneseq
        %v5379 = vshrl.u32 %v5378, 7
        %v5380 = vsub.s32 %v1311, %v5379
        %v5381 = vrot.slane %v5271, %v5380
        %v5382 = vsel %vm1316, %v5381, %v5377
        %v5383 = vlaneseq
        %v5384 = vshrl.u32 %v5383, 7
        %v5385 = vsub.s32 %v1306, %v5384
        %v5386 = vrot.slane %v5274, %v5385
        %v5387 = vlaneseq
        %v5388 = vshrl.u32 %v5387, 7
        %v5389 = vsub.s32 %v1311, %v5388
        %v5390 = vrot.slane %v5277, %v5389
        %v5391 = vsel %vm1316, %v5390, %v5386
        %v5392 = vlaneseq
        %v5393 = vshrl.u32 %v5392, 7
        %v5394 = vsub.s32 %v1306, %v5393
        %v5395 = vrot.slane %v5280, %v5394
        %v5396 = vlaneseq
        %v5397 = vshrl.u32 %v5396, 7
        %v5398 = vsub.s32 %v1311, %v5397
        %v5399 = vrot.slane %v5283, %v5398
        %v5400 = vsel %vm1316, %v5399, %v5395
        %v5401 = vlaneseq
        %v5402 = vshrl.u32 %v5401, 7
        %v5403 = vsub.s32 %v1306, %v5402
        %v5404 = vrot.slane %v5286, %v5403
        %v5405 = vlaneseq
        %v5406 = vshrl.u32 %v5405, 7
        %v5407 = vsub.s32 %v1311, %v5406
        %v5408 = vrot.slane %v5289, %v5407
        %v5409 = vsel %vm1316, %v5408, %v5404
        %v5410 = vlaneseq
        %v5411 = vshrl.u32 %v5410, 7
        %v5412 = vsub.s32 %v1306, %v5411
        %v5413 = vrot.slane %v5292, %v5412
        %v5414 = vlaneseq
        %v5415 = vshrl.u32 %v5414, 7
        %v5416 = vsub.s32 %v1311, %v5415
        %v5417 = vrot.slane %v5295, %v5416
        %v5418 = vsel %vm1316, %v5417, %v5413
        %v5419 = vlaneseq
        %v5420 = vshrl.u32 %v5419, 7
        %v5421 = vsub.s32 %v1306, %v5420
        %v5422 = vrot.slane %v5298, %v5421
        %v5423 = vlaneseq
        %v5424 = vshrl.u32 %v5423, 7
        %v5425 = vsub.s32 %v1311, %v5424
        %v5426 = vrot.slane %v5301, %v5425
        %v5427 = vsel %vm1316, %v5426, %v5422
        %v5428 = vlaneseq
        %v5429 = vshrl.u32 %v5428, 7
        %v5430 = vsub.s32 %v1306, %v5429
        %v5431 = vrot.slane %v5304, %v5430
        %v5432 = vlaneseq
        %v5433 = vshrl.u32 %v5432, 7
        %v5434 = vsub.s32 %v1311, %v5433
        %v5435 = vrot.slane %v5307, %v5434
        %v5436 = vsel %vm1316, %v5435, %v5431
        %v5437 = vlaneseq
        %v5438 = vshrl.u32 %v5437, 7
        %v5439 = vsub.s32 %v1306, %v5438
        %v5440 = vrot.slane %v5310, %v5439
        %v5441 = vlaneseq
        %v5442 = vshrl.u32 %v5441, 7
        %v5443 = vsub.s32 %v1311, %v5442
        %v5444 = vrot.slane %v5313, %v5443
        %v5445 = vsel %vm1316, %v5444, %v5440
        %v5446 = vlaneseq
        %v5447 = vshrl.u32 %v5446, 7
        %v5448 = vsub.s32 %v1306, %v5447
        %v5449 = vrot.slane %v5316, %v5448
        %v5450 = vlaneseq
        %v5451 = vshrl.u32 %v5450, 7
        %v5452 = vsub.s32 %v1311, %v5451
        %v5453 = vrot.slane %v5319, %v5452
        %v5454 = vsel %vm1316, %v5453, %v5449
        %v5455 = vlaneseq
        %v5456 = vshrl.u32 %v5455, 7
        %v5457 = vsub.s32 %v1306, %v5456
        %v5458 = vrot.slane %v5322, %v5457
        %v5459 = vlaneseq
        %v5460 = vshrl.u32 %v5459, 7
        %v5461 = vsub.s32 %v1311, %v5460
        %v5462 = vrot.slane %v5325, %v5461
        %v5463 = vsel %vm1316, %v5462, %v5458
        %v5464 = vlaneseq
        %v5465 = vshrl.u32 %v5464, 7
        %v5466 = vsub.s32 %v1306, %v5465
        %v5467 = vrot.slane %v5328, %v5466
        %v5468 = vlaneseq
        %v5469 = vshrl.u32 %v5468, 7
        %v5470 = vsub.s32 %v1311, %v5469
        %v5471 = vrot.slane %v5331, %v5470
        %v5472 = vsel %vm1316, %v5471, %v5467
        %v5473 = vlaneseq
        %v5474 = vshrl.u32 %v5473, 7
        %v5475 = vsub.s32 %v1306, %v5474
        %v5476 = vrot.slane %v5334, %v5475
        %v5477 = vlaneseq
        %v5478 = vshrl.u32 %v5477, 7
        %v5479 = vsub.s32 %v1311, %v5478
        %v5480 = vrot.slane %v5337, %v5479
        %v5481 = vsel %vm1316, %v5480, %v5476
        %v5482 = vsel %vm1453, %v5355, %v5346
        %v5483 = vsel %vm1455, %v5364, %v5482
        %v5484 = vsel %vm1457, %v5373, %v5483
        %v5485 = vsel %vm1459, %v5382, %v5484
        %v5486 = vsel %vm1461, %v5391, %v5485
        %v5487 = vsel %vm1463, %v5400, %v5486
        %v5488 = vsel %vm1465, %v5409, %v5487
        %v5489 = vsel %vm1453, %v5427, %v5418
        %v5490 = vsel %vm1455, %v5436, %v5489
        %v5491 = vsel %vm1457, %v5445, %v5490
        %v5492 = vsel %vm1459, %v5454, %v5491
        %v5493 = vsel %vm1461, %v5463, %v5492
        %v5494 = vsel %vm1463, %v5472, %v5493
        %v5495 = vsel %vm1465, %v5481, %v5494
        %v5498 = vsel %vm922, %v5488, 0.0
        %5499 = vadd.xlane.f32.xlu0 %v5498
        %v5500 = vpop.xlane.xlu0 %5499
        %v5501 = vsel %vm922, %v5495, 0.0
        %5502 = vadd.xlane.f32.xlu0 %v5501
        %v5503 = vpop.xlane.xlu0 %5502
        %v5506 = vlaneseq
        %v5507 = vshrl.u32 %v5506, 7
        %v5508 = vsub.s32 0, %v5507
        %v5509 = vrot.slane %v5500, %v5508
        %v5510 = vlaneseq
        %v5511 = vshrl.u32 %v5510, 7
        %v5512 = vsub.s32 1, %v5511
        %v5513 = vrot.slane %v5500, %v5512
        %v5514 = vlaneseq
        %v5515 = vshrl.u32 %v5514, 7
        %v5516 = vsub.s32 2, %v5515
        %v5517 = vrot.slane %v5500, %v5516
        %v5518 = vlaneseq
        %v5519 = vshrl.u32 %v5518, 7
        %v5520 = vsub.s32 3, %v5519
        %v5521 = vrot.slane %v5500, %v5520
        %v5522 = vlaneseq
        %v5523 = vshrl.u32 %v5522, 7
        %v5524 = vsub.s32 4, %v5523
        %v5525 = vrot.slane %v5500, %v5524
        %v5526 = vlaneseq
        %v5527 = vshrl.u32 %v5526, 7
        %v5528 = vsub.s32 5, %v5527
        %v5529 = vrot.slane %v5500, %v5528
        %v5530 = vlaneseq
        %v5531 = vshrl.u32 %v5530, 7
        %v5532 = vsub.s32 6, %v5531
        %v5533 = vrot.slane %v5500, %v5532
        %v5534 = vlaneseq
        %v5535 = vshrl.u32 %v5534, 7
        %v5536 = vsub.s32 7, %v5535
        %v5537 = vrot.slane %v5500, %v5536
        %v5538 = vlaneseq
        %v5539 = vshrl.u32 %v5538, 7
        %v5540 = vsub.s32 0, %v5539
        %v5541 = vrot.slane %v5503, %v5540
        %v5542 = vlaneseq
        %v5543 = vshrl.u32 %v5542, 7
        %v5544 = vsub.s32 1, %v5543
        %v5545 = vrot.slane %v5503, %v5544
        %v5546 = vlaneseq
        %v5547 = vshrl.u32 %v5546, 7
        %v5548 = vsub.s32 2, %v5547
        %v5549 = vrot.slane %v5503, %v5548
        %v5550 = vlaneseq
        %v5551 = vshrl.u32 %v5550, 7
        %v5552 = vsub.s32 3, %v5551
        %v5553 = vrot.slane %v5503, %v5552
        %v5554 = vlaneseq
        %v5555 = vshrl.u32 %v5554, 7
        %v5556 = vsub.s32 4, %v5555
        %v5557 = vrot.slane %v5503, %v5556
        %v5558 = vlaneseq
        %v5559 = vshrl.u32 %v5558, 7
        %v5560 = vsub.s32 5, %v5559
        %v5561 = vrot.slane %v5503, %v5560
        %v5562 = vlaneseq
        %v5563 = vshrl.u32 %v5562, 7
        %v5564 = vsub.s32 6, %v5563
        %v5565 = vrot.slane %v5503, %v5564
        %v5566 = vlaneseq
        %v5567 = vshrl.u32 %v5566, 7
        %v5568 = vsub.s32 7, %v5567
        %v5569 = vrot.slane %v5503, %v5568
        %v5586 = vrcp.pop %v5509
        %v5587 = vmul.f32 %v5178, %v5586
        %v5588 = vmul.f32 %v5179, %v5586
        %v5589 = vrcp.pop %v5513
        %v5590 = vmul.f32 %v5180, %v5589
        %v5591 = vmul.f32 %v5181, %v5589
        %v5592 = vrcp.pop %v5517
        %v5593 = vmul.f32 %v5182, %v5592
        %v5594 = vmul.f32 %v5183, %v5592
        %v5595 = vrcp.pop %v5521
        %v5596 = vmul.f32 %v5184, %v5595
        %v5597 = vmul.f32 %v5185, %v5595
        %v5598 = vrcp.pop %v5525
        %v5599 = vmul.f32 %v5186, %v5598
        %v5600 = vmul.f32 %v5187, %v5598
        %v5601 = vrcp.pop %v5529
        %v5602 = vmul.f32 %v5188, %v5601
        %v5603 = vmul.f32 %v5189, %v5601
        %v5604 = vrcp.pop %v5533
        %v5605 = vmul.f32 %v5190, %v5604
        %v5606 = vmul.f32 %v5191, %v5604
        %v5607 = vrcp.pop %v5537
        %v5608 = vmul.f32 %v5192, %v5607
        %v5609 = vmul.f32 %v5193, %v5607
        %v5610 = vrcp.pop %v5541
        %v5611 = vmul.f32 %v5194, %v5610
        %v5612 = vmul.f32 %v5195, %v5610
        %v5613 = vrcp.pop %v5545
        %v5614 = vmul.f32 %v5196, %v5613
        %v5615 = vmul.f32 %v5197, %v5613
        %v5616 = vrcp.pop %v5549
        %v5617 = vmul.f32 %v5198, %v5616
        %v5618 = vmul.f32 %v5199, %v5616
        %v5619 = vrcp.pop %v5553
        %v5620 = vmul.f32 %v5200, %v5619
        %v5621 = vmul.f32 %v5201, %v5619
        %v5622 = vrcp.pop %v5557
        %v5623 = vmul.f32 %v5202, %v5622
        %v5624 = vmul.f32 %v5203, %v5622
        %v5625 = vrcp.pop %v5561
        %v5626 = vmul.f32 %v5204, %v5625
        %v5627 = vmul.f32 %v5205, %v5625
        %v5628 = vrcp.pop %v5565
        %v5629 = vmul.f32 %v5206, %v5628
        %v5630 = vmul.f32 %v5207, %v5628
        %v5631 = vrcp.pop %v5569
        %v5632 = vmul.f32 %v5208, %v5631
        %v5633 = vmul.f32 %v5209, %v5631
        %5666 = vset.pattern.permute.xlu0 0
        %5667 = vperm.xlu0 %5666, %v5587
        %v5668 = vpop.permute.xlu0 %5667
        %5669 = vset.pattern.permute.xlu0 0
        %5670 = vperm.xlu0 %5669, %v5588
        %v5671 = vpop.permute.xlu0 %5670
        %5672 = vset.pattern.permute.xlu0 0
        %5673 = vperm.xlu0 %5672, %v5590
        %v5674 = vpop.permute.xlu0 %5673
        %5675 = vset.pattern.permute.xlu0 0
        %5676 = vperm.xlu0 %5675, %v5591
        %v5677 = vpop.permute.xlu0 %5676
        %5678 = vset.pattern.permute.xlu0 0
        %5679 = vperm.xlu0 %5678, %v5593
        %v5680 = vpop.permute.xlu0 %5679
        %5681 = vset.pattern.permute.xlu0 0
        %5682 = vperm.xlu0 %5681, %v5594
        %v5683 = vpop.permute.xlu0 %5682
        %5684 = vset.pattern.permute.xlu0 0
        %5685 = vperm.xlu0 %5684, %v5596
        %v5686 = vpop.permute.xlu0 %5685
        %5687 = vset.pattern.permute.xlu0 0
        %5688 = vperm.xlu0 %5687, %v5597
        %v5689 = vpop.permute.xlu0 %5688
        %5690 = vset.pattern.permute.xlu0 0
        %5691 = vperm.xlu0 %5690, %v5599
        %v5692 = vpop.permute.xlu0 %5691
        %5693 = vset.pattern.permute.xlu0 0
        %5694 = vperm.xlu0 %5693, %v5600
        %v5695 = vpop.permute.xlu0 %5694
        %5696 = vset.pattern.permute.xlu0 0
        %5697 = vperm.xlu0 %5696, %v5602
        %v5698 = vpop.permute.xlu0 %5697
        %5699 = vset.pattern.permute.xlu0 0
        %5700 = vperm.xlu0 %5699, %v5603
        %v5701 = vpop.permute.xlu0 %5700
        %5702 = vset.pattern.permute.xlu0 0
        %5703 = vperm.xlu0 %5702, %v5605
        %v5704 = vpop.permute.xlu0 %5703
        %5705 = vset.pattern.permute.xlu0 0
        %5706 = vperm.xlu0 %5705, %v5606
        %v5707 = vpop.permute.xlu0 %5706
        %5708 = vset.pattern.permute.xlu0 0
        %5709 = vperm.xlu0 %5708, %v5608
        %v5710 = vpop.permute.xlu0 %5709
        %5711 = vset.pattern.permute.xlu0 0
        %5712 = vperm.xlu0 %5711, %v5609
        %v5713 = vpop.permute.xlu0 %5712
        %5714 = vset.pattern.permute.xlu0 0
        %5715 = vperm.xlu0 %5714, %v5611
        %v5716 = vpop.permute.xlu0 %5715
        %5717 = vset.pattern.permute.xlu0 0
        %5718 = vperm.xlu0 %5717, %v5612
        %v5719 = vpop.permute.xlu0 %5718
        %5720 = vset.pattern.permute.xlu0 0
        %5721 = vperm.xlu0 %5720, %v5614
        %v5722 = vpop.permute.xlu0 %5721
        %5723 = vset.pattern.permute.xlu0 0
        %5724 = vperm.xlu0 %5723, %v5615
        %v5725 = vpop.permute.xlu0 %5724
        %5726 = vset.pattern.permute.xlu0 0
        %5727 = vperm.xlu0 %5726, %v5617
        %v5728 = vpop.permute.xlu0 %5727
        %5729 = vset.pattern.permute.xlu0 0
        %5730 = vperm.xlu0 %5729, %v5618
        %v5731 = vpop.permute.xlu0 %5730
        %5732 = vset.pattern.permute.xlu0 0
        %5733 = vperm.xlu0 %5732, %v5620
        %v5734 = vpop.permute.xlu0 %5733
        %5735 = vset.pattern.permute.xlu0 0
        %5736 = vperm.xlu0 %5735, %v5621
        %v5737 = vpop.permute.xlu0 %5736
        %5738 = vset.pattern.permute.xlu0 0
        %5739 = vperm.xlu0 %5738, %v5623
        %v5740 = vpop.permute.xlu0 %5739
        %5741 = vset.pattern.permute.xlu0 0
        %5742 = vperm.xlu0 %5741, %v5624
        %v5743 = vpop.permute.xlu0 %5742
        %5744 = vset.pattern.permute.xlu0 0
        %5745 = vperm.xlu0 %5744, %v5626
        %v5746 = vpop.permute.xlu0 %5745
        %5747 = vset.pattern.permute.xlu0 0
        %5748 = vperm.xlu0 %5747, %v5627
        %v5749 = vpop.permute.xlu0 %5748
        %5750 = vset.pattern.permute.xlu0 0
        %5751 = vperm.xlu0 %5750, %v5629
        %v5752 = vpop.permute.xlu0 %5751
        %5753 = vset.pattern.permute.xlu0 0
        %5754 = vperm.xlu0 %5753, %v5630
        %v5755 = vpop.permute.xlu0 %5754
        %5756 = vset.pattern.permute.xlu0 0
        %5757 = vperm.xlu0 %5756, %v5632
        %v5758 = vpop.permute.xlu0 %5757
        %5759 = vset.pattern.permute.xlu0 0
        %5760 = vperm.xlu0 %5759, %v5633
        %v5761 = vpop.permute.xlu0 %5760
        %v5762 = vlaneseq
        %v5763 = vshrl.u32 %v5762, 7
        %v5764 = vsub.s32 %v1306, %v5763
        %v5765 = vrot.slane %v5668, %v5764
        %v5766 = vlaneseq
        %v5767 = vshrl.u32 %v5766, 7
        %v5768 = vsub.s32 %v1311, %v5767
        %v5769 = vrot.slane %v5671, %v5768
        %v5770 = vsel %vm1316, %v5769, %v5765
        %v5771 = vlaneseq
        %v5772 = vshrl.u32 %v5771, 7
        %v5773 = vsub.s32 %v1306, %v5772
        %v5774 = vrot.slane %v5674, %v5773
        %v5775 = vlaneseq
        %v5776 = vshrl.u32 %v5775, 7
        %v5777 = vsub.s32 %v1311, %v5776
        %v5778 = vrot.slane %v5677, %v5777
        %v5779 = vsel %vm1316, %v5778, %v5774
        %v5780 = vlaneseq
        %v5781 = vshrl.u32 %v5780, 7
        %v5782 = vsub.s32 %v1306, %v5781
        %v5783 = vrot.slane %v5680, %v5782
        %v5784 = vlaneseq
        %v5785 = vshrl.u32 %v5784, 7
        %v5786 = vsub.s32 %v1311, %v5785
        %v5787 = vrot.slane %v5683, %v5786
        %v5788 = vsel %vm1316, %v5787, %v5783
        %v5789 = vlaneseq
        %v5790 = vshrl.u32 %v5789, 7
        %v5791 = vsub.s32 %v1306, %v5790
        %v5792 = vrot.slane %v5686, %v5791
        %v5793 = vlaneseq
        %v5794 = vshrl.u32 %v5793, 7
        %v5795 = vsub.s32 %v1311, %v5794
        %v5796 = vrot.slane %v5689, %v5795
        %v5797 = vsel %vm1316, %v5796, %v5792
        %v5798 = vlaneseq
        %v5799 = vshrl.u32 %v5798, 7
        %v5800 = vsub.s32 %v1306, %v5799
        %v5801 = vrot.slane %v5692, %v5800
        %v5802 = vlaneseq
        %v5803 = vshrl.u32 %v5802, 7
        %v5804 = vsub.s32 %v1311, %v5803
        %v5805 = vrot.slane %v5695, %v5804
        %v5806 = vsel %vm1316, %v5805, %v5801
        %v5807 = vlaneseq
        %v5808 = vshrl.u32 %v5807, 7
        %v5809 = vsub.s32 %v1306, %v5808
        %v5810 = vrot.slane %v5698, %v5809
        %v5811 = vlaneseq
        %v5812 = vshrl.u32 %v5811, 7
        %v5813 = vsub.s32 %v1311, %v5812
        %v5814 = vrot.slane %v5701, %v5813
        %v5815 = vsel %vm1316, %v5814, %v5810
        %v5816 = vlaneseq
        %v5817 = vshrl.u32 %v5816, 7
        %v5818 = vsub.s32 %v1306, %v5817
        %v5819 = vrot.slane %v5704, %v5818
        %v5820 = vlaneseq
        %v5821 = vshrl.u32 %v5820, 7
        %v5822 = vsub.s32 %v1311, %v5821
        %v5823 = vrot.slane %v5707, %v5822
        %v5824 = vsel %vm1316, %v5823, %v5819
        %v5825 = vlaneseq
        %v5826 = vshrl.u32 %v5825, 7
        %v5827 = vsub.s32 %v1306, %v5826
        %v5828 = vrot.slane %v5710, %v5827
        %v5829 = vlaneseq
        %v5830 = vshrl.u32 %v5829, 7
        %v5831 = vsub.s32 %v1311, %v5830
        %v5832 = vrot.slane %v5713, %v5831
        %v5833 = vsel %vm1316, %v5832, %v5828
        %v5834 = vlaneseq
        %v5835 = vshrl.u32 %v5834, 7
        %v5836 = vsub.s32 %v1306, %v5835
        %v5837 = vrot.slane %v5716, %v5836
        %v5838 = vlaneseq
        %v5839 = vshrl.u32 %v5838, 7
        %v5840 = vsub.s32 %v1311, %v5839
        %v5841 = vrot.slane %v5719, %v5840
        %v5842 = vsel %vm1316, %v5841, %v5837
        %v5843 = vlaneseq
        %v5844 = vshrl.u32 %v5843, 7
        %v5845 = vsub.s32 %v1306, %v5844
        %v5846 = vrot.slane %v5722, %v5845
        %v5847 = vlaneseq
        %v5848 = vshrl.u32 %v5847, 7
        %v5849 = vsub.s32 %v1311, %v5848
        %v5850 = vrot.slane %v5725, %v5849
        %v5851 = vsel %vm1316, %v5850, %v5846
        %v5852 = vlaneseq
        %v5853 = vshrl.u32 %v5852, 7
        %v5854 = vsub.s32 %v1306, %v5853
        %v5855 = vrot.slane %v5728, %v5854
        %v5856 = vlaneseq
        %v5857 = vshrl.u32 %v5856, 7
        %v5858 = vsub.s32 %v1311, %v5857
        %v5859 = vrot.slane %v5731, %v5858
        %v5860 = vsel %vm1316, %v5859, %v5855
        %v5861 = vlaneseq
        %v5862 = vshrl.u32 %v5861, 7
        %v5863 = vsub.s32 %v1306, %v5862
        %v5864 = vrot.slane %v5734, %v5863
        %v5865 = vlaneseq
        %v5866 = vshrl.u32 %v5865, 7
        %v5867 = vsub.s32 %v1311, %v5866
        %v5868 = vrot.slane %v5737, %v5867
        %v5869 = vsel %vm1316, %v5868, %v5864
        %v5870 = vlaneseq
        %v5871 = vshrl.u32 %v5870, 7
        %v5872 = vsub.s32 %v1306, %v5871
        %v5873 = vrot.slane %v5740, %v5872
        %v5874 = vlaneseq
        %v5875 = vshrl.u32 %v5874, 7
        %v5876 = vsub.s32 %v1311, %v5875
        %v5877 = vrot.slane %v5743, %v5876
        %v5878 = vsel %vm1316, %v5877, %v5873
        %v5879 = vlaneseq
        %v5880 = vshrl.u32 %v5879, 7
        %v5881 = vsub.s32 %v1306, %v5880
        %v5882 = vrot.slane %v5746, %v5881
        %v5883 = vlaneseq
        %v5884 = vshrl.u32 %v5883, 7
        %v5885 = vsub.s32 %v1311, %v5884
        %v5886 = vrot.slane %v5749, %v5885
        %v5887 = vsel %vm1316, %v5886, %v5882
        %v5888 = vlaneseq
        %v5889 = vshrl.u32 %v5888, 7
        %v5890 = vsub.s32 %v1306, %v5889
        %v5891 = vrot.slane %v5752, %v5890
        %v5892 = vlaneseq
        %v5893 = vshrl.u32 %v5892, 7
        %v5894 = vsub.s32 %v1311, %v5893
        %v5895 = vrot.slane %v5755, %v5894
        %v5896 = vsel %vm1316, %v5895, %v5891
        %v5897 = vlaneseq
        %v5898 = vshrl.u32 %v5897, 7
        %v5899 = vsub.s32 %v1306, %v5898
        %v5900 = vrot.slane %v5758, %v5899
        %v5901 = vlaneseq
        %v5902 = vshrl.u32 %v5901, 7
        %v5903 = vsub.s32 %v1311, %v5902
        %v5904 = vrot.slane %v5761, %v5903
        %v5905 = vsel %vm1316, %v5904, %v5900
        %v5906 = vsel %vm1453, %v5779, %v5770
        %v5907 = vsel %vm1455, %v5788, %v5906
        %v5908 = vsel %vm1457, %v5797, %v5907
        %v5909 = vsel %vm1459, %v5806, %v5908
        %v5910 = vsel %vm1461, %v5815, %v5909
        %v5911 = vsel %vm1463, %v5824, %v5910
        %v5912 = vsel %vm1465, %v5833, %v5911
        %v5913 = vsel %vm1453, %v5851, %v5842
        %v5914 = vsel %vm1455, %v5860, %v5913
        %v5915 = vsel %vm1457, %v5869, %v5914
        %v5916 = vsel %vm1459, %v5878, %v5915
        %v5917 = vsel %vm1461, %v5887, %v5916
        %v5918 = vsel %vm1463, %v5896, %v5917
        %v5919 = vsel %vm1465, %v5905, %v5918
        %5920 = vrot.lane.b32.xlu0 %v627, 32
        %v5921 = vpop.permute.xlu0 %5920
        %5922 = vrot.lane.b32.xlu0 %v630, 32
        %v5923 = vpop.permute.xlu0 %5922
        %v5926 = vsel %vm922, %v5912, 0
        %v5928 = vsel %vm922, %v5919, 0
        %5930 = vmatprep.subr.mxu0 0.0
        %5931 = vmatpush1.msra.mxu0 0.0
        %5932 = vmatprep.subr.mxu0 0.0
        %5933 = vmatpush1.msra.mxu0 0.0
        %5934 = vmatprep.subr.mxu0 0.0
        %5935 = vmatpush1.msra.mxu0 0.0
        %5936 = vmatprep.subr.mxu0 0.0
        %5937 = vmatpush1.msra.mxu0 0.0
        %5938 = vmatprep.subr.mxu0 0.0
        %5939 = vmatpush1.msra.mxu0 0.0
        %5940 = vmatprep.subr.mxu0 0.0
        %5941 = vmatpush1.msra.mxu0 0.0
        %5942 = vmatprep.subr.mxu0 0.0
        %5943 = vmatpush1.msra.mxu0 0.0
        %5944 = vmatprep.subr.mxu0 0.0
        %5945 = vmatpush1.msra.mxu0 0.0
        %5946 = vmatprep.subr.mxu0 0.0
        %5947 = vmatpush1.msra.mxu0 0.0
        %5948 = vmatprep.subr.mxu0 0.0
        %5949 = vmatpush1.msra.mxu0 0.0
        %5950 = vmatprep.subr.mxu0 0.0
        %5951 = vmatpush1.msra.mxu0 0.0
        %5952 = vmatprep.subr.mxu0 0.0
        %5953 = vmatpush1.msra.mxu0 0.0
        %5954 = vmatprep.subr.mxu0 0.0
        %5955 = vmatpush1.msra.mxu0 0.0
        %5956 = vmatprep.subr.mxu0 0.0
        %5957 = vmatpush1.msra.mxu0 0.0
        %5958 = vmatprep.subr.mxu0 0.0
        %5959 = vmatpush1.msra.mxu0 %v5923
        %5960 = vmatprep.subr.mxu0 0.0
        %5961 = vmatpush1.msra.mxu0 %v5921
        %5962 = vmatprep.subr.mxu0 0.0
        %5963 = vmatpush2.msra.mxu0 0.0
        %5964 = vmatprep.subr.mxu0 0.0
        %5965 = vmatpush2.msra.mxu0 0.0
        %5966 = vmatprep.subr.mxu0 0.0
        %5967 = vmatpush2.msra.mxu0 0.0
        %5968 = vmatprep.subr.mxu0 0.0
        %5969 = vmatpush2.msra.mxu0 0.0
        %5970 = vmatprep.subr.mxu0 0.0
        %5971 = vmatpush2.msra.mxu0 0.0
        %5972 = vmatprep.subr.mxu0 0.0
        %5973 = vmatpush2.msra.mxu0 0.0
        %5974 = vmatprep.subr.mxu0 0.0
        %5975 = vmatpush2.msra.mxu0 0.0
        %5976 = vmatprep.subr.mxu0 0.0
        %5977 = vmatpush2.msra.mxu0 0.0
        %5978 = vmatprep.subr.mxu0 0.0
        %5979 = vmatpush2.msra.mxu0 0.0
        %5980 = vmatprep.subr.mxu0 0.0
        %5981 = vmatpush2.msra.mxu0 0.0
        %5982 = vmatprep.subr.mxu0 0.0
        %5983 = vmatpush2.msra.mxu0 0.0
        %5984 = vmatprep.subr.mxu0 0.0
        %5985 = vmatpush2.msra.mxu0 0.0
        %5986 = vmatprep.subr.mxu0 0.0
        %5987 = vmatpush2.msra.mxu0 0.0
        %5988 = vmatprep.subr.mxu0 0.0
        %5989 = vmatpush2.msra.mxu0 0.0
        %5990 = vmatprep.subr.mxu0 0.0
        %5991 = vmatpush2.msra.mxu0 0.0
        %5992 = vmatprep.subr.mxu0 0.0
        %5993 = vmatpush2.msra.mxu0 0.0
        %5994 = vmatprep.mubr.f32.mxu0 0.0
        %5995 = vmatmul.mubr.f32.gmra.mxu0 %v5926
        %v5996 = vpop.f32.mrf.mxu0
        %v5997 = vadd.f32 0.0, %v5996
        %v5998 = vpop.f32.mrf.mxu0
        %5999 = vmatprep.mubr.f32.mxu0 0.0
        %6000 = vmatmul.mubr.f32.gmra.mxu0 %v5928
        %v6001 = vpop.f32.mrf.mxu0
        %v6002 = vadd.f32 0.0, %v6001
        %v6003 = vpop.f32.mrf.mxu0
        %6004 = vdwg.mxu0
        %6007 = vrot.lane.b32.xlu0 %v3313, 32
        %v6008 = vpop.permute.xlu0 %6007
        %6009 = vrot.lane.b32.xlu0 %v3318, 32
        %v6010 = vpop.permute.xlu0 %6009
        %6015 = vrot.lane.b32.xlu0 %v4655, 64
        %v6016 = vpop.permute.xlu0 %6015
        %6017 = vrot.lane.b32.xlu0 %v4660, 64
        %v6018 = vpop.permute.xlu0 %6017
        %6023 = vrot.lane.b32.xlu0 %v5997, 96
        %v6024 = vpop.permute.xlu0 %6023
        %6025 = vrot.lane.b32.xlu0 %v6002, 96
        %v6026 = vpop.permute.xlu0 %6025
        %v6029 = vsel %vm672, %v1969, %v6008
        %v6030 = vsel %vm672, %v1974, %v6010
        %vm6031 = vcmask 523264
        %v6032 = vsel %vm6031, %v6029, %v6016
        %v6033 = vsel %vm6031, %v6030, %v6018
        %vm6034 = vcmask 785408
        %v6035 = vsel %vm6034, %v6032, %v6024
        %v6036 = vsel %vm6034, %v6033, %v6026
        %v6037 = vadd.f32 %v6035, %v337
        %v6038 = vadd.f32 %v6036, %v338
        %6039 = vst [vmem:[%s335] sm:$0xff] %v6037
        %6040 = vst [vmem:[%s335 + $0x8] sm:$0xff] %v6038
        %s6041 = sand.u32 %s171, 1
        %s6042 = scalar_lea.sflag [#allocation4], %s6041
        %s6043 = sand.u32 %s171, 1
        %s6044 = smul.addr %s6043, 16
        %s6045 = scalar_lea.vmem [#allocation10], %s6044
        // Predicated region
        $region61: #{relation_module_pallas.1} parent=43 // pred_check
          %p6046 = pneg %p181
        $region62: #{relation_module_pallas.1} parent=43 // pred_check_branch
          %6048 = sbr.rel (%p6046) target = $region64
        $region63: #{relation_module_pallas.1} parent=43 // pred_region
          %s6050 = ssub.s32 256, 256
          %6051 = vsyncadd %s6042, %s6050
          %s6052 = smul.addr %s27, 2
          %s6053 = smul.addr %s6052, 128
          %s6054 = scalar_lea.hbm %s6, %s6053
          %s6055 = sshll.u32 %s6045, 4
          %s6056 = int_to_ptr.vmem [resolvable:$true] %s6055
          %6061 = dma.vmem_to_hbm [thread:$0]  %s6056, 256, %s6054, %s6042, 128, 128, 8
        $region64: #{relation_module_pallas.1} parent=43 // pred_fallthru
          _
      $region44: #{relation_module_pallas.1} parent=5 // pred_fallthru
        _
      %p6062 = scmp.le.s32.totalorder 2, %s22
      // Predicated region
      $region65: #{relation_module_pallas.1} parent=5 // pred_check
        %p6063 = pneg %p6062
      $region66: #{relation_module_pallas.1} parent=5 // pred_check_branch
        %6065 = sbr.rel (%p6063) target = $region68
      $region67: #{relation_module_pallas.1} parent=5 // pred_region
        %s6066 = ssub.s32 %s22, 2
        // Predicated region
        $region69: #{relation_module_pallas.1} parent=67 // pred_check
          %p6067 = pneg %p187
        $region70: #{relation_module_pallas.1} parent=67 // pred_check_branch
          %6069 = sbr.rel (%p6067) target = $region72
        $region71: #{relation_module_pallas.1} parent=67 // pred_region
          %s6070 = sand.u32 %s172, 1
          %s6071 = scalar_lea.sflag [#allocation4], %s6070
          %s6072 = sand.u32 %s172, 1
          %s6073 = smul.addr %s6072, 16
          %s6074 = scalar_lea.vmem [#allocation10], %s6073
          %6075 = dma.done %s6071, 256
        $region72: #{relation_module_pallas.1} parent=67 // pred_fallthru
          _
      $region68: #{relation_module_pallas.1} parent=5 // pred_fallthru
        _
    $region6: #{relation_module_pallas.1} parent=1 // loop_footer
      %s26 = sadd.s32 1, %s22
    $region7: #{relation_module_pallas.1} parent=1 // loop_footer_branch
      %21 = sbr.rel target = $region3
    $region8: #{relation_module_pallas.1} parent=1 // loop_exit
      _
    %6076 = vsyncpa [#allocation3], 1
    %s6077 = scalar_lea.sflag [#allocation3], 1
    %6078 = vsyncpa %s6077, 1
    %6079 = vsyncpa [#allocation7], 1
    %s6080 = scalar_lea.sflag [#allocation7], 1
    %6081 = vsyncpa %s6080, 1
    %6082 = vsyncpa [#allocation4], 1
    %s6083 = scalar_lea.sflag [#allocation4], 1
    %6084 = vsyncpa %s6083, 1
    %6085 = vsyncpa [#allocation5], 1
    %s6086 = scalar_lea.sflag [#allocation5], 1
    %6087 = vsyncpa %s6086, 1

</llo_original>
